<compile_context>
chip_gen: v7x
topology: tpu7x:2x2x1
jax: 0.10.0
libtpu: 0.0.40
codegen_flags: <defaults>
</compile_context>

<pallas_src>
import math
import functools

import jax
import jax.numpy as jnp
from jax import lax
from jax.experimental import pallas as pl
from jax.experimental.pallas import tpu as pltpu


# ----------------------------- in-kernel helpers -----------------------------

def _layernorm(x, scale, shift, eps=1e-5):
    # PyTorch-style LayerNorm: biased variance, eps inside the sqrt.
    mean = jnp.mean(x, axis=-1, keepdims=True)
    var = jnp.mean((x - mean) ** 2, axis=-1, keepdims=True)
    return scale * (x - mean) * lax.rsqrt(var + eps) + shift


def _gelu_tanh(x):
    return 0.5 * x * (1.0 + jnp.tanh(math.sqrt(2.0 / math.pi) * (x + 0.044715 * x ** 3)))


def _bf16(x):
    return x.astype(jnp.bfloat16)


# --------------------- fused loop-transformer kernel --------------------------

def loop_gpt_kernel(emb_ref,
                    ln1_s_ref, ln1_b_ref, wqkv_ref, wo_ref, bo_ref,
                    ln2_s_ref, ln2_b_ref, w1_ref, b1_ref, w2_ref, b2_ref,
                    wpa_ref, wpb_ref, fn_s_ref, fn_b_ref,
                    xn_out_ref,
                    x_vmem, x0_vmem,
                    *, batch, seq, num_heads):
    # grid = (batch_block, iteration, layer); all weights are VMEM-resident.
    it = pl.program_id(1)            # feedback iteration (slow)
    l = pl.program_id(2)             # transformer layer   (fast)
    n_it = pl.num_programs(1)
    n_l = pl.num_programs(2)

    # ---- start of this batch block: initial_x <- embeddings -----------------
    @pl.when(jnp.logical_and(it == 0, l == 0))
    def _():
        x0_vmem[...] = emb_ref[...]

    # ---- start of each iteration: x <- initial_x ----------------------------
    @pl.when(l == 0)
    def _():
        x_vmem[...] = x0_vmem[...]

    x = x_vmem[...]                                    # (BS, E) f32, VMEM-resident
    BS, E = x.shape
    H = num_heads
    hd = E // H
    G = H * batch

    # --------------------------- attention sub-block --------------------------
    shortcut = x
    xn = _layernorm(x, ln1_s_ref[l], ln1_b_ref[l])
    # fused QKV projection (1/sqrt(hd) pre-baked into the q columns of Wqkv)
    qkv = jnp.dot(_bf16(xn), wqkv_ref[l], preferred_element_type=jnp.float32)
    qkv_b = _bf16(qkv)                                 # single f32->bf16 cast

    def to_heads(t2d):                                 # (BS, E) -> (G, S, hd)
        t = t2d.reshape(BS, H, hd)
        t = pltpu.einshape("mhd->hmd", t)              # one relayout, no per-head slicing
        return t.reshape(G, seq, hd)

    qh = to_heads(qkv_b[:, :E])                        # 128-aligned lane slices
    kh = to_heads(qkv_b[:, E:2 * E])
    vh = to_heads(qkv_b[:, 2 * E:])

    # head-batched attention (single batched contraction)
    scores = jnp.einsum('gqd,gkd->gqk', qh, kh,
                        preferred_element_type=jnp.float32)          # (G, S, S) f32
    # causal mask from a single (S,S) iota, broadcast over G
    rpos = lax.broadcasted_iota(jnp.int32, (seq, seq), 0)
    cpos = lax.broadcasted_iota(jnp.int32, (seq, seq), 1)
    scores = scores + jnp.where(rpos >= cpos, 0.0, -1e30).astype(jnp.float32)

    m = jnp.max(scores, axis=-1, keepdims=True)
    p = jnp.exp(scores - m)                                          # f32
    p = p * pl.reciprocal(jnp.sum(p, axis=-1, keepdims=True), approx=True)
    ctx = jnp.einsum('gqk,gkd->gqd', _bf16(p), vh,
                     preferred_element_type=jnp.float32)             # (G, S, hd)

    # heads back to lanes: one cast + one relayout (no concat)
    ctx_b = _bf16(ctx).reshape(H, BS, hd)
    context = pltpu.einshape("hmd->mhd", ctx_b).reshape(BS, E)

    attn_out = jnp.dot(context, wo_ref[l],
                       preferred_element_type=jnp.float32) + bo_ref[l]
    x = attn_out + shortcut

    # -------------------------- feed-forward sub-block ------------------------
    shortcut = x
    xn2 = _layernorm(x, ln2_s_ref[l], ln2_b_ref[l])
    h1 = jnp.dot(_bf16(xn2), w1_ref[l], preferred_element_type=jnp.float32) + b1_ref[l]
    h1 = _gelu_tanh(h1)
    h2 = jnp.dot(_bf16(h1), w2_ref[l], preferred_element_type=jnp.float32) + b2_ref[l]
    x = h2 + shortcut

    x_vmem[...] = x

    # ---- end of iteration: initial_x = concat([initial_x, x]) @ W_proj -------
    # (two matmuls, no concat; projection after the LAST iteration is dead code
    #  in the reference module, so it is skipped)
    @pl.when(jnp.logical_and(l == n_l - 1, it < n_it - 1))
    def _():
        x0_vmem[...] = (
            jnp.dot(_bf16(x0_vmem[...]), wpa_ref[...], preferred_element_type=jnp.float32)
            + jnp.dot(_bf16(x), wpb_ref[...], preferred_element_type=jnp.float32))

    # ---- very last step: final LayerNorm, emitted in bf16 for the head -------
    @pl.when(jnp.logical_and(l == n_l - 1, it == n_it - 1))
    def _():
        xn_out_ref[...] = _bf16(_layernorm(x, fn_s_ref[...], fn_b_ref[...]))


# ------------------------------ vocab head kernel -----------------------------

def head_kernel(xn_ref, w_ref, out_ref):
    out_ref[...] = jnp.dot(xn_ref[...], w_ref[...],
                           preferred_element_type=jnp.float32)


# --------------------------------- wrappers -----------------------------------

def run_loop_transformer(x_emb, params, cfg, batch, seq, batch_blocks=1):
    BS, E = x_emb.shape
    L = cfg["n_layers"]
    n_iter = cfg["n_iter"]
    H = cfg["n_heads"]
    H4 = 4 * E
    hd = E // H
    assert batch % batch_blocks == 0 and seq % 8 == 0 and E % 128 == 0
    block_batch = batch // batch_blocks
    rows_b = block_batch * seq

    # bake 1/sqrt(hd) into the q columns of Wqkv (zero in-kernel cost)
    wqkv = params["wqkv"]
    q_scaled = (wqkv[..., :E].astype(jnp.float32) * (1.0 / math.sqrt(hd))
                ).astype(wqkv.dtype)
    wqkv = jnp.concatenate([q_scaled, wqkv[..., E:]], axis=-1)

    def cspec(shape):                # grid-constant: DMA'd once, VMEM-resident
        zeros = (0,) * len(shape)
        return pl.BlockSpec(shape, lambda b, it, l: zeros)

    emb_spec = pl.BlockSpec((rows_b, E), lambda b, it, l: (b, 0))
    out_spec = pl.BlockSpec((rows_b, E), lambda b, it, l: (b, 0))

    operands = [
        params["ln1_s"], params["ln1_b"], wqkv, params["wo"], params["bo"],
        params["ln2_s"], params["ln2_b"], params["w1"], params["b1"],
        params["w2"], params["b2"],
        params["wp_a"], params["wp_b"], params["fn_s"], params["fn_b"],
    ]
    in_specs = [emb_spec] + [cspec(o.shape) for o in operands]

    # explicit VMEM budget: resident weights (x2 for pipeline buffers), emb/out
    # blocks, f32 scratch, plus attention / FFN intermediates + margin.
    G = H * block_batch
    weight_bytes = sum(int(o.size) * o.dtype.itemsize for o in operands)
    inter_bytes = (4 * rows_b * 3 * E * 4) + (3 * G * seq * seq * 4) + (3 * rows_b * H4 * 4)
    est = (2 * weight_bytes + 2 * rows_b * E * 4 + 2 * rows_b * E * 2
           + 2 * rows_b * E * 4 + inter_bytes + (8 << 20))
    vmem_limit = int(min(max(est, 32 << 20), 64 << 20))

    return pl.pallas_call(
        functools.partial(loop_gpt_kernel, batch=block_batch, seq=seq, num_heads=H),
        out_shape=jax.ShapeDtypeStruct((BS, E), jnp.bfloat16),
        grid=(batch_blocks, n_iter, L),
        in_specs=in_specs,
        out_specs=out_spec,
        scratch_shapes=[pltpu.VMEM((rows_b, E), jnp.float32),   # x  (current activation)
                        pltpu.VMEM((rows_b, E), jnp.float32)],  # x0 (feedback state)
        compiler_params=pltpu.CompilerParams(
            dimension_semantics=("parallel", "arbitrary", "arbitrary"),
            vmem_limit_bytes=vmem_limit),
    )(x_emb, *operands)


def run_head(xn_bf16, w_out):
    BS, E = xn_bf16.shape
    V = w_out.shape[1]
    # lane-dense V tiles, as large as sensible; keep >=2 blocks for v7x TC balance
    tv = None
    for cand in (2048, 1024, 512, 256, 128):
        if V % cand == 0 and V // cand >= 2:
            tv = cand
            break
    if tv is None:
        tv = V
    est = 2 * BS * E * 2 + 4 * E * tv * 2 + 2 * BS * tv * 4 + (4 << 20)
    return pl.pallas_call(
        head_kernel,
        out_shape=jax.ShapeDtypeStruct((BS, V), jnp.float32),
        grid=(V // tv,),
        in_specs=[pl.BlockSpec((BS, E), lambda j: (0, 0)),
                  pl.BlockSpec((E, tv), lambda j: (0, j))],
        out_specs=pl.BlockSpec((BS, tv), lambda j: (0, j)),
        compiler_params=pltpu.CompilerParams(
            dimension_semantics=("parallel",),
            vmem_limit_bytes=int(min(max(est, 16 << 20), 64 << 20))),
    )(xn_bf16, w_out)


def feedback_gpt_concat_forward(params, in_idx, cfg):
    B, S = in_idx.shape
    E = cfg["emb_dim"]
    # TODO(synk): embedding gathers stay in JAX glue (data-dependent HBM gather).
    tok = params["tok_emb"][in_idx]                       # (B, S, E)
    pos = params["pos_emb"][:S]                           # (S, E)
    x = (tok + pos[None, :, :]).reshape(B * S, E)         # drop_emb: eval mode -> identity
    batch_blocks = 2 if (B % 2 == 0 and B >= 2) else 1    # engage both v7x TensorCores
    xn = run_loop_transformer(x, params, cfg, B, S, batch_blocks=batch_blocks)
    logits = run_head(xn, params["w_out"])                # (B*S, V) f32
    return logits.reshape(B, S, -1)


# ----------------------------- reference (pure JAX, f32 math) -----------------

def _ref_block(x, p, li, num_heads):
    B, S, E = x.shape
    hd = E // num_heads
    f32 = lambda a: a.astype(jnp.float32)
    sc = x
    xn = _layernorm(x, p["ln1_s"][li], p["ln1_b"][li])
    qkv = xn @ f32(p["wqkv"][li])
    q, k, v = qkv[..., :E], qkv[..., E:2 * E], qkv[..., 2 * E:]
    q = q.reshape(B, S, num_heads, hd).transpose(0, 2, 1, 3)
    k = k.reshape(B, S, num_heads, hd).transpose(0, 2, 1, 3)
    v = v.reshape(B, S, num_heads, hd).transpose(0, 2, 1, 3)
    s = jnp.einsum("bhqd,bhkd->bhqk", q, k) / math.sqrt(hd)
    mask = jnp.tril(jnp.ones((S, S), bool))
    s = jnp.where(mask, s, -1e30)
    attn = jax.nn.softmax(s, axis=-1)
    ctx = jnp.einsum("bhqk,bhkd->bhqd", attn, v).transpose(0, 2, 1, 3).reshape(B, S, E)
    x = ctx @ f32(p["wo"][li]) + p["bo"][li] + sc
    sc = x
    xn = _layernorm(x, p["ln2_s"][li], p["ln2_b"][li])
    h = _gelu_tanh(xn @ f32(p["w1"][li]) + p["b1"][li]) @ f32(p["w2"][li]) + p["b2"][li]
    return h + sc


def ref_forward(params, in_idx, cfg):
    B, S = in_idx.shape
    f32 = lambda a: a.astype(jnp.float32)
    x = params["tok_emb"][in_idx] + params["pos_emb"][:S][None]
    w_proj = jnp.concatenate([f32(params["wp_a"]), f32(params["wp_b"])], axis=0)
    initial_x = x
    for _ in range(cfg["n_iter"]):
        x = initial_x
        for li in range(cfg["n_layers"]):
            x = _ref_block(x, params, li, cfg["n_heads"])
        initial_x = jnp.concatenate([initial_x, x], axis=-1) @ w_proj
    xn = _layernorm(x, params["fn_s"], params["fn_b"])
    return xn @ f32(params["w_out"])


# ----------------------------- param init -------------------------------------

def init_params(cfg, key):
    E, V, C, L = cfg["emb_dim"], cfg["vocab_size"], cfg["context_length"], cfg["n_layers"]
    H4 = 4 * E
    ks = iter(jax.random.split(key, 8 + 8 * L))
    bf16 = jnp.bfloat16

    def nrm(shape, scale=0.02):
        return (scale * jax.random.normal(next(ks), shape)).astype(jnp.float32)

    def stack(shape, dtype=jnp.float32):
        return jnp.stack([nrm(shape) for _ in range(L)]).astype(dtype)

    return dict(
        tok_emb=nrm((V, E)),
        pos_emb=nrm((C, E)),
        # per-layer weights stacked along a leading L axis; matmul weights in bf16
        ln1_s=jnp.ones((L, 1, E), jnp.float32), ln1_b=jnp.zeros((L, 1, E), jnp.float32),
        wqkv=stack((E, 3 * E), bf16),
        wo=stack((E, E), bf16), bo=stack((1, E)),
        ln2_s=jnp.ones((L, 1, E), jnp.float32), ln2_b=jnp.zeros((L, 1, E), jnp.float32),
        w1=stack((E, H4), bf16), b1=stack((1, H4)),
        w2=stack((H4, E), bf16), b2=stack((1, E)),
        # concat-feedback projection W_proj (2E, E), split into the two row halves
        wp_a=nrm((E, E)).astype(bf16), wp_b=nrm((E, E)).astype(bf16),
        fn_s=jnp.ones((1, E), jnp.float32), fn_b=jnp.zeros((1, E), jnp.float32),
        w_out=nrm((E, V)).astype(bf16),
    )


# --------------------------------- main ----------------------------------------

if __name__ == "__main__":
    # small but TPU-aligned shapes (lane dim multiples of 128, sublanes of 8)
    cfg = dict(vocab_size=256, context_length=64, emb_dim=128,
               n_heads=4, n_layers=2, n_iter=2, drop_rate=0.0, qkv_bias=False)
    B, S = 2, 32

    key = jax.random.PRNGKey(0)
    pkey, ikey = jax.random.split(key)
    params = init_params(cfg, pkey)
    in_idx = jax.random.randint(ikey, (B, S), 0, cfg["vocab_size"], dtype=jnp.int32)

    fwd = jax.jit(lambda p, idx: feedback_gpt_concat_forward(p, idx, cfg))
    logits = jax.block_until_ready(fwd(params, in_idx))

    ref = ref_forward(params, in_idx, cfg)
    assert logits.shape == (B, S, cfg["vocab_size"])
    # kernel uses bf16 matmul operands (MXU-native); reference is pure f32 math
    max_err = float(jnp.max(jnp.abs(logits - ref)))
    assert jnp.allclose(logits, ref, atol=5e-2, rtol=5e-2), max_err
    print("KERNEL_OK")
</pallas_src>

<mosaic_0001>
module attributes {stable_mosaic.version = 11 : i64} {
  func.func @head_kernel(%arg0: i32, %arg1: memref<64x128xbf16, #tpu.memory_space<vmem>>, %arg2: memref<128x128xbf16, #tpu.memory_space<vmem>>, %arg3: memref<64x128xf32, #tpu.memory_space<vmem>>) attributes {dimension_semantics = [#tpu.dimension_semantics<parallel>], iteration_bounds = array<i64: 2>, scalar_prefetch = 0 : i64, scratch_operands = 0 : i64, tpu.core_type = #tpu.core_type<tc>, window_params = [{pipeline_mode = #tpu.pipeline_mode<synchronous>, transform_indices = @transform_0, window_bounds = array<i64: 64, 128>}, {transform_indices = @transform_1, window_bounds = array<i64: 128, 128>}, {transform_indices = @transform_2, window_bounds = array<i64: 64, 128>}]} {
    %c0 = arith.constant 0 : index
    %c0_0 = arith.constant 0 : index
    %0 = vector.load %arg1[%c0, %c0_0] : memref<64x128xbf16, #tpu.memory_space<vmem>>, vector<64x128xbf16>
    %c0_1 = arith.constant 0 : index
    %c0_2 = arith.constant 0 : index
    %1 = vector.load %arg2[%c0_1, %c0_2] : memref<128x128xbf16, #tpu.memory_space<vmem>>, vector<128x128xbf16>
    %cst = arith.constant dense<0.000000e+00> : vector<64x128xf32>
    %2 = tpu.matmul %0, %1, %cst {dimension_numbers = #tpu.dot_dimension_numbers<[1], [0], [0], [1], [0, 0, 1, 1], [], []>} : vector<64x128xbf16>, vector<128x128xbf16>, vector<64x128xf32> -> vector<64x128xf32>
    %c0_3 = arith.constant 0 : index
    %c0_4 = arith.constant 0 : index
    %3 = vector.load %arg3[%c0_3, %c0_4] : memref<64x128xf32, #tpu.memory_space<vmem>>, vector<64x128xf32>
    tpu.vector_store %arg3[%c0_3, %c0_4], %2 {strides = array<i32>} : memref<64x128xf32, #tpu.memory_space<vmem>>, vector<64x128xf32>,
    return
  }
  func.func @transform_0(%arg0: i32) -> (i32, i32) {
    %c0_i32 = arith.constant 0 : i32
    %c0_i32_0 = arith.constant 0 : i32
    %c0_i32_1 = arith.constant 0 : i32
    return %c0_i32, %c0_i32_0 : i32, i32
  }
  func.func @transform_1(%arg0: i32) -> (i32, i32) {
    %c0_i32 = arith.constant 0 : i32
    %c0_i32_0 = arith.constant 0 : i32
    return %c0_i32, %arg0 : i32, i32
  }
  func.func @transform_2(%arg0: i32) -> (i32, i32) {
    %c0_i32 = arith.constant 0 : i32
    %c0_i32_0 = arith.constant 0 : i32
    return %c0_i32, %arg0 : i32, i32
  }
}

module attributes {stable_mosaic.version = 11 : i64} {
  func.func @loop_gpt_kernel(%arg0: i32, %arg1: i32, %arg2: i32, %arg3: memref<32x128xf32, #tpu.memory_space<vmem>>, %arg4: memref<2x1x128xf32, #tpu.memory_space<vmem>>, %arg5: memref<2x1x128xf32, #tpu.memory_space<vmem>>, %arg6: memref<2x128x384xbf16, #tpu.memory_space<vmem>>, %arg7: memref<2x128x128xbf16, #tpu.memory_space<vmem>>, %arg8: memref<2x1x128xf32, #tpu.memory_space<vmem>>, %arg9: memref<2x1x128xf32, #tpu.memory_space<vmem>>, %arg10: memref<2x1x128xf32, #tpu.memory_space<vmem>>, %arg11: memref<2x128x512xbf16, #tpu.memory_space<vmem>>, %arg12: memref<2x1x512xf32, #tpu.memory_space<vmem>>, %arg13: memref<2x512x128xbf16, #tpu.memory_space<vmem>>, %arg14: memref<2x1x128xf32, #tpu.memory_space<vmem>>, %arg15: memref<128x128xbf16, #tpu.memory_space<vmem>>, %arg16: memref<128x128xbf16, #tpu.memory_space<vmem>>, %arg17: memref<1x128xf32, #tpu.memory_space<vmem>>, %arg18: memref<1x128xf32, #tpu.memory_space<vmem>>, %arg19: memref<32x128xbf16, #tpu.memory_space<vmem>>, %arg20: memref<32x128xf32, #tpu.memory_space<vmem>>, %arg21: memref<32x128xf32, #tpu.memory_space<vmem>>) attributes {dimension_semantics = [#tpu.dimension_semantics<parallel>, #tpu.dimension_semantics<arbitrary>, #tpu.dimension_semantics<arbitrary>], iteration_bounds = array<i64: 2, 2, 2>, scalar_prefetch = 0 : i64, scratch_operands = 2 : i64, tpu.core_type = #tpu.core_type<tc>, window_params = [{transform_indices = @transform_0, window_bounds = array<i64: 32, 128>}, {pipeline_mode = #tpu.pipeline_mode<synchronous>, transform_indices = @transform_1, window_bounds = array<i64: 2, 1, 128>}, {pipeline_mode = #tpu.pipeline_mode<synchronous>, transform_indices = @transform_2, window_bounds = array<i64: 2, 1, 128>}, {pipeline_mode = #tpu.pipeline_mode<synchronous>, transform_indices = @transform_3, window_bounds = array<i64: 2, 128, 384>}, {pipeline_mode = #tpu.pipeline_mode<synchronous>, transform_indices = @transform_4, window_bounds = array<i64: 2, 128, 128>}, {pipeline_mode = #tpu.pipeline_mode<synchronous>, transform_indices = @transform_5, window_bounds = array<i64: 2, 1, 128>}, {pipeline_mode = #tpu.pipeline_mode<synchronous>, transform_indices = @transform_6, window_bounds = array<i64: 2, 1, 128>}, {pipeline_mode = #tpu.pipeline_mode<synchronous>, transform_indices = @transform_7, window_bounds = array<i64: 2, 1, 128>}, {pipeline_mode = #tpu.pipeline_mode<synchronous>, transform_indices = @transform_8, window_bounds = array<i64: 2, 128, 512>}, {pipeline_mode = #tpu.pipeline_mode<synchronous>, transform_indices = @transform_9, window_bounds = array<i64: 2, 1, 512>}, {pipeline_mode = #tpu.pipeline_mode<synchronous>, transform_indices = @transform_10, window_bounds = array<i64: 2, 512, 128>}, {pipeline_mode = #tpu.pipeline_mode<synchronous>, transform_indices = @transform_11, window_bounds = array<i64: 2, 1, 128>}, {pipeline_mode = #tpu.pipeline_mode<synchronous>, transform_indices = @transform_12, window_bounds = array<i64: 128, 128>}, {pipeline_mode = #tpu.pipeline_mode<synchronous>, transform_indices = @transform_13, window_bounds = array<i64: 128, 128>}, {pipeline_mode = #tpu.pipeline_mode<synchronous>, transform_indices = @transform_14, window_bounds = array<i64: 1, 128>}, {pipeline_mode = #tpu.pipeline_mode<synchronous>, transform_indices = @transform_15, window_bounds = array<i64: 1, 128>}, {transform_indices = @transform_16, window_bounds = array<i64: 32, 128>}]} {
    %c0_i32 = arith.constant 0 : i32
    %0 = arith.cmpi eq, %arg1, %c0_i32 : i32
    %c0_i32_0 = arith.constant 0 : i32
    %1 = arith.cmpi eq, %arg2, %c0_i32_0 : i32
    %2 = arith.andi %0, %1 : i1
    %3 = arith.extui %2 : i1 to i32
    %c0_i32_1 = arith.constant 0 : i32
    %4 = arith.cmpi ne, %3, %c0_i32_1 : i32
    scf.if %4 {
      %c0_57 = arith.constant 0 : index
      %c0_58 = arith.constant 0 : index
      %160 = vector.load %arg3[%c0_57, %c0_58] : memref<32x128xf32, #tpu.memory_space<vmem>>, vector<32x128xf32>
      %c0_59 = arith.constant 0 : index
      %c0_60 = arith.constant 0 : index
      %161 = vector.load %arg21[%c0_59, %c0_60] : memref<32x128xf32, #tpu.memory_space<vmem>>, vector<32x128xf32>
      tpu.vector_store %arg21[%c0_59, %c0_60], %160 {strides = array<i32>} : memref<32x128xf32, #tpu.memory_space<vmem>>, vector<32x128xf32>,
    } else {
    }
    %c0_i32_2 = arith.constant 0 : i32
    %5 = arith.cmpi eq, %arg2, %c0_i32_2 : i32
    %6 = arith.extui %5 : i1 to i32
    %c0_i32_3 = arith.constant 0 : i32
    %7 = arith.cmpi ne, %6, %c0_i32_3 : i32
    scf.if %7 {
      %c0_57 = arith.constant 0 : index
      %c0_58 = arith.constant 0 : index
      %160 = vector.load %arg21[%c0_57, %c0_58] : memref<32x128xf32, #tpu.memory_space<vmem>>, vector<32x128xf32>
      %c0_59 = arith.constant 0 : index
      %c0_60 = arith.constant 0 : index
      %161 = vector.load %arg20[%c0_59, %c0_60] : memref<32x128xf32, #tpu.memory_space<vmem>>, vector<32x128xf32>
      tpu.vector_store %arg20[%c0_59, %c0_60], %160 {strides = array<i32>} : memref<32x128xf32, #tpu.memory_space<vmem>>, vector<32x128xf32>,
    } else {
    }
    %c0 = arith.constant 0 : index
    %c0_4 = arith.constant 0 : index
    %8 = vector.load %arg20[%c0, %c0_4] : memref<32x128xf32, #tpu.memory_space<vmem>>, vector<32x128xf32>
    %9 = arith.index_cast %arg2 : i32 to index
    %c0_5 = arith.constant 0 : index
    %c0_6 = arith.constant 0 : index
    %10 = vector.load %arg4[%9, %c0_5, %c0_6] : memref<2x1x128xf32, #tpu.memory_space<vmem>>, vector<1x1x128xf32>
    %11 = vector.shape_cast %10 : vector<1x1x128xf32> to vector<1x128xf32>
    %12 = arith.index_cast %arg2 : i32 to index
    %c0_7 = arith.constant 0 : index
    %c0_8 = arith.constant 0 : index
    %13 = vector.load %arg5[%12, %c0_7, %c0_8] : memref<2x1x128xf32, #tpu.memory_space<vmem>>, vector<1x1x128xf32>
    %14 = vector.shape_cast %13 : vector<1x1x128xf32> to vector<1x128xf32>
    %cst = arith.constant dense<0.000000e+00> : vector<32xf32>
    %15 = vector.multi_reduction <add>, %8, %cst [1] : vector<32x128xf32> to vector<32xf32>
    %16 = vector.shape_cast %15 : vector<32xf32> to vector<32x1xf32>
    %cst_9 = arith.constant 1.280000e+02 : f32
    %17 = vector.broadcast %cst_9 : f32 to vector<32x1xf32>
    %18 = arith.divf %16, %17 : vector<32x1xf32>
    %19 = vector.broadcast %18 : vector<32x1xf32> to vector<32x128xf32>
    %20 = arith.subf %8, %19 : vector<32x128xf32>
    %21 = arith.mulf %20, %20 : vector<32x128xf32>
    %cst_10 = arith.constant dense<0.000000e+00> : vector<32xf32>
    %22 = vector.multi_reduction <add>, %21, %cst_10 [1] : vector<32x128xf32> to vector<32xf32>
    %23 = vector.shape_cast %22 : vector<32xf32> to vector<32x1xf32>
    %cst_11 = arith.constant 1.280000e+02 : f32
    %24 = vector.broadcast %cst_11 : f32 to vector<32x1xf32>
    %25 = arith.divf %23, %24 : vector<32x1xf32>
    %26 = vector.broadcast %18 : vector<32x1xf32> to vector<32x128xf32>
    %27 = arith.subf %8, %26 : vector<32x128xf32>
    %28 = vector.broadcast %11 : vector<1x128xf32> to vector<32x128xf32>
    %29 = arith.mulf %28, %27 : vector<32x128xf32>
    %cst_12 = arith.constant 9.99999974E-6 : f32
    %30 = vector.broadcast %cst_12 : f32 to vector<32x1xf32>
    %31 = arith.addf %25, %30 : vector<32x1xf32>
    %32 = math.rsqrt %31 : vector<32x1xf32>
    %33 = vector.broadcast %32 : vector<32x1xf32> to vector<32x128xf32>
    %34 = arith.mulf %29, %33 : vector<32x128xf32>
    %35 = vector.broadcast %14 : vector<1x128xf32> to vector<32x128xf32>
    %36 = arith.addf %34, %35 : vector<32x128xf32>
    %37 = arith.truncf %36 : vector<32x128xf32> to vector<32x128xbf16>
    %38 = arith.index_cast %arg2 : i32 to index
    %c0_13 = arith.constant 0 : index
    %c0_14 = arith.constant 0 : index
    %39 = vector.load %arg6[%38, %c0_13, %c0_14] : memref<2x128x384xbf16, #tpu.memory_space<vmem>>, vector<1x128x384xbf16>
    %40 = vector.shape_cast %39 : vector<1x128x384xbf16> to vector<128x384xbf16>
    %cst_15 = arith.constant dense<0.000000e+00> : vector<32x384xf32>
    %41 = tpu.matmul %37, %40, %cst_15 {dimension_numbers = #tpu.dot_dimension_numbers<[1], [0], [0], [1], [0, 0, 1, 1], [], []>} : vector<32x128xbf16>, vector<128x384xbf16>, vector<32x384xf32> -> vector<32x384xf32>
    %42 = arith.truncf %41 : vector<32x384xf32> to vector<32x384xbf16>
    %43 = vector.extract_strided_slice %42 {offsets = [0, 0], sizes = [32, 128], strides = [1, 1]} : vector<32x384xbf16> to vector<32x128xbf16>
    %44 = vector.shape_cast %43 : vector<32x128xbf16> to vector<32x4x32xbf16>
    %45 = tpu.transpose %44, [1, 0, 2] : vector<32x4x32xbf16> -> vector<4x32x32xbf16>
    %46 = vector.extract_strided_slice %42 {offsets = [0, 128], sizes = [32, 128], strides = [1, 1]} : vector<32x384xbf16> to vector<32x128xbf16>
    %47 = vector.shape_cast %46 : vector<32x128xbf16> to vector<32x4x32xbf16>
    %48 = tpu.transpose %47, [1, 0, 2] : vector<32x4x32xbf16> -> vector<4x32x32xbf16>
    %49 = vector.extract_strided_slice %42 {offsets = [0, 256], sizes = [32, 128], strides = [1, 1]} : vector<32x384xbf16> to vector<32x128xbf16>
    %50 = vector.shape_cast %49 : vector<32x128xbf16> to vector<32x4x32xbf16>
    %51 = tpu.transpose %50, [1, 0, 2] : vector<32x4x32xbf16> -> vector<4x32x32xbf16>
    "tpu.trace_start"() <{level = 10 : i32, message = "gqd,gkd->gqk"}> : () -> ()
    %cst_16 = arith.constant dense<0.000000e+00> : vector<4x32x32xf32>
    %52 = tpu.matmul %45, %48, %cst_16 {dimension_numbers = #tpu.dot_dimension_numbers<[2], [2], [1], [1], [0, 0, 0, 1, 1, 1], [0], [0]>} : vector<4x32x32xbf16>, vector<4x32x32xbf16>, vector<4x32x32xf32> -> vector<4x32x32xf32>
    "tpu.trace_stop"() : () -> ()
    %53 = tpu.iota {dimensions = array<i32: 0>} : vector<32x32xi32>
    %54 = tpu.iota {dimensions = array<i32: 1>} : vector<32x32xi32>
    %55 = arith.cmpi sge, %53, %54 : vector<32x32xi32>
    %cst_17 = arith.constant 0.000000e+00 : f32
    %cst_18 = arith.constant -1.000000e+30 : f32
    %56 = vector.broadcast %cst_17 : f32 to vector<32x32xf32>
    %57 = vector.broadcast %cst_18 : f32 to vector<32x32xf32>
    %58 = arith.select %55, %56, %57 : vector<32x32xi1>, vector<32x32xf32>
    %59 = vector.shape_cast %58 : vector<32x32xf32> to vector<1x32x32xf32>
    %60 = vector.broadcast %59 : vector<1x32x32xf32> to vector<4x32x32xf32>
    %61 = arith.addf %52, %60 : vector<4x32x32xf32>
    %cst_19 = arith.constant dense<0xFF800000> : vector<4x32xf32>
    %62 = vector.multi_reduction <maximumf>, %61, %cst_19 [2] : vector<4x32x32xf32> to vector<4x32xf32>
    %63 = vector.shape_cast %62 : vector<4x32xf32> to vector<4x32x1xf32>
    %64 = vector.broadcast %63 : vector<4x32x1xf32> to vector<4x32x32xf32>
    %65 = arith.subf %61, %64 : vector<4x32x32xf32>
    %66 = math.exp %65 : vector<4x32x32xf32>
    %cst_20 = arith.constant dense<0.000000e+00> : vector<4x32xf32>
    %67 = vector.multi_reduction <add>, %66, %cst_20 [2] : vector<4x32x32xf32> to vector<4x32xf32>
    %68 = vector.shape_cast %67 : vector<4x32xf32> to vector<4x32x1xf32>
    %69 = tpu.reciprocal %68 {approx = true} : vector<4x32x1xf32> -> vector<4x32x1xf32>
    %70 = vector.broadcast %69 : vector<4x32x1xf32> to vector<4x32x32xf32>
    %71 = arith.mulf %66, %70 : vector<4x32x32xf32>
    %72 = arith.truncf %71 : vector<4x32x32xf32> to vector<4x32x32xbf16>
    "tpu.trace_start"() <{level = 10 : i32, message = "gqk,gkd->gqd"}> : () -> ()
    %cst_21 = arith.constant dense<0.000000e+00> : vector<4x32x32xf32>
    %73 = tpu.matmul %72, %51, %cst_21 {dimension_numbers = #tpu.dot_dimension_numbers<[2], [1], [1], [2], [0, 0, 0, 1, 1, 2], [0], [0]>} : vector<4x32x32xbf16>, vector<4x32x32xbf16>, vector<4x32x32xf32> -> vector<4x32x32xf32>
    "tpu.trace_stop"() : () -> ()
    %74 = arith.truncf %73 : vector<4x32x32xf32> to vector<4x32x32xbf16>
    %75 = tpu.transpose %74, [1, 0, 2] : vector<4x32x32xbf16> -> vector<32x4x32xbf16>
    %76 = vector.shape_cast %75 : vector<32x4x32xbf16> to vector<32x128xbf16>
    %77 = arith.index_cast %arg2 : i32 to index
    %c0_22 = arith.constant 0 : index
    %c0_23 = arith.constant 0 : index
    %78 = vector.load %arg7[%77, %c0_22, %c0_23] : memref<2x128x128xbf16, #tpu.memory_space<vmem>>, vector<1x128x128xbf16>
    %79 = vector.shape_cast %78 : vector<1x128x128xbf16> to vector<128x128xbf16>
    %cst_24 = arith.constant dense<0.000000e+00> : vector<32x128xf32>
    %80 = tpu.matmul %76, %79, %cst_24 {dimension_numbers = #tpu.dot_dimension_numbers<[1], [0], [0], [1], [0, 0, 1, 1], [], []>} : vector<32x128xbf16>, vector<128x128xbf16>, vector<32x128xf32> -> vector<32x128xf32>
    %81 = arith.index_cast %arg2 : i32 to index
    %c0_25 = arith.constant 0 : index
    %c0_26 = arith.constant 0 : index
    %82 = vector.load %arg8[%81, %c0_25, %c0_26] : memref<2x1x128xf32, #tpu.memory_space<vmem>>, vector<1x1x128xf32>
    %83 = vector.shape_cast %82 : vector<1x1x128xf32> to vector<1x128xf32>
    %84 = vector.broadcast %83 : vector<1x128xf32> to vector<32x128xf32>
    %85 = arith.addf %80, %84 : vector<32x128xf32>
    %86 = arith.addf %85, %8 : vector<32x128xf32>
    %87 = arith.index_cast %arg2 : i32 to index
    %c0_27 = arith.constant 0 : index
    %c0_28 = arith.constant 0 : index
    %88 = vector.load %arg9[%87, %c0_27, %c0_28] : memref<2x1x128xf32, #tpu.memory_space<vmem>>, vector<1x1x128xf32>
    %89 = vector.shape_cast %88 : vector<1x1x128xf32> to vector<1x128xf32>
    %90 = arith.index_cast %arg2 : i32 to index
    %c0_29 = arith.constant 0 : index
    %c0_30 = arith.constant 0 : index
    %91 = vector.load %arg10[%90, %c0_29, %c0_30] : memref<2x1x128xf32, #tpu.memory_space<vmem>>, vector<1x1x128xf32>
    %92 = vector.shape_cast %91 : vector<1x1x128xf32> to vector<1x128xf32>
    %cst_31 = arith.constant dense<0.000000e+00> : vector<32xf32>
    %93 = vector.multi_reduction <add>, %86, %cst_31 [1] : vector<32x128xf32> to vector<32xf32>
    %94 = vector.shape_cast %93 : vector<32xf32> to vector<32x1xf32>
    %cst_32 = arith.constant 1.280000e+02 : f32
    %95 = vector.broadcast %cst_32 : f32 to vector<32x1xf32>
    %96 = arith.divf %94, %95 : vector<32x1xf32>
    %97 = vector.broadcast %96 : vector<32x1xf32> to vector<32x128xf32>
    %98 = arith.subf %86, %97 : vector<32x128xf32>
    %99 = arith.mulf %98, %98 : vector<32x128xf32>
    %cst_33 = arith.constant dense<0.000000e+00> : vector<32xf32>
    %100 = vector.multi_reduction <add>, %99, %cst_33 [1] : vector<32x128xf32> to vector<32xf32>
    %101 = vector.shape_cast %100 : vector<32xf32> to vector<32x1xf32>
    %cst_34 = arith.constant 1.280000e+02 : f32
    %102 = vector.broadcast %cst_34 : f32 to vector<32x1xf32>
    %103 = arith.divf %101, %102 : vector<32x1xf32>
    %104 = vector.broadcast %96 : vector<32x1xf32> to vector<32x128xf32>
    %105 = arith.subf %86, %104 : vector<32x128xf32>
    %106 = vector.broadcast %89 : vector<1x128xf32> to vector<32x128xf32>
    %107 = arith.mulf %106, %105 : vector<32x128xf32>
    %cst_35 = arith.constant 9.99999974E-6 : f32
    %108 = vector.broadcast %cst_35 : f32 to vector<32x1xf32>
    %109 = arith.addf %103, %108 : vector<32x1xf32>
    %110 = math.rsqrt %109 : vector<32x1xf32>
    %111 = vector.broadcast %110 : vector<32x1xf32> to vector<32x128xf32>
    %112 = arith.mulf %107, %111 : vector<32x128xf32>
    %113 = vector.broadcast %92 : vector<1x128xf32> to vector<32x128xf32>
    %114 = arith.addf %112, %113 : vector<32x128xf32>
    %115 = arith.truncf %114 : vector<32x128xf32> to vector<32x128xbf16>
    %116 = arith.index_cast %arg2 : i32 to index
    %c0_36 = arith.constant 0 : index
    %c0_37 = arith.constant 0 : index
    %117 = vector.load %arg11[%116, %c0_36, %c0_37] : memref<2x128x512xbf16, #tpu.memory_space<vmem>>, vector<1x128x512xbf16>
    %118 = vector.shape_cast %117 : vector<1x128x512xbf16> to vector<128x512xbf16>
    %cst_38 = arith.constant dense<0.000000e+00> : vector<32x512xf32>
    %119 = tpu.matmul %115, %118, %cst_38 {dimension_numbers = #tpu.dot_dimension_numbers<[1], [0], [0], [1], [0, 0, 1, 1], [], []>} : vector<32x128xbf16>, vector<128x512xbf16>, vector<32x512xf32> -> vector<32x512xf32>
    %120 = arith.index_cast %arg2 : i32 to index
    %c0_39 = arith.constant 0 : index
    %c0_40 = arith.constant 0 : index
    %121 = vector.load %arg12[%120, %c0_39, %c0_40] : memref<2x1x512xf32, #tpu.memory_space<vmem>>, vector<1x1x512xf32>
    %122 = vector.shape_cast %121 : vector<1x1x512xf32> to vector<1x512xf32>
    %123 = vector.broadcast %122 : vector<1x512xf32> to vector<32x512xf32>
    %124 = arith.addf %119, %123 : vector<32x512xf32>
    %cst_41 = arith.constant 5.000000e-01 : f32
    %125 = vector.broadcast %cst_41 : f32 to vector<32x512xf32>
    %126 = arith.mulf %125, %124 : vector<32x512xf32>
    %127 = arith.mulf %124, %124 : vector<32x512xf32>
    %128 = arith.mulf %124, %127 : vector<32x512xf32>
    %cst_42 = arith.constant 4.471500e-02 : f32
    %129 = vector.broadcast %cst_42 : f32 to vector<32x512xf32>
    %130 = arith.mulf %129, %128 : vector<32x512xf32>
    %131 = arith.addf %124, %130 : vector<32x512xf32>
    %cst_43 = arith.constant 0.797884583 : f32
    %132 = vector.broadcast %cst_43 : f32 to vector<32x512xf32>
    %133 = arith.mulf %132, %131 : vector<32x512xf32>
    %134 = math.tanh %133 : vector<32x512xf32>
    %cst_44 = arith.constant 1.000000e+00 : f32
    %135 = vector.broadcast %cst_44 : f32 to vector<32x512xf32>
    %136 = arith.addf %135, %134 : vector<32x512xf32>
    %137 = arith.mulf %126, %136 : vector<32x512xf32>
    %138 = arith.truncf %137 : vector<32x512xf32> to vector<32x512xbf16>
    %139 = arith.index_cast %arg2 : i32 to index
    %c0_45 = arith.constant 0 : index
    %c0_46 = arith.constant 0 : index
    %140 = vector.load %arg13[%139, %c0_45, %c0_46] : memref<2x512x128xbf16, #tpu.memory_space<vmem>>, vector<1x512x128xbf16>
    %141 = vector.shape_cast %140 : vector<1x512x128xbf16> to vector<512x128xbf16>
    %cst_47 = arith.constant dense<0.000000e+00> : vector<32x128xf32>
    %142 = tpu.matmul %138, %141, %cst_47 {dimension_numbers = #tpu.dot_dimension_numbers<[1], [0], [0], [1], [0, 0, 1, 1], [], []>} : vector<32x512xbf16>, vector<512x128xbf16>, vector<32x128xf32> -> vector<32x128xf32>
    %143 = arith.index_cast %arg2 : i32 to index
    %c0_48 = arith.constant 0 : index
    %c0_49 = arith.constant 0 : index
    %144 = vector.load %arg14[%143, %c0_48, %c0_49] : memref<2x1x128xf32, #tpu.memory_space<vmem>>, vector<1x1x128xf32>
    %145 = vector.shape_cast %144 : vector<1x1x128xf32> to vector<1x128xf32>
    %146 = vector.broadcast %145 : vector<1x128xf32> to vector<32x128xf32>
    %147 = arith.addf %142, %146 : vector<32x128xf32>
    %148 = arith.addf %147, %86 : vector<32x128xf32>
    %c0_50 = arith.constant 0 : index
    %c0_51 = arith.constant 0 : index
    %149 = vector.load %arg20[%c0_50, %c0_51] : memref<32x128xf32, #tpu.memory_space<vmem>>, vector<32x128xf32>
    tpu.vector_store %arg20[%c0_50, %c0_51], %148 {strides = array<i32>} : memref<32x128xf32, #tpu.memory_space<vmem>>, vector<32x128xf32>,
    %c1_i32 = arith.constant 1 : i32
    %150 = arith.cmpi eq, %arg2, %c1_i32 : i32
    %c1_i32_52 = arith.constant 1 : i32
    %151 = arith.cmpi slt, %arg1, %c1_i32_52 : i32
    %152 = arith.andi %150, %151 : i1
    %153 = arith.extui %152 : i1 to i32
    %c0_i32_53 = arith.constant 0 : i32
    %154 = arith.cmpi ne, %153, %c0_i32_53 : i32
    scf.if %154 {
      %c0_57 = arith.constant 0 : index
      %c0_58 = arith.constant 0 : index
      %160 = vector.load %arg21[%c0_57, %c0_58] : memref<32x128xf32, #tpu.memory_space<vmem>>, vector<32x128xf32>
      %161 = arith.truncf %160 : vector<32x128xf32> to vector<32x128xbf16>
      %c0_59 = arith.constant 0 : index
      %c0_60 = arith.constant 0 : index
      %162 = vector.load %arg15[%c0_59, %c0_60] : memref<128x128xbf16, #tpu.memory_space<vmem>>, vector<128x128xbf16>
      %cst_61 = arith.constant dense<0.000000e+00> : vector<32x128xf32>
      %163 = tpu.matmul %161, %162, %cst_61 {dimension_numbers = #tpu.dot_dimension_numbers<[1], [0], [0], [1], [0, 0, 1, 1], [], []>} : vector<32x128xbf16>, vector<128x128xbf16>, vector<32x128xf32> -> vector<32x128xf32>
      %164 = arith.truncf %148 : vector<32x128xf32> to vector<32x128xbf16>
      %c0_62 = arith.constant 0 : index
      %c0_63 = arith.constant 0 : index
      %165 = vector.load %arg16[%c0_62, %c0_63] : memref<128x128xbf16, #tpu.memory_space<vmem>>, vector<128x128xbf16>
      %cst_64 = arith.constant dense<0.000000e+00> : vector<32x128xf32>
      %166 = tpu.matmul %164, %165, %cst_64 {dimension_numbers = #tpu.dot_dimension_numbers<[1], [0], [0], [1], [0, 0, 1, 1], [], []>} : vector<32x128xbf16>, vector<128x128xbf16>, vector<32x128xf32> -> vector<32x128xf32>
      %167 = arith.addf %163, %166 : vector<32x128xf32>
      %c0_65 = arith.constant 0 : index
      %c0_66 = arith.constant 0 : index
      %168 = vector.load %arg21[%c0_65, %c0_66] : memref<32x128xf32, #tpu.memory_space<vmem>>, vector<32x128xf32>
      tpu.vector_store %arg21[%c0_65, %c0_66], %167 {strides = array<i32>} : memref<32x128xf32, #tpu.memory_space<vmem>>, vector<32x128xf32>,
    } else {
    }
    %c1_i32_54 = arith.constant 1 : i32
    %155 = arith.cmpi eq, %arg2, %c1_i32_54 : i32
    %c1_i32_55 = arith.constant 1 : i32
    %156 = arith.cmpi eq, %arg1, %c1_i32_55 : i32
    %157 = arith.andi %155, %156 : i1
    %158 = arith.extui %157 : i1 to i32
    %c0_i32_56 = arith.constant 0 : i32
    %159 = arith.cmpi ne, %158, %c0_i32_56 : i32
    scf.if %159 {
      %c0_57 = arith.constant 0 : index
      %c0_58 = arith.constant 0 : index
      %160 = vector.load %arg17[%c0_57, %c0_58] : memref<1x128xf32, #tpu.memory_space<vmem>>, vector<1x128xf32>
      %c0_59 = arith.constant 0 : index
      %c0_60 = arith.constant 0 : index
      %161 = vector.load %arg18[%c0_59, %c0_60] : memref<1x128xf32, #tpu.memory_space<vmem>>, vector<1x128xf32>
      %cst_61 = arith.constant dense<0.000000e+00> : vector<32xf32>
      %162 = vector.multi_reduction <add>, %148, %cst_61 [1] : vector<32x128xf32> to vector<32xf32>
      %163 = vector.shape_cast %162 : vector<32xf32> to vector<32x1xf32>
      %cst_62 = arith.constant 1.280000e+02 : f32
      %164 = vector.broadcast %cst_62 : f32 to vector<32x1xf32>
      %165 = arith.divf %163, %164 : vector<32x1xf32>
      %166 = vector.broadcast %165 : vector<32x1xf32> to vector<32x128xf32>
      %167 = arith.subf %148, %166 : vector<32x128xf32>
      %168 = arith.mulf %167, %167 : vector<32x128xf32>
      %cst_63 = arith.constant dense<0.000000e+00> : vector<32xf32>
      %169 = vector.multi_reduction <add>, %168, %cst_63 [1] : vector<32x128xf32> to vector<32xf32>
      %170 = vector.shape_cast %169 : vector<32xf32> to vector<32x1xf32>
      %cst_64 = arith.constant 1.280000e+02 : f32
      %171 = vector.broadcast %cst_64 : f32 to vector<32x1xf32>
      %172 = arith.divf %170, %171 : vector<32x1xf32>
      %173 = vector.broadcast %165 : vector<32x1xf32> to vector<32x128xf32>
      %174 = arith.subf %148, %173 : vector<32x128xf32>
      %175 = vector.broadcast %160 : vector<1x128xf32> to vector<32x128xf32>
      %176 = arith.mulf %175, %174 : vector<32x128xf32>
      %cst_65 = arith.constant 9.99999974E-6 : f32
      %177 = vector.broadcast %cst_65 : f32 to vector<32x1xf32>
      %178 = arith.addf %172, %177 : vector<32x1xf32>
      %179 = math.rsqrt %178 : vector<32x1xf32>
      %180 = vector.broadcast %179 : vector<32x1xf32> to vector<32x128xf32>
      %181 = arith.mulf %176, %180 : vector<32x128xf32>
      %182 = vector.broadcast %161 : vector<1x128xf32> to vector<32x128xf32>
      %183 = arith.addf %181, %182 : vector<32x128xf32>
      %184 = arith.truncf %183 : vector<32x128xf32> to vector<32x128xbf16>
      %c0_66 = arith.constant 0 : index
      %c0_67 = arith.constant 0 : index
      %185 = vector.load %arg19[%c0_66, %c0_67] : memref<32x128xbf16, #tpu.memory_space<vmem>>, vector<32x128xbf16>
      tpu.vector_store %arg19[%c0_66, %c0_67], %184 {strides = array<i32>} : memref<32x128xbf16, #tpu.memory_space<vmem>>, vector<32x128xbf16>,
    } else {
    }
    return
  }
  func.func @transform_0(%arg0: i32, %arg1: i32, %arg2: i32) -> (i32, i32) {
    %c0_i32 = arith.constant 0 : i32
    %c0_i32_0 = arith.constant 0 : i32
    return %arg0, %c0_i32 : i32, i32
  }
  func.func @transform_1(%arg0: i32, %arg1: i32, %arg2: i32) -> (i32, i32, i32) {
    %c0_i32 = arith.constant 0 : i32
    %c0_i32_0 = arith.constant 0 : i32
    %c0_i32_1 = arith.constant 0 : i32
    %c0_i32_2 = arith.constant 0 : i32
    return %c0_i32, %c0_i32_0, %c0_i32_1 : i32, i32, i32
  }
  func.func @transform_2(%arg0: i32, %arg1: i32, %arg2: i32) -> (i32, i32, i32) {
    %c0_i32 = arith.constant 0 : i32
    %c0_i32_0 = arith.constant 0 : i32
    %c0_i32_1 = arith.constant 0 : i32
    %c0_i32_2 = arith.constant 0 : i32
    return %c0_i32, %c0_i32_0, %c0_i32_1 : i32, i32, i32
  }
  func.func @transform_3(%arg0: i32, %arg1: i32, %arg2: i32) -> (i32, i32, i32) {
    %c0_i32 = arith.constant 0 : i32
    %c0_i32_0 = arith.constant 0 : i32
    %c0_i32_1 = arith.constant 0 : i32
    %c0_i32_2 = arith.constant 0 : i32
    return %c0_i32, %c0_i32_0, %c0_i32_1 : i32, i32, i32
  }
  func.func @transform_4(%arg0: i32, %arg1: i32, %arg2: i32) -> (i32, i32, i32) {
    %c0_i32 = arith.constant 0 : i32
    %c0_i32_0 = arith.constant 0 : i32
    %c0_i32_1 = arith.constant 0 : i32
    %c0_i32_2 = arith.constant 0 : i32
    return %c0_i32, %c0_i32_0, %c0_i32_1 : i32, i32, i32
  }
  func.func @transform_5(%arg0: i32, %arg1: i32, %arg2: i32) -> (i32, i32, i32) {
    %c0_i32 = arith.constant 0 : i32
    %c0_i32_0 = arith.constant 0 : i32
    %c0_i32_1 = arith.constant 0 : i32
    %c0_i32_2 = arith.constant 0 : i32
    return %c0_i32, %c0_i32_0, %c0_i32_1 : i32, i32, i32
  }
  func.func @transform_6(%arg0: i32, %arg1: i32, %arg2: i32) -> (i32, i32, i32) {
    %c0_i32 = arith.constant 0 : i32
    %c0_i32_0 = arith.constant 0 : i32
    %c0_i32_1 = arith.constant 0 : i32
    %c0_i32_2 = arith.constant 0 : i32
    return %c0_i32, %c0_i32_0, %c0_i32_1 : i32, i32, i32
  }
  func.func @transform_7(%arg0: i32, %arg1: i32, %arg2: i32) -> (i32, i32, i32) {
    %c0_i32 = arith.constant 0 : i32
    %c0_i32_0 = arith.constant 0 : i32
    %c0_i32_1 = arith.constant 0 : i32
    %c0_i32_2 = arith.constant 0 : i32
    return %c0_i32, %c0_i32_0, %c0_i32_1 : i32, i32, i32
  }
  func.func @transform_8(%arg0: i32, %arg1: i32, %arg2: i32) -> (i32, i32, i32) {
    %c0_i32 = arith.constant 0 : i32
    %c0_i32_0 = arith.constant 0 : i32
    %c0_i32_1 = arith.constant 0 : i32
    %c0_i32_2 = arith.constant 0 : i32
    return %c0_i32, %c0_i32_0, %c0_i32_1 : i32, i32, i32
  }
  func.func @transform_9(%arg0: i32, %arg1: i32, %arg2: i32) -> (i32, i32, i32) {
    %c0_i32 = arith.constant 0 : i32
    %c0_i32_0 = arith.constant 0 : i32
    %c0_i32_1 = arith.constant 0 : i32
    %c0_i32_2 = arith.constant 0 : i32
    return %c0_i32, %c0_i32_0, %c0_i32_1 : i32, i32, i32
  }
  func.func @transform_10(%arg0: i32, %arg1: i32, %arg2: i32) -> (i32, i32, i32) {
    %c0_i32 = arith.constant 0 : i32
    %c0_i32_0 = arith.constant 0 : i32
    %c0_i32_1 = arith.constant 0 : i32
    %c0_i32_2 = arith.constant 0 : i32
    return %c0_i32, %c0_i32_0, %c0_i32_1 : i32, i32, i32
  }
  func.func @transform_11(%arg0: i32, %arg1: i32, %arg2: i32) -> (i32, i32, i32) {
    %c0_i32 = arith.constant 0 : i32
    %c0_i32_0 = arith.constant 0 : i32
    %c0_i32_1 = arith.constant 0 : i32
    %c0_i32_2 = arith.constant 0 : i32
    return %c0_i32, %c0_i32_0, %c0_i32_1 : i32, i32, i32
  }
  func.func @transform_12(%arg0: i32, %arg1: i32, %arg2: i32) -> (i32, i32) {
    %c0_i32 = arith.constant 0 : i32
    %c0_i32_0 = arith.constant 0 : i32
    %c0_i32_1 = arith.constant 0 : i32
    return %c0_i32, %c0_i32_0 : i32, i32
  }
  func.func @transform_13(%arg0: i32, %arg1: i32, %arg2: i32) -> (i32, i32) {
    %c0_i32 = arith.constant 0 : i32
    %c0_i32_0 = arith.constant 0 : i32
    %c0_i32_1 = arith.constant 0 : i32
    return %c0_i32, %c0_i32_0 : i32, i32
  }
  func.func @transform_14(%arg0: i32, %arg1: i32, %arg2: i32) -> (i32, i32) {
    %c0_i32 = arith.constant 0 : i32
    %c0_i32_0 = arith.constant 0 : i32
    %c0_i32_1 = arith.constant 0 : i32
    return %c0_i32, %c0_i32_0 : i32, i32
  }
  func.func @transform_15(%arg0: i32, %arg1: i32, %arg2: i32) -> (i32, i32) {
    %c0_i32 = arith.constant 0 : i32
    %c0_i32_0 = arith.constant 0 : i32
    %c0_i32_1 = arith.constant 0 : i32
    return %c0_i32, %c0_i32_0 : i32, i32
  }
  func.func @transform_16(%arg0: i32, %arg1: i32, %arg2: i32) -> (i32, i32) {
    %c0_i32 = arith.constant 0 : i32
    %c0_i32_0 = arith.constant 0 : i32
    return %arg0, %c0_i32 : i32, i32
  }
}

</mosaic_0001>

<llo_original>
// kernel: _lambda_.3
$region0: #{_lambda_.3}
  #allocation0 [shape = 'u32[]', space=smem, size = 0x4, offset = 0x4, fixed_abs, tag = 'smem constant byte address 0x4 - core index']
  #allocation1 [shape = 'u32[144,128]{1,0:T(1,128)}', space=vmem, size = 0x12000, scoped, tag = 'internal scratch']
  %s0 = inlined_call_operand.vmem [shape: bf16[64,128], index: 0, kind: input, shape index: {}]
  %s1 = inlined_call_operand.vmem [shape: bf16[128,256], index: 1, kind: input, shape index: {}]
  %s2 = inlined_call_operand.hbm [shape: f32[64,256], index: 2, kind: output, shape index: {}]
  %s3 = sld [smem:[#allocation0]]
  $region82: #{_lambda_.3} parent=0
    _
  %s5 = ssub.s32 1, %s3
  %s6 = scalar_select 0, %s5, %s3
  $region1: #{_lambda_.3} parent=0
    #allocation2 [shape = 'u8[65536]{0}', space=vmem, size = 0x10000, scoped, tag = 'input window, operand 1']
    #allocation3 [shape = 'u8[65536]{0}', space=vmem, size = 0x10000, scoped, tag = 'output window, operand 0']
    #allocation4 [shape = 's32[2]{0}', space=sflag, size = 0x8, scoped, tag = 'scoped memory for _lambda_.3']
    %7 = vsyncpa [#allocation4], 0
    %s8 = scalar_lea.sflag [#allocation4], 1
    %9 = vsyncpa %s8, 0
    loop: start=0, step=1, limit=4
    $region2: #{_lambda_.3} parent=1 // loop_pre_header
      _
    $region3: #{_lambda_.3} parent=1 // loop_header
      %s11 = sphi 0, %s15
      %p12 = scmp.ge.s32.totalorder %s11, 4
      %s19 = sphi 0, %s19
      %s21 = sphi 0, %s19
      %s22 = sphi 0, %s21
      %s36 = sphi 0, %s22
      %s42 = sphi 0, %s44
      %s45 = sphi 0, %s42
      %s46 = sphi 0, %s45
      %s62 = sphi 0, %s46
      %s68 = sphi 0, %s70
      %s71 = sphi 0, %s68
      %s72 = sphi 0, %s71
      %s88 = sphi 0, %s72
    $region4: #{_lambda_.3} parent=1 // loop_header_branch
      %14 = sbr.rel (%p12) target = $region8
    $region5: #{_lambda_.3} parent=1 // loop_body
      %s16 = ssub.s32 %s11, 1
      %s17 = ssub.s32 %s11, 2
      %s18 = sadd.s32 %s11, 1
      %s20 = sadd.s32 %s19, 1
      %p23 = scmp.eq.s32.totalorder %s11, 1
      %p24 = scmp.ne.s32.totalorder %s19, %s21
      %p25 = scmp.eq.s32.totalorder %s11, 0
      %p26 = por %p24, %p25
      %p27 = scmp.ne.s32.totalorder %s19, %s21
      %p28 = scmp.eq.s32.totalorder %s16, 1
      %p29 = por %p27, %p28
      %p30 = scmp.ne.s32.totalorder %s21, %s22
      %p31 = scmp.eq.s32.totalorder %s16, 0
      %p32 = por %p30, %p31
      %p33 = scmp.ne.s32.totalorder %s21, %s22
      %p34 = scmp.eq.s32.totalorder %s17, 1
      %p35 = por %p33, %p34
      %p37 = scmp.ne.s32.totalorder %s22, %s36
      %p38 = scmp.eq.s32.totalorder %s17, 0
      %p39 = por %p37, %p38
      %s40 = ssub.s32 %s11, %s18
      %p41 = scmp.eq.s32.totalorder %s40, 0
      %s43 = sadd.s32 %s42, 1
      %s44 = scalar_select %p41, %s42, %s43
      %p47 = pneg %p41
      %p48 = scmp.eq.s32.totalorder %s11, 1
      %p49 = por %p47, %p48
      %p50 = scmp.ne.s32.totalorder %s42, %s45
      %p51 = scmp.eq.s32.totalorder %s11, 0
      %p52 = por %p50, %p51
      %p53 = scmp.ne.s32.totalorder %s42, %s45
      %p54 = scmp.eq.s32.totalorder %s16, 1
      %p55 = por %p53, %p54
      %p56 = scmp.ne.s32.totalorder %s45, %s46
      %p57 = scmp.eq.s32.totalorder %s16, 0
      %p58 = por %p56, %p57
      %p59 = scmp.ne.s32.totalorder %s45, %s46
      %p60 = scmp.eq.s32.totalorder %s17, 1
      %p61 = por %p59, %p60
      %p63 = scmp.ne.s32.totalorder %s46, %s62
      %p64 = scmp.eq.s32.totalorder %s17, 0
      %p65 = por %p63, %p64
      %s66 = ssub.s32 %s11, %s18
      %p67 = scmp.eq.s32.totalorder %s66, 0
      %s69 = sadd.s32 %s68, 1
      %s70 = scalar_select %p67, %s68, %s69
      %p73 = pneg %p67
      %p74 = scmp.eq.s32.totalorder %s11, 1
      %p75 = por %p73, %p74
      %p76 = scmp.ne.s32.totalorder %s68, %s71
      %p77 = scmp.eq.s32.totalorder %s11, 0
      %p78 = por %p76, %p77
      %p79 = scmp.ne.s32.totalorder %s68, %s71
      %p80 = scmp.eq.s32.totalorder %s16, 1
      %p81 = por %p79, %p80
      %p82 = scmp.ne.s32.totalorder %s71, %s72
      %p83 = scmp.eq.s32.totalorder %s16, 0
      %p84 = por %p82, %p83
      %p85 = scmp.ne.s32.totalorder %s71, %s72
      %p86 = scmp.eq.s32.totalorder %s17, 1
      %p87 = por %p85, %p86
      %p89 = scmp.ne.s32.totalorder %s72, %s88
      %p90 = scmp.eq.s32.totalorder %s17, 0
      %p91 = por %p89, %p90
      %p92 = scmp.le.s32.totalorder 1, %s11
      %p93 = scmp.lt.s32.totalorder %s11, 3
      %p94 = pnand %p92, %p93
      %p95 = pneg %p94
      // Predicated region
      $region9: #{_lambda_.3} parent=5 // pred_check
        _
      $region10: #{_lambda_.3} parent=5 // pred_check_branch
        %97 = sbr.rel (%p94) target = $region12
      $region11: #{_lambda_.3} parent=5 // pred_region
        %s98 = ssub.s32 %s11, 1
        // Predicated region
        $region13: #{_lambda_.3} parent=11 // pred_check
          %p99 = pneg %p32
        $region14: #{_lambda_.3} parent=11 // pred_check_branch
          %101 = sbr.rel (%p99) target = $region16
        $region15: #{_lambda_.3} parent=11 // pred_region
          _
        $region16: #{_lambda_.3} parent=11 // pred_fallthru
          _
      $region12: #{_lambda_.3} parent=5 // pred_fallthru
        _
      %p102 = scmp.lt.s32.totalorder %s11, 2
      // Predicated region
      $region17: #{_lambda_.3} parent=5 // pred_check
        %p103 = pneg %p102
      $region18: #{_lambda_.3} parent=5 // pred_check_branch
        %105 = sbr.rel (%p103) target = $region20
      $region19: #{_lambda_.3} parent=5 // pred_region
        // Predicated region
        $region21: #{_lambda_.3} parent=19 // pred_check
          %p106 = pneg %p52
        $region22: #{_lambda_.3} parent=19 // pred_check_branch
          %108 = sbr.rel (%p106) target = $region24
        $region23: #{_lambda_.3} parent=19 // pred_region
          %s109 = sand.u32 %s42, 1
          %s110 = sand.u32 %s42, 1
          %s111 = smul.addr %s110, 64
          %s112 = scalar_lea.vmem [#allocation2], %s111
          %s113 = smul.addr %s11, 4
          %s114 = scalar_lea.vmem %s1, %s113
          // Predicated region
          $region25: #{_lambda_.3} parent=23 // pred_check
            _
          $region26: #{_lambda_.3} parent=23 // pred_check_branch
            %116 = sbr.rel (0) target = $region28
          $region27: #{_lambda_.3} parent=23 // pred_region
            // Predicated region
            $region29: #{_lambda_.3} parent=27 // pred_check
              _
            $region30: #{_lambda_.3} parent=27 // pred_check_branch
              %118 = sbr.rel target = $region32
            $region31: #{_lambda_.3} parent=27 // pred_region
              // Predicated region
              $region44: #{_lambda_.3} parent=31 // pred_check
                _
              $region45: #{_lambda_.3} parent=31 // pred_check_branch
                %163 = sbr.rel (0) target = $region47
              $region46: #{_lambda_.3} parent=31 // pred_region
                loop: start=0, step=1, limit=1
                $region48: #{_lambda_.3} parent=46 // loop_pre_header
                  _
                $region49: #{_lambda_.3} parent=46 // loop_header
                  %s165 = sphi 0, %s169
                  %p166 = scmp.ge.s32.totalorder %s165, 1
                  %s170 = sphi %s114, %s114
                  %s171 = sphi %s112, %s112
                $region50: #{_lambda_.3} parent=46 // loop_header_branch
                  %168 = sbr.rel (%p166) target = $region54
                $region51: #{_lambda_.3} parent=46 // loop_body
                  _
                $region52: #{_lambda_.3} parent=46 // loop_footer
                  %s169 = sadd.s32 1, %s165
                $region53: #{_lambda_.3} parent=46 // loop_footer_branch
                  %164 = sbr.rel target = $region49
                $region54: #{_lambda_.3} parent=46 // loop_exit
                  _
                loop: start=0, step=1, limit=1
                $region55: #{_lambda_.3} parent=46 // loop_pre_header
                  _
                $region56: #{_lambda_.3} parent=46 // loop_header
                  %s174 = sphi 0, %s178
                  %p175 = scmp.ge.s32.totalorder %s174, 1
                  %s179 = sphi %s114, %s114
                  %s180 = sphi %s112, %s112
                $region57: #{_lambda_.3} parent=46 // loop_header_branch
                  %177 = sbr.rel (%p175) target = $region61
                $region58: #{_lambda_.3} parent=46 // loop_body
                  %v181 = vld [vmem:[%s179] sm:$0xf]
                  %182 = vst [vmem:[%s180] sm:$0xf] %v181
                  %v183 = vld [vmem:[%s179 + $0x8] sm:$0xf]
                  %184 = vst [vmem:[%s180 + $0x4] sm:$0xf] %v183
                  %v185 = vld [vmem:[%s179 + $0x10] sm:$0xf]
                  %186 = vst [vmem:[%s180 + $0x8] sm:$0xf] %v185
                  %v187 = vld [vmem:[%s179 + $0x18] sm:$0xf]
                  %188 = vst [vmem:[%s180 + $0xc] sm:$0xf] %v187
                  %v189 = vld [vmem:[%s179 + $0x20] sm:$0xf]
                  %190 = vst [vmem:[%s180 + $0x10] sm:$0xf] %v189
                  %v191 = vld [vmem:[%s179 + $0x28] sm:$0xf]
                  %192 = vst [vmem:[%s180 + $0x14] sm:$0xf] %v191
                  %v193 = vld [vmem:[%s179 + $0x30] sm:$0xf]
                  %194 = vst [vmem:[%s180 + $0x18] sm:$0xf] %v193
                  %v195 = vld [vmem:[%s179 + $0x38] sm:$0xf]
                  %196 = vst [vmem:[%s180 + $0x1c] sm:$0xf] %v195
                  %v197 = vld [vmem:[%s179 + $0x40] sm:$0xf]
                  %198 = vst [vmem:[%s180 + $0x20] sm:$0xf] %v197
                  %v199 = vld [vmem:[%s179 + $0x48] sm:$0xf]
                  %200 = vst [vmem:[%s180 + $0x24] sm:$0xf] %v199
                  %v201 = vld [vmem:[%s179 + $0x50] sm:$0xf]
                  %202 = vst [vmem:[%s180 + $0x28] sm:$0xf] %v201
                  %v203 = vld [vmem:[%s179 + $0x58] sm:$0xf]
                  %204 = vst [vmem:[%s180 + $0x2c] sm:$0xf] %v203
                  %v205 = vld [vmem:[%s179 + $0x60] sm:$0xf]
                  %206 = vst [vmem:[%s180 + $0x30] sm:$0xf] %v205
                  %v207 = vld [vmem:[%s179 + $0x68] sm:$0xf]
                  %208 = vst [vmem:[%s180 + $0x34] sm:$0xf] %v207
                  %v209 = vld [vmem:[%s179 + $0x70] sm:$0xf]
                  %210 = vst [vmem:[%s180 + $0x38] sm:$0xf] %v209
                  %v211 = vld [vmem:[%s179 + $0x78] sm:$0xf]
                  %212 = vst [vmem:[%s180 + $0x3c] sm:$0xf] %v211
                $region59: #{_lambda_.3} parent=46 // loop_footer
                  %s178 = sadd.s32 1, %s174
                $region60: #{_lambda_.3} parent=46 // loop_footer_branch
                  %173 = sbr.rel target = $region56
                $region61: #{_lambda_.3} parent=46 // loop_exit
                  _
              $region47: #{_lambda_.3} parent=31 // pred_fallthru
                _
            $region32: #{_lambda_.3} parent=27 // pred_fallthru
              _
            // Predicated region
            $region33: #{_lambda_.3} parent=27 // pred_check
              _
            $region34: #{_lambda_.3} parent=27 // pred_check_branch
              %120 = sbr.rel (0) target = $region36
            $region35: #{_lambda_.3} parent=27 // pred_region
              loop: start=0, step=1, limit=1
              $region37: #{_lambda_.3} parent=35 // loop_pre_header
                _
              $region38: #{_lambda_.3} parent=35 // loop_header
                %s123 = sphi 0, %s127
                %p124 = scmp.ge.s32.totalorder %s123, 1
                %s128 = sphi %s114, %s114
                %s129 = sphi %s112, %s112
              $region39: #{_lambda_.3} parent=35 // loop_header_branch
                %126 = sbr.rel (%p124) target = $region43
              $region40: #{_lambda_.3} parent=35 // loop_body
                %v130 = vld [vmem:[%s128] sm:$0xf]
                %131 = vst [vmem:[%s129] sm:$0xf] %v130
                %v132 = vld [vmem:[%s128 + $0x8] sm:$0xf]
                %133 = vst [vmem:[%s129 + $0x4] sm:$0xf] %v132
                %v134 = vld [vmem:[%s128 + $0x10] sm:$0xf]
                %135 = vst [vmem:[%s129 + $0x8] sm:$0xf] %v134
                %v136 = vld [vmem:[%s128 + $0x18] sm:$0xf]
                %137 = vst [vmem:[%s129 + $0xc] sm:$0xf] %v136
                %v138 = vld [vmem:[%s128 + $0x20] sm:$0xf]
                %139 = vst [vmem:[%s129 + $0x10] sm:$0xf] %v138
                %v140 = vld [vmem:[%s128 + $0x28] sm:$0xf]
                %141 = vst [vmem:[%s129 + $0x14] sm:$0xf] %v140
                %v142 = vld [vmem:[%s128 + $0x30] sm:$0xf]
                %143 = vst [vmem:[%s129 + $0x18] sm:$0xf] %v142
                %v144 = vld [vmem:[%s128 + $0x38] sm:$0xf]
                %145 = vst [vmem:[%s129 + $0x1c] sm:$0xf] %v144
                %v146 = vld [vmem:[%s128 + $0x40] sm:$0xf]
                %147 = vst [vmem:[%s129 + $0x20] sm:$0xf] %v146
                %v148 = vld [vmem:[%s128 + $0x48] sm:$0xf]
                %149 = vst [vmem:[%s129 + $0x24] sm:$0xf] %v148
                %v150 = vld [vmem:[%s128 + $0x50] sm:$0xf]
                %151 = vst [vmem:[%s129 + $0x28] sm:$0xf] %v150
                %v152 = vld [vmem:[%s128 + $0x58] sm:$0xf]
                %153 = vst [vmem:[%s129 + $0x2c] sm:$0xf] %v152
                %v154 = vld [vmem:[%s128 + $0x60] sm:$0xf]
                %155 = vst [vmem:[%s129 + $0x30] sm:$0xf] %v154
                %v156 = vld [vmem:[%s128 + $0x68] sm:$0xf]
                %157 = vst [vmem:[%s129 + $0x34] sm:$0xf] %v156
                %v158 = vld [vmem:[%s128 + $0x70] sm:$0xf]
                %159 = vst [vmem:[%s129 + $0x38] sm:$0xf] %v158
                %v160 = vld [vmem:[%s128 + $0x78] sm:$0xf]
                %161 = vst [vmem:[%s129 + $0x3c] sm:$0xf] %v160
              $region41: #{_lambda_.3} parent=35 // loop_footer
                %s127 = sadd.s32 1, %s123
              $region42: #{_lambda_.3} parent=35 // loop_footer_branch
                %122 = sbr.rel target = $region38
              $region43: #{_lambda_.3} parent=35 // loop_exit
                _
            $region36: #{_lambda_.3} parent=27 // pred_fallthru
              _
          $region28: #{_lambda_.3} parent=23 // pred_fallthru
            _
          %213 = vnop
        $region24: #{_lambda_.3} parent=19 // pred_fallthru
          _
      $region20: #{_lambda_.3} parent=5 // pred_fallthru
        _
      %p214 = scmp.le.s32.totalorder 1, %s11
      %p215 = scmp.lt.s32.totalorder %s11, 3
      %p216 = pnand %p214, %p215
      %p217 = pneg %p216
      // Predicated region
      $region62: #{_lambda_.3} parent=5 // pred_check
        _
      $region63: #{_lambda_.3} parent=5 // pred_check_branch
        %219 = sbr.rel (%p216) target = $region65
      $region64: #{_lambda_.3} parent=5 // pred_region
        %s220 = ssub.s32 %s11, 1
        %s221 = sand.u32 %s45, 1
        %s222 = sand.u32 %s45, 1
        %s223 = smul.addr %s222, 64
        %s224 = scalar_lea.vmem [#allocation2], %s223
        // Predicated region
        $region66: #{_lambda_.3} parent=64 // pred_check
          %p225 = pneg %p58
        $region67: #{_lambda_.3} parent=64 // pred_check_branch
          %227 = sbr.rel (%p225) target = $region69
        $region68: #{_lambda_.3} parent=64 // pred_region
          _
        $region69: #{_lambda_.3} parent=64 // pred_fallthru
          _
        %p228 = pneg %p32
        %p229 = pneg %p29
        %s230 = sand.u32 %s45, 1
        %s231 = sand.u32 %s45, 1
        %s232 = smul.addr %s231, 64
        %s233 = scalar_lea.vmem [#allocation2], %s232
        %p234 = pneg %p58
        %p235 = pneg %p55
        %p236 = pneg %p84
        %p237 = pneg %p81
        %s238 = sand.u32 %s71, 1
        %s239 = scalar_lea.sflag [#allocation4], %s238
        %s240 = sand.u32 %s71, 1
        %s241 = smul.addr %s240, 64
        %s242 = scalar_lea.vmem [#allocation3], %s241
        %v244 = vld [vmem:[%s0] sm:$0xf]
        %v245 = vld [vmem:[%s0 + $0x4] sm:$0xf]
        %v246 = vld [vmem:[%s0 + $0x8] sm:$0xf]
        %v247 = vld [vmem:[%s0 + $0xc] sm:$0xf]
        %v248 = vld [vmem:[%s0 + $0x10] sm:$0xf]
        %v249 = vld [vmem:[%s0 + $0x14] sm:$0xf]
        %v250 = vld [vmem:[%s0 + $0x18] sm:$0xf]
        %v251 = vld [vmem:[%s0 + $0x1c] sm:$0xf]
        %v252 = vld [vmem:[%s224] sm:$0xf]
        %v253 = vld [vmem:[%s224 + $0x4] sm:$0xf]
        %v254 = vld [vmem:[%s224 + $0x8] sm:$0xf]
        %v255 = vld [vmem:[%s224 + $0xc] sm:$0xf]
        %v256 = vld [vmem:[%s224 + $0x10] sm:$0xf]
        %v257 = vld [vmem:[%s224 + $0x14] sm:$0xf]
        %v258 = vld [vmem:[%s224 + $0x18] sm:$0xf]
        %v259 = vld [vmem:[%s224 + $0x1c] sm:$0xf]
        %v260 = vld [vmem:[%s224 + $0x20] sm:$0xf]
        %v261 = vld [vmem:[%s224 + $0x24] sm:$0xf]
        %v262 = vld [vmem:[%s224 + $0x28] sm:$0xf]
        %v263 = vld [vmem:[%s224 + $0x2c] sm:$0xf]
        %v264 = vld [vmem:[%s224 + $0x30] sm:$0xf]
        %v265 = vld [vmem:[%s224 + $0x34] sm:$0xf]
        %v266 = vld [vmem:[%s224 + $0x38] sm:$0xf]
        %v267 = vld [vmem:[%s224 + $0x3c] sm:$0xf]
        %v276 = vunpack.c.l.b16 %v244
        %v277 = vunpack.c.l.b16 %v245
        %v278 = vunpack.c.l.b16 %v246
        %v279 = vunpack.c.l.b16 %v247
        %v280 = vunpack.c.l.b16 %v248
        %v281 = vunpack.c.l.b16 %v249
        %v282 = vunpack.c.l.b16 %v250
        %v283 = vunpack.c.l.b16 %v251
        %v284 = vpack.c.b16 %v277, %v276
        %v285 = vpack.c.b16 %v279, %v278
        %v286 = vpack.c.b16 %v281, %v280
        %v287 = vpack.c.b16 %v283, %v282
        %v308 = vunpack.c.l.b16 %v252
        %v309 = vunpack.c.l.b16 %v253
        %v310 = vunpack.c.l.b16 %v254
        %v311 = vunpack.c.l.b16 %v255
        %v312 = vunpack.c.l.b16 %v256
        %v313 = vunpack.c.l.b16 %v257
        %v314 = vunpack.c.l.b16 %v258
        %v315 = vunpack.c.l.b16 %v259
        %v316 = vunpack.c.l.b16 %v260
        %v317 = vunpack.c.l.b16 %v261
        %v318 = vunpack.c.l.b16 %v262
        %v319 = vunpack.c.l.b16 %v263
        %v320 = vunpack.c.l.b16 %v264
        %v321 = vunpack.c.l.b16 %v265
        %v322 = vunpack.c.l.b16 %v266
        %v323 = vunpack.c.l.b16 %v267
        %v324 = vpack.c.b16 %v309, %v308
        %v325 = vpack.c.b16 %v311, %v310
        %v326 = vpack.c.b16 %v313, %v312
        %v327 = vpack.c.b16 %v315, %v314
        %v328 = vpack.c.b16 %v317, %v316
        %v329 = vpack.c.b16 %v319, %v318
        %v330 = vpack.c.b16 %v321, %v320
        %v331 = vpack.c.b16 %v323, %v322
        %340 = vmatprep.subr.bf16.mxu0 0
        %341 = vmatpush1.bf16.msra.mxu0 %v324
        %342 = vmatprep.subr.bf16.mxu0 0
        %343 = vmatpush1.bf16.msra.mxu0 %v325
        %344 = vmatprep.subr.bf16.mxu0 0
        %345 = vmatpush1.bf16.msra.mxu0 %v326
        %346 = vmatprep.subr.bf16.mxu0 0
        %347 = vmatpush1.bf16.msra.mxu0 %v327
        %348 = vmatprep.subr.bf16.mxu0 0
        %349 = vmatpush1.bf16.msra.mxu0 %v328
        %350 = vmatprep.subr.bf16.mxu0 0
        %351 = vmatpush1.bf16.msra.mxu0 %v329
        %352 = vmatprep.subr.bf16.mxu0 0
        %353 = vmatpush1.bf16.msra.mxu0 %v330
        %354 = vmatprep.subr.bf16.mxu0 0
        %355 = vmatpush1.bf16.msra.mxu0 %v331
        %356 = vmatprep.subr.bf16.mxu0 0
        %357 = vmatpush1.bf16.msra.mxu0 0
        %358 = vmatprep.subr.bf16.mxu0 0
        %359 = vmatpush1.bf16.msra.mxu0 0
        %360 = vmatprep.subr.bf16.mxu0 0
        %361 = vmatpush1.bf16.msra.mxu0 0
        %362 = vmatprep.subr.bf16.mxu0 0
        %363 = vmatpush1.bf16.msra.mxu0 0
        %364 = vmatprep.subr.bf16.mxu0 0
        %365 = vmatpush1.bf16.msra.mxu0 0
        %366 = vmatprep.subr.bf16.mxu0 0
        %367 = vmatpush1.bf16.msra.mxu0 0
        %368 = vmatprep.subr.bf16.mxu0 0
        %369 = vmatpush1.bf16.msra.mxu0 0
        %370 = vmatprep.subr.bf16.mxu0 0
        %371 = vmatpush1.bf16.msra.mxu0 0
        %372 = vmatprep.mubr.bf16.mxu0 0
        %373 = vmatmul.mubr.bf16.gmra.mrb[0].mxu0 %v284
        %v374 = vpop.f32.mrb[0].mxu0
        %v375 = vadd.f32 0.0, %v374
        %v376 = vpop.f32.mrb[0].mxu0
        %v377 = vpop.f32.mrb[0].mxu0
        %v378 = vadd.f32 0.0, %v377
        %v379 = vpop.f32.mrb[0].mxu0
        %380 = vmatprep.mubr.bf16.mxu0 0
        %381 = vmatmul.mubr.bf16.gmra.mrb[0].mxu0 %v285
        %v382 = vpop.f32.mrb[0].mxu0
        %v383 = vadd.f32 0.0, %v382
        %v384 = vpop.f32.mrb[0].mxu0
        %v385 = vpop.f32.mrb[0].mxu0
        %v386 = vadd.f32 0.0, %v385
        %v387 = vpop.f32.mrb[0].mxu0
        %388 = vmatprep.mubr.bf16.mxu0 0
        %389 = vmatmul.mubr.bf16.gmra.mrb[0].mxu0 %v286
        %v390 = vpop.f32.mrb[0].mxu0
        %v391 = vadd.f32 0.0, %v390
        %v392 = vpop.f32.mrb[0].mxu0
        %v393 = vpop.f32.mrb[0].mxu0
        %v394 = vadd.f32 0.0, %v393
        %v395 = vpop.f32.mrb[0].mxu0
        %396 = vmatprep.mubr.bf16.mxu0 0
        %397 = vmatmul.mubr.bf16.gmra.mrb[0].mxu0 %v287
        %v398 = vpop.f32.mrb[0].mxu0
        %v399 = vadd.f32 0.0, %v398
        %v400 = vpop.f32.mrb[0].mxu0
        %v401 = vpop.f32.mrb[0].mxu0
        %v402 = vadd.f32 0.0, %v401
        %v403 = vpop.f32.mrb[0].mxu0
        %404 = vdwg.mxu0
        %405 = vst [vmem:[%s242] sm:$0xff] %v375
        %406 = vst [vmem:[%s242 + $0x8] sm:$0xff] %v378
        %407 = vst [vmem:[%s242 + $0x10] sm:$0xff] %v383
        %408 = vst [vmem:[%s242 + $0x18] sm:$0xff] %v386
        %409 = vst [vmem:[%s242 + $0x20] sm:$0xff] %v391
        %410 = vst [vmem:[%s242 + $0x28] sm:$0xff] %v394
        %411 = vst [vmem:[%s242 + $0x30] sm:$0xff] %v399
        %412 = vst [vmem:[%s242 + $0x38] sm:$0xff] %v402
        %s413 = sand.u32 %s71, 1
        %s414 = scalar_lea.sflag [#allocation4], %s413
        %s415 = sand.u32 %s71, 1
        %s416 = smul.addr %s415, 64
        %s417 = scalar_lea.vmem [#allocation3], %s416
        // Predicated region
        $region70: #{_lambda_.3} parent=64 // pred_check
          %p418 = pneg %p81
        $region71: #{_lambda_.3} parent=64 // pred_check_branch
          %420 = sbr.rel (%p418) target = $region73
        $region72: #{_lambda_.3} parent=64 // pred_region
          %s422 = ssub.s32 1024, 1024
          %423 = vsyncadd %s414, %s422
          %s424 = smul.addr %s16, 128
          %s425 = scalar_lea.hbm %s2, %s424
          %s426 = sshll.u32 %s417, 4
          %s427 = int_to_ptr.vmem [resolvable:$true] %s426
          %432 = dma.vmem_to_hbm [thread:$0]  %s427, 1024, %s425, %s414, 128, 256, 8
        $region73: #{_lambda_.3} parent=64 // pred_fallthru
          _
      $region65: #{_lambda_.3} parent=5 // pred_fallthru
        _
      %p433 = scmp.le.s32.totalorder 2, %s11
      // Predicated region
      $region74: #{_lambda_.3} parent=5 // pred_check
        %p434 = pneg %p433
      $region75: #{_lambda_.3} parent=5 // pred_check_branch
        %436 = sbr.rel (%p434) target = $region77
      $region76: #{_lambda_.3} parent=5 // pred_region
        %s437 = ssub.s32 %s11, 2
        // Predicated region
        $region78: #{_lambda_.3} parent=76 // pred_check
          %p438 = pneg %p87
        $region79: #{_lambda_.3} parent=76 // pred_check_branch
          %440 = sbr.rel (%p438) target = $region81
        $region80: #{_lambda_.3} parent=76 // pred_region
          %s441 = sand.u32 %s72, 1
          %s442 = scalar_lea.sflag [#allocation4], %s441
          %s443 = sand.u32 %s72, 1
          %s444 = smul.addr %s443, 64
          %s445 = scalar_lea.vmem [#allocation3], %s444
          %446 = dma.done %s442, 1024
        $region81: #{_lambda_.3} parent=76 // pred_fallthru
          _
      $region77: #{_lambda_.3} parent=5 // pred_fallthru
        _
    $region6: #{_lambda_.3} parent=1 // loop_footer
      %s15 = sadd.s32 1, %s11
    $region7: #{_lambda_.3} parent=1 // loop_footer_branch
      %10 = sbr.rel target = $region3
    $region8: #{_lambda_.3} parent=1 // loop_exit
      _
    %447 = vsyncpa [#allocation4], 1
    %s448 = scalar_lea.sflag [#allocation4], 1
    %449 = vsyncpa %s448, 1

// kernel: _lambda_.2
$region0: #{_lambda_.2}
  #allocation0 [shape = 'u32[]', space=smem, size = 0x4, offset = 0x4, fixed_abs, tag = 'smem constant byte address 0x4 - core index']
  #allocation1 [shape = 'u32[144,128]{1,0:T(1,128)}', space=vmem, size = 0x12000, scoped, tag = 'internal scratch']
  #allocation2 [shape = 'f32[32,128]{1,0:T(8,128)}', space=vmem, size = 0x4000, scoped, tag = 'scratch operand']
  #allocation3 [shape = 'f32[32,128]{1,0:T(8,128)}', space=vmem, size = 0x4000, scoped, tag = 'scratch operand']
  %s0 = inlined_call_operand.vmem [shape: f32[64,128], index: 0, kind: input, shape index: {}]
  %s1 = inlined_call_operand.vmem [shape: f32[2,1,128], index: 1, kind: input, shape index: {}]
  %s2 = inlined_call_operand.vmem [shape: f32[2,1,128], index: 2, kind: input, shape index: {}]
  %s3 = inlined_call_operand.vmem [shape: bf16[2,128,384], index: 3, kind: input, shape index: {}]
  %s4 = inlined_call_operand.vmem [shape: bf16[2,128,128], index: 4, kind: input, shape index: {}]
  %s5 = inlined_call_operand.vmem [shape: f32[2,1,128], index: 5, kind: input, shape index: {}]
  %s6 = inlined_call_operand.vmem [shape: f32[2,1,128], index: 6, kind: input, shape index: {}]
  %s7 = inlined_call_operand.vmem [shape: f32[2,1,128], index: 7, kind: input, shape index: {}]
  %s8 = inlined_call_operand.vmem [shape: bf16[2,128,512], index: 8, kind: input, shape index: {}]
  %s9 = inlined_call_operand.vmem [shape: f32[2,1,512], index: 9, kind: input, shape index: {}]
  %s10 = inlined_call_operand.vmem [shape: bf16[2,512,128], index: 10, kind: input, shape index: {}]
  %s11 = inlined_call_operand.vmem [shape: f32[2,1,128], index: 11, kind: input, shape index: {}]
  %s12 = inlined_call_operand.vmem [shape: bf16[128,128], index: 12, kind: input, shape index: {}]
  %s13 = inlined_call_operand.vmem [shape: bf16[128,128], index: 13, kind: input, shape index: {}]
  %s14 = inlined_call_operand.vmem [shape: f32[1,128], index: 14, kind: input, shape index: {}]
  %s15 = inlined_call_operand.vmem [shape: f32[1,128], index: 15, kind: input, shape index: {}]
  %s16 = inlined_call_operand.vmem [shape: bf16[64,128], index: 16, kind: output, shape index: {}]
  %s17 = sld [smem:[#allocation0]]
  $region113: #{_lambda_.2} parent=0
    _
  %s19 = ssub.s32 1, %s17
  %s20 = scalar_select 0, %s19, %s17
  loop: start=0, step=1, limit=10
  $region2: #{_lambda_.2} parent=0 // loop_pre_header
    _
  $region3: #{_lambda_.2} parent=0 // loop_header
    %s22 = sphi 0, %s26
    %p23 = scmp.ge.s32.totalorder %s22, 10
    %s29 = sphi 0, %s48
    %s30 = sphi 0, %s44
    %s31 = sphi 0, %s40
    %s32 = sphi 0, %s29
    %s33 = sphi 0, %s30
    %s34 = sphi 0, %s31
    %s35 = sphi 0, %s32
    %s36 = sphi 0, %s33
    %s37 = sphi 0, %s34
    %s51 = sphi 0, %s53
    %s54 = sphi 0, %s51
    %s55 = sphi 0, %s54
    %s71 = sphi 0, %s55
    %s75 = sphi 0, %s75
    %s77 = sphi 0, %s75
    %s78 = sphi 0, %s77
    %s92 = sphi 0, %s78
    %s96 = sphi 0, %s96
    %s98 = sphi 0, %s96
    %s99 = sphi 0, %s98
    %s113 = sphi 0, %s99
    %s117 = sphi 0, %s117
    %s119 = sphi 0, %s117
    %s120 = sphi 0, %s119
    %s134 = sphi 0, %s120
    %s138 = sphi 0, %s138
    %s140 = sphi 0, %s138
    %s141 = sphi 0, %s140
    %s155 = sphi 0, %s141
    %s159 = sphi 0, %s159
    %s161 = sphi 0, %s159
    %s162 = sphi 0, %s161
    %s176 = sphi 0, %s162
    %s180 = sphi 0, %s180
    %s182 = sphi 0, %s180
    %s183 = sphi 0, %s182
    %s197 = sphi 0, %s183
    %s201 = sphi 0, %s201
    %s203 = sphi 0, %s201
    %s204 = sphi 0, %s203
    %s218 = sphi 0, %s204
    %s222 = sphi 0, %s222
    %s224 = sphi 0, %s222
    %s225 = sphi 0, %s224
    %s239 = sphi 0, %s225
    %s243 = sphi 0, %s243
    %s245 = sphi 0, %s243
    %s246 = sphi 0, %s245
    %s260 = sphi 0, %s246
    %s264 = sphi 0, %s264
    %s266 = sphi 0, %s264
    %s267 = sphi 0, %s266
    %s281 = sphi 0, %s267
    %s285 = sphi 0, %s285
    %s287 = sphi 0, %s285
    %s288 = sphi 0, %s287
    %s302 = sphi 0, %s288
    %s306 = sphi 0, %s306
    %s308 = sphi 0, %s306
    %s309 = sphi 0, %s308
    %s323 = sphi 0, %s309
    %s327 = sphi 0, %s327
    %s329 = sphi 0, %s327
    %s330 = sphi 0, %s329
    %s344 = sphi 0, %s330
    %s348 = sphi 0, %s348
    %s350 = sphi 0, %s348
    %s351 = sphi 0, %s350
    %s365 = sphi 0, %s351
    %s369 = sphi 0, %s369
    %s371 = sphi 0, %s369
    %s372 = sphi 0, %s371
    %s386 = sphi 0, %s372
    %s392 = sphi 0, %s394
    %s395 = sphi 0, %s392
    %s396 = sphi 0, %s395
    %s412 = sphi 0, %s396
  $region4: #{_lambda_.2} parent=0 // loop_header_branch
    %25 = sbr.rel (%p23) target = $region8
  $region5: #{_lambda_.2} parent=0 // loop_body
    %s27 = ssub.s32 %s22, 1
    %s28 = ssub.s32 %s22, 2
    %s38 = sadd.s32 1, %s31
    %p39 = scmp.ge.s32.totalorder %s38, 2
    %s40 = scalar_select %p39, 0, %s38
    %s41 = sadd.s32 1, %s30
    %s42 = scalar_select %p39, %s41, %s30
    %p43 = scmp.ge.s32.totalorder %s42, 2
    %s44 = scalar_select %p43, 0, %s42
    %s45 = sadd.s32 1, %s29
    %s46 = scalar_select %p43, %s45, %s29
    %p47 = scmp.ge.s32.totalorder %s46, 2
    %s48 = scalar_select %p47, 0, %s46
    %s49 = ssub.s32 %s29, %s48
    %p50 = scmp.eq.s32.totalorder %s49, 0
    %s52 = sadd.s32 %s51, 1
    %s53 = scalar_select %p50, %s51, %s52
    %p56 = pneg %p50
    %p57 = scmp.eq.s32.totalorder %s22, 7
    %p58 = por %p56, %p57
    %p59 = scmp.ne.s32.totalorder %s51, %s54
    %p60 = scmp.eq.s32.totalorder %s22, 0
    %p61 = por %p59, %p60
    %p62 = scmp.ne.s32.totalorder %s51, %s54
    %p63 = scmp.eq.s32.totalorder %s27, 7
    %p64 = por %p62, %p63
    %p65 = scmp.ne.s32.totalorder %s54, %s55
    %p66 = scmp.eq.s32.totalorder %s27, 0
    %p67 = por %p65, %p66
    %p68 = scmp.ne.s32.totalorder %s54, %s55
    %p69 = scmp.eq.s32.totalorder %s28, 7
    %p70 = por %p68, %p69
    %p72 = scmp.ne.s32.totalorder %s55, %s71
    %p73 = scmp.eq.s32.totalorder %s28, 0
    %p74 = por %p72, %p73
    %s76 = sadd.s32 %s75, 1
    %p79 = scmp.eq.s32.totalorder %s22, 7
    %p80 = scmp.ne.s32.totalorder %s75, %s77
    %p81 = scmp.eq.s32.totalorder %s22, 0
    %p82 = por %p80, %p81
    %p83 = scmp.ne.s32.totalorder %s75, %s77
    %p84 = scmp.eq.s32.totalorder %s27, 7
    %p85 = por %p83, %p84
    %p86 = scmp.ne.s32.totalorder %s77, %s78
    %p87 = scmp.eq.s32.totalorder %s27, 0
    %p88 = por %p86, %p87
    %p89 = scmp.ne.s32.totalorder %s77, %s78
    %p90 = scmp.eq.s32.totalorder %s28, 7
    %p91 = por %p89, %p90
    %p93 = scmp.ne.s32.totalorder %s78, %s92
    %p94 = scmp.eq.s32.totalorder %s28, 0
    %p95 = por %p93, %p94
    %s97 = sadd.s32 %s96, 1
    %p100 = scmp.eq.s32.totalorder %s22, 7
    %p101 = scmp.ne.s32.totalorder %s96, %s98
    %p102 = scmp.eq.s32.totalorder %s22, 0
    %p103 = por %p101, %p102
    %p104 = scmp.ne.s32.totalorder %s96, %s98
    %p105 = scmp.eq.s32.totalorder %s27, 7
    %p106 = por %p104, %p105
    %p107 = scmp.ne.s32.totalorder %s98, %s99
    %p108 = scmp.eq.s32.totalorder %s27, 0
    %p109 = por %p107, %p108
    %p110 = scmp.ne.s32.totalorder %s98, %s99
    %p111 = scmp.eq.s32.totalorder %s28, 7
    %p112 = por %p110, %p111
    %p114 = scmp.ne.s32.totalorder %s99, %s113
    %p115 = scmp.eq.s32.totalorder %s28, 0
    %p116 = por %p114, %p115
    %s118 = sadd.s32 %s117, 1
    %p121 = scmp.eq.s32.totalorder %s22, 7
    %p122 = scmp.ne.s32.totalorder %s117, %s119
    %p123 = scmp.eq.s32.totalorder %s22, 0
    %p124 = por %p122, %p123
    %p125 = scmp.ne.s32.totalorder %s117, %s119
    %p126 = scmp.eq.s32.totalorder %s27, 7
    %p127 = por %p125, %p126
    %p128 = scmp.ne.s32.totalorder %s119, %s120
    %p129 = scmp.eq.s32.totalorder %s27, 0
    %p130 = por %p128, %p129
    %p131 = scmp.ne.s32.totalorder %s119, %s120
    %p132 = scmp.eq.s32.totalorder %s28, 7
    %p133 = por %p131, %p132
    %p135 = scmp.ne.s32.totalorder %s120, %s134
    %p136 = scmp.eq.s32.totalorder %s28, 0
    %p137 = por %p135, %p136
    %s139 = sadd.s32 %s138, 1
    %p142 = scmp.eq.s32.totalorder %s22, 7
    %p143 = scmp.ne.s32.totalorder %s138, %s140
    %p144 = scmp.eq.s32.totalorder %s22, 0
    %p145 = por %p143, %p144
    %p146 = scmp.ne.s32.totalorder %s138, %s140
    %p147 = scmp.eq.s32.totalorder %s27, 7
    %p148 = por %p146, %p147
    %p149 = scmp.ne.s32.totalorder %s140, %s141
    %p150 = scmp.eq.s32.totalorder %s27, 0
    %p151 = por %p149, %p150
    %p152 = scmp.ne.s32.totalorder %s140, %s141
    %p153 = scmp.eq.s32.totalorder %s28, 7
    %p154 = por %p152, %p153
    %p156 = scmp.ne.s32.totalorder %s141, %s155
    %p157 = scmp.eq.s32.totalorder %s28, 0
    %p158 = por %p156, %p157
    %s160 = sadd.s32 %s159, 1
    %p163 = scmp.eq.s32.totalorder %s22, 7
    %p164 = scmp.ne.s32.totalorder %s159, %s161
    %p165 = scmp.eq.s32.totalorder %s22, 0
    %p166 = por %p164, %p165
    %p167 = scmp.ne.s32.totalorder %s159, %s161
    %p168 = scmp.eq.s32.totalorder %s27, 7
    %p169 = por %p167, %p168
    %p170 = scmp.ne.s32.totalorder %s161, %s162
    %p171 = scmp.eq.s32.totalorder %s27, 0
    %p172 = por %p170, %p171
    %p173 = scmp.ne.s32.totalorder %s161, %s162
    %p174 = scmp.eq.s32.totalorder %s28, 7
    %p175 = por %p173, %p174
    %p177 = scmp.ne.s32.totalorder %s162, %s176
    %p178 = scmp.eq.s32.totalorder %s28, 0
    %p179 = por %p177, %p178
    %s181 = sadd.s32 %s180, 1
    %p184 = scmp.eq.s32.totalorder %s22, 7
    %p185 = scmp.ne.s32.totalorder %s180, %s182
    %p186 = scmp.eq.s32.totalorder %s22, 0
    %p187 = por %p185, %p186
    %p188 = scmp.ne.s32.totalorder %s180, %s182
    %p189 = scmp.eq.s32.totalorder %s27, 7
    %p190 = por %p188, %p189
    %p191 = scmp.ne.s32.totalorder %s182, %s183
    %p192 = scmp.eq.s32.totalorder %s27, 0
    %p193 = por %p191, %p192
    %p194 = scmp.ne.s32.totalorder %s182, %s183
    %p195 = scmp.eq.s32.totalorder %s28, 7
    %p196 = por %p194, %p195
    %p198 = scmp.ne.s32.totalorder %s183, %s197
    %p199 = scmp.eq.s32.totalorder %s28, 0
    %p200 = por %p198, %p199
    %s202 = sadd.s32 %s201, 1
    %p205 = scmp.eq.s32.totalorder %s22, 7
    %p206 = scmp.ne.s32.totalorder %s201, %s203
    %p207 = scmp.eq.s32.totalorder %s22, 0
    %p208 = por %p206, %p207
    %p209 = scmp.ne.s32.totalorder %s201, %s203
    %p210 = scmp.eq.s32.totalorder %s27, 7
    %p211 = por %p209, %p210
    %p212 = scmp.ne.s32.totalorder %s203, %s204
    %p213 = scmp.eq.s32.totalorder %s27, 0
    %p214 = por %p212, %p213
    %p215 = scmp.ne.s32.totalorder %s203, %s204
    %p216 = scmp.eq.s32.totalorder %s28, 7
    %p217 = por %p215, %p216
    %p219 = scmp.ne.s32.totalorder %s204, %s218
    %p220 = scmp.eq.s32.totalorder %s28, 0
    %p221 = por %p219, %p220
    %s223 = sadd.s32 %s222, 1
    %p226 = scmp.eq.s32.totalorder %s22, 7
    %p227 = scmp.ne.s32.totalorder %s222, %s224
    %p228 = scmp.eq.s32.totalorder %s22, 0
    %p229 = por %p227, %p228
    %p230 = scmp.ne.s32.totalorder %s222, %s224
    %p231 = scmp.eq.s32.totalorder %s27, 7
    %p232 = por %p230, %p231
    %p233 = scmp.ne.s32.totalorder %s224, %s225
    %p234 = scmp.eq.s32.totalorder %s27, 0
    %p235 = por %p233, %p234
    %p236 = scmp.ne.s32.totalorder %s224, %s225
    %p237 = scmp.eq.s32.totalorder %s28, 7
    %p238 = por %p236, %p237
    %p240 = scmp.ne.s32.totalorder %s225, %s239
    %p241 = scmp.eq.s32.totalorder %s28, 0
    %p242 = por %p240, %p241
    %s244 = sadd.s32 %s243, 1
    %p247 = scmp.eq.s32.totalorder %s22, 7
    %p248 = scmp.ne.s32.totalorder %s243, %s245
    %p249 = scmp.eq.s32.totalorder %s22, 0
    %p250 = por %p248, %p249
    %p251 = scmp.ne.s32.totalorder %s243, %s245
    %p252 = scmp.eq.s32.totalorder %s27, 7
    %p253 = por %p251, %p252
    %p254 = scmp.ne.s32.totalorder %s245, %s246
    %p255 = scmp.eq.s32.totalorder %s27, 0
    %p256 = por %p254, %p255
    %p257 = scmp.ne.s32.totalorder %s245, %s246
    %p258 = scmp.eq.s32.totalorder %s28, 7
    %p259 = por %p257, %p258
    %p261 = scmp.ne.s32.totalorder %s246, %s260
    %p262 = scmp.eq.s32.totalorder %s28, 0
    %p263 = por %p261, %p262
    %s265 = sadd.s32 %s264, 1
    %p268 = scmp.eq.s32.totalorder %s22, 7
    %p269 = scmp.ne.s32.totalorder %s264, %s266
    %p270 = scmp.eq.s32.totalorder %s22, 0
    %p271 = por %p269, %p270
    %p272 = scmp.ne.s32.totalorder %s264, %s266
    %p273 = scmp.eq.s32.totalorder %s27, 7
    %p274 = por %p272, %p273
    %p275 = scmp.ne.s32.totalorder %s266, %s267
    %p276 = scmp.eq.s32.totalorder %s27, 0
    %p277 = por %p275, %p276
    %p278 = scmp.ne.s32.totalorder %s266, %s267
    %p279 = scmp.eq.s32.totalorder %s28, 7
    %p280 = por %p278, %p279
    %p282 = scmp.ne.s32.totalorder %s267, %s281
    %p283 = scmp.eq.s32.totalorder %s28, 0
    %p284 = por %p282, %p283
    %s286 = sadd.s32 %s285, 1
    %p289 = scmp.eq.s32.totalorder %s22, 7
    %p290 = scmp.ne.s32.totalorder %s285, %s287
    %p291 = scmp.eq.s32.totalorder %s22, 0
    %p292 = por %p290, %p291
    %p293 = scmp.ne.s32.totalorder %s285, %s287
    %p294 = scmp.eq.s32.totalorder %s27, 7
    %p295 = por %p293, %p294
    %p296 = scmp.ne.s32.totalorder %s287, %s288
    %p297 = scmp.eq.s32.totalorder %s27, 0
    %p298 = por %p296, %p297
    %p299 = scmp.ne.s32.totalorder %s287, %s288
    %p300 = scmp.eq.s32.totalorder %s28, 7
    %p301 = por %p299, %p300
    %p303 = scmp.ne.s32.totalorder %s288, %s302
    %p304 = scmp.eq.s32.totalorder %s28, 0
    %p305 = por %p303, %p304
    %s307 = sadd.s32 %s306, 1
    %p310 = scmp.eq.s32.totalorder %s22, 7
    %p311 = scmp.ne.s32.totalorder %s306, %s308
    %p312 = scmp.eq.s32.totalorder %s22, 0
    %p313 = por %p311, %p312
    %p314 = scmp.ne.s32.totalorder %s306, %s308
    %p315 = scmp.eq.s32.totalorder %s27, 7
    %p316 = por %p314, %p315
    %p317 = scmp.ne.s32.totalorder %s308, %s309
    %p318 = scmp.eq.s32.totalorder %s27, 0
    %p319 = por %p317, %p318
    %p320 = scmp.ne.s32.totalorder %s308, %s309
    %p321 = scmp.eq.s32.totalorder %s28, 7
    %p322 = por %p320, %p321
    %p324 = scmp.ne.s32.totalorder %s309, %s323
    %p325 = scmp.eq.s32.totalorder %s28, 0
    %p326 = por %p324, %p325
    %s328 = sadd.s32 %s327, 1
    %p331 = scmp.eq.s32.totalorder %s22, 7
    %p332 = scmp.ne.s32.totalorder %s327, %s329
    %p333 = scmp.eq.s32.totalorder %s22, 0
    %p334 = por %p332, %p333
    %p335 = scmp.ne.s32.totalorder %s327, %s329
    %p336 = scmp.eq.s32.totalorder %s27, 7
    %p337 = por %p335, %p336
    %p338 = scmp.ne.s32.totalorder %s329, %s330
    %p339 = scmp.eq.s32.totalorder %s27, 0
    %p340 = por %p338, %p339
    %p341 = scmp.ne.s32.totalorder %s329, %s330
    %p342 = scmp.eq.s32.totalorder %s28, 7
    %p343 = por %p341, %p342
    %p345 = scmp.ne.s32.totalorder %s330, %s344
    %p346 = scmp.eq.s32.totalorder %s28, 0
    %p347 = por %p345, %p346
    %s349 = sadd.s32 %s348, 1
    %p352 = scmp.eq.s32.totalorder %s22, 7
    %p353 = scmp.ne.s32.totalorder %s348, %s350
    %p354 = scmp.eq.s32.totalorder %s22, 0
    %p355 = por %p353, %p354
    %p356 = scmp.ne.s32.totalorder %s348, %s350
    %p357 = scmp.eq.s32.totalorder %s27, 7
    %p358 = por %p356, %p357
    %p359 = scmp.ne.s32.totalorder %s350, %s351
    %p360 = scmp.eq.s32.totalorder %s27, 0
    %p361 = por %p359, %p360
    %p362 = scmp.ne.s32.totalorder %s350, %s351
    %p363 = scmp.eq.s32.totalorder %s28, 7
    %p364 = por %p362, %p363
    %p366 = scmp.ne.s32.totalorder %s351, %s365
    %p367 = scmp.eq.s32.totalorder %s28, 0
    %p368 = por %p366, %p367
    %s370 = sadd.s32 %s369, 1
    %p373 = scmp.eq.s32.totalorder %s22, 7
    %p374 = scmp.ne.s32.totalorder %s369, %s371
    %p375 = scmp.eq.s32.totalorder %s22, 0
    %p376 = por %p374, %p375
    %p377 = scmp.ne.s32.totalorder %s369, %s371
    %p378 = scmp.eq.s32.totalorder %s27, 7
    %p379 = por %p377, %p378
    %p380 = scmp.ne.s32.totalorder %s371, %s372
    %p381 = scmp.eq.s32.totalorder %s27, 0
    %p382 = por %p380, %p381
    %p383 = scmp.ne.s32.totalorder %s371, %s372
    %p384 = scmp.eq.s32.totalorder %s28, 7
    %p385 = por %p383, %p384
    %p387 = scmp.ne.s32.totalorder %s372, %s386
    %p388 = scmp.eq.s32.totalorder %s28, 0
    %p389 = por %p387, %p388
    %s390 = ssub.s32 %s29, %s48
    %p391 = scmp.eq.s32.totalorder %s390, 0
    %s393 = sadd.s32 %s392, 1
    %s394 = scalar_select %p391, %s392, %s393
    %p397 = pneg %p391
    %p398 = scmp.eq.s32.totalorder %s22, 7
    %p399 = por %p397, %p398
    %p400 = scmp.ne.s32.totalorder %s392, %s395
    %p401 = scmp.eq.s32.totalorder %s22, 0
    %p402 = por %p400, %p401
    %p403 = scmp.ne.s32.totalorder %s392, %s395
    %p404 = scmp.eq.s32.totalorder %s27, 7
    %p405 = por %p403, %p404
    %p406 = scmp.ne.s32.totalorder %s395, %s396
    %p407 = scmp.eq.s32.totalorder %s27, 0
    %p408 = por %p406, %p407
    %p409 = scmp.ne.s32.totalorder %s395, %s396
    %p410 = scmp.eq.s32.totalorder %s28, 7
    %p411 = por %p409, %p410
    %p413 = scmp.ne.s32.totalorder %s396, %s412
    %p414 = scmp.eq.s32.totalorder %s28, 0
    %p415 = por %p413, %p414
    %p416 = scmp.le.s32.totalorder 1, %s22
    %p417 = scmp.lt.s32.totalorder %s22, 9
    %p418 = pnand %p416, %p417
    %p419 = pneg %p418
    // Predicated region
    $region9: #{_lambda_.2} parent=5 // pred_check
      _
    $region10: #{_lambda_.2} parent=5 // pred_check_branch
      %421 = sbr.rel (%p418) target = $region12
    $region11: #{_lambda_.2} parent=5 // pred_region
      %s422 = ssub.s32 %s22, 1
      // Predicated region
      $region13: #{_lambda_.2} parent=11 // pred_check
        %p423 = pneg %p88
      $region14: #{_lambda_.2} parent=11 // pred_check_branch
        %425 = sbr.rel (%p423) target = $region16
      $region15: #{_lambda_.2} parent=11 // pred_region
        _
      $region16: #{_lambda_.2} parent=11 // pred_fallthru
        _
      // Predicated region
      $region17: #{_lambda_.2} parent=11 // pred_check
        %p426 = pneg %p109
      $region18: #{_lambda_.2} parent=11 // pred_check_branch
        %428 = sbr.rel (%p426) target = $region20
      $region19: #{_lambda_.2} parent=11 // pred_region
        _
      $region20: #{_lambda_.2} parent=11 // pred_fallthru
        _
      // Predicated region
      $region21: #{_lambda_.2} parent=11 // pred_check
        %p429 = pneg %p130
      $region22: #{_lambda_.2} parent=11 // pred_check_branch
        %431 = sbr.rel (%p429) target = $region24
      $region23: #{_lambda_.2} parent=11 // pred_region
        _
      $region24: #{_lambda_.2} parent=11 // pred_fallthru
        _
      // Predicated region
      $region25: #{_lambda_.2} parent=11 // pred_check
        %p432 = pneg %p151
      $region26: #{_lambda_.2} parent=11 // pred_check_branch
        %434 = sbr.rel (%p432) target = $region28
      $region27: #{_lambda_.2} parent=11 // pred_region
        _
      $region28: #{_lambda_.2} parent=11 // pred_fallthru
        _
      // Predicated region
      $region29: #{_lambda_.2} parent=11 // pred_check
        %p435 = pneg %p172
      $region30: #{_lambda_.2} parent=11 // pred_check_branch
        %437 = sbr.rel (%p435) target = $region32
      $region31: #{_lambda_.2} parent=11 // pred_region
        _
      $region32: #{_lambda_.2} parent=11 // pred_fallthru
        _
      // Predicated region
      $region33: #{_lambda_.2} parent=11 // pred_check
        %p438 = pneg %p193
      $region34: #{_lambda_.2} parent=11 // pred_check_branch
        %440 = sbr.rel (%p438) target = $region36
      $region35: #{_lambda_.2} parent=11 // pred_region
        _
      $region36: #{_lambda_.2} parent=11 // pred_fallthru
        _
      // Predicated region
      $region37: #{_lambda_.2} parent=11 // pred_check
        %p441 = pneg %p214
      $region38: #{_lambda_.2} parent=11 // pred_check_branch
        %443 = sbr.rel (%p441) target = $region40
      $region39: #{_lambda_.2} parent=11 // pred_region
        _
      $region40: #{_lambda_.2} parent=11 // pred_fallthru
        _
      // Predicated region
      $region41: #{_lambda_.2} parent=11 // pred_check
        %p444 = pneg %p235
      $region42: #{_lambda_.2} parent=11 // pred_check_branch
        %446 = sbr.rel (%p444) target = $region44
      $region43: #{_lambda_.2} parent=11 // pred_region
        _
      $region44: #{_lambda_.2} parent=11 // pred_fallthru
        _
      // Predicated region
      $region45: #{_lambda_.2} parent=11 // pred_check
        %p447 = pneg %p256
      $region46: #{_lambda_.2} parent=11 // pred_check_branch
        %449 = sbr.rel (%p447) target = $region48
      $region47: #{_lambda_.2} parent=11 // pred_region
        _
      $region48: #{_lambda_.2} parent=11 // pred_fallthru
        _
      // Predicated region
      $region49: #{_lambda_.2} parent=11 // pred_check
        %p450 = pneg %p277
      $region50: #{_lambda_.2} parent=11 // pred_check_branch
        %452 = sbr.rel (%p450) target = $region52
      $region51: #{_lambda_.2} parent=11 // pred_region
        _
      $region52: #{_lambda_.2} parent=11 // pred_fallthru
        _
      // Predicated region
      $region53: #{_lambda_.2} parent=11 // pred_check
        %p453 = pneg %p298
      $region54: #{_lambda_.2} parent=11 // pred_check_branch
        %455 = sbr.rel (%p453) target = $region56
      $region55: #{_lambda_.2} parent=11 // pred_region
        _
      $region56: #{_lambda_.2} parent=11 // pred_fallthru
        _
      // Predicated region
      $region57: #{_lambda_.2} parent=11 // pred_check
        %p456 = pneg %p319
      $region58: #{_lambda_.2} parent=11 // pred_check_branch
        %458 = sbr.rel (%p456) target = $region60
      $region59: #{_lambda_.2} parent=11 // pred_region
        _
      $region60: #{_lambda_.2} parent=11 // pred_fallthru
        _
      // Predicated region
      $region61: #{_lambda_.2} parent=11 // pred_check
        %p459 = pneg %p340
      $region62: #{_lambda_.2} parent=11 // pred_check_branch
        %461 = sbr.rel (%p459) target = $region64
      $region63: #{_lambda_.2} parent=11 // pred_region
        _
      $region64: #{_lambda_.2} parent=11 // pred_fallthru
        _
      // Predicated region
      $region65: #{_lambda_.2} parent=11 // pred_check
        %p462 = pneg %p361
      $region66: #{_lambda_.2} parent=11 // pred_check_branch
        %464 = sbr.rel (%p462) target = $region68
      $region67: #{_lambda_.2} parent=11 // pred_region
        _
      $region68: #{_lambda_.2} parent=11 // pred_fallthru
        _
      // Predicated region
      $region69: #{_lambda_.2} parent=11 // pred_check
        %p465 = pneg %p382
      $region70: #{_lambda_.2} parent=11 // pred_check_branch
        %467 = sbr.rel (%p465) target = $region72
      $region71: #{_lambda_.2} parent=11 // pred_region
        _
      $region72: #{_lambda_.2} parent=11 // pred_fallthru
        _
    $region12: #{_lambda_.2} parent=5 // pred_fallthru
      _
    %p468 = scmp.lt.s32.totalorder %s22, 8
    // Predicated region
    $region73: #{_lambda_.2} parent=5 // pred_check
      %p469 = pneg %p468
    $region74: #{_lambda_.2} parent=5 // pred_check_branch
      %471 = sbr.rel (%p469) target = $region76
    $region75: #{_lambda_.2} parent=5 // pred_region
      // Predicated region
      $region77: #{_lambda_.2} parent=75 // pred_check
        %p472 = pneg %p61
      $region78: #{_lambda_.2} parent=75 // pred_check_branch
        %474 = sbr.rel (%p472) target = $region80
      $region79: #{_lambda_.2} parent=75 // pred_region
        %s475 = smul.u32 4, %s29
        %p476 = scmp.lt.s32.totalorder %s475, 7
        %s477 = scalar_select %p476, %s475, 7
        %s478 = smul.addr %s477, 8
        %s479 = scalar_lea.vmem %s0, %s478
        %s480 = smul.u32 4, %s29
      $region80: #{_lambda_.2} parent=75 // pred_fallthru
        _
    $region76: #{_lambda_.2} parent=5 // pred_fallthru
      _
    %p481 = scmp.le.s32.totalorder 1, %s22
    %p482 = scmp.lt.s32.totalorder %s22, 9
    %p483 = pnand %p481, %p482
    %p484 = pneg %p483
    // Predicated region
    $region81: #{_lambda_.2} parent=5 // pred_check
      _
    $region82: #{_lambda_.2} parent=5 // pred_check_branch
      %486 = sbr.rel (%p483) target = $region84
    $region83: #{_lambda_.2} parent=5 // pred_region
      %s487 = ssub.s32 %s22, 1
      %s488 = smul.u32 4, %s32
      %p489 = scmp.lt.s32.totalorder %s488, 7
      %s490 = scalar_select %p489, %s488, 7
      %s491 = smul.addr %s490, 8
      %s492 = scalar_lea.vmem %s0, %s491
      %p493 = pneg %p67
      %p494 = pneg %p64
      %p495 = pneg %p88
      %p496 = pneg %p85
      %p497 = pneg %p109
      %p498 = pneg %p106
      %p499 = pneg %p130
      %p500 = pneg %p127
      %p501 = pneg %p151
      %p502 = pneg %p148
      %p503 = pneg %p172
      %p504 = pneg %p169
      %p505 = pneg %p193
      %p506 = pneg %p190
      %p507 = pneg %p214
      %p508 = pneg %p211
      %p509 = pneg %p235
      %p510 = pneg %p232
      %p511 = pneg %p256
      %p512 = pneg %p253
      %p513 = pneg %p277
      %p514 = pneg %p274
      %p515 = pneg %p298
      %p516 = pneg %p295
      %p517 = pneg %p319
      %p518 = pneg %p316
      %p519 = pneg %p340
      %p520 = pneg %p337
      %p521 = pneg %p361
      %p522 = pneg %p358
      %p523 = pneg %p382
      %p524 = pneg %p379
      %p525 = pneg %p408
      %p526 = pneg %p405
      %s527 = smul.u32 4, %s32
      %p528 = scmp.lt.s32.totalorder %s527, 7
      %s529 = scalar_select %p528, %s527, 7
      %s530 = smul.addr %s529, 4
      %s531 = scalar_lea.vmem %s16, %s530
      %s532 = smul.u32 4, %s32
      %p533 = scmp.lt.s32.totalorder %s532, 7
      %s534 = scalar_select %p533, %s532, 7
      %s535 = smul.addr %s534, 8
      %s536 = scalar_lea.vmem %s0, %s535
      %s537 = smul.u32 4, %s32
      %s538 = smul.u32 4, %s32
      %p539 = scmp.lt.s32.totalorder %s538, 7
      %s540 = scalar_select %p539, %s538, 7
      %s541 = smul.addr %s540, 4
      %s542 = scalar_lea.vmem %s16, %s541
      %s543 = smul.u32 4, %s32
      %p545 = scmp.eq.s32.totalorder %s33, 0
      %p546 = scmp.eq.s32.totalorder %s34, 0
      %p547 = pnand %p545, %p546
      %p548 = pneg %p547
      // Predicated region
      $region85: #{_lambda_.2} parent=83 // pred_check
        _
      $region86: #{_lambda_.2} parent=83 // pred_check_branch
        %550 = sbr.rel (%p547) target = $region88
      $region87: #{_lambda_.2} parent=83 // pred_region
        %v551 = vld [vmem:[%s536] sm:$0xff]
        %v552 = vld [vmem:[%s536 + $0x8] sm:$0xff]
        %v553 = vld [vmem:[%s536 + $0x10] sm:$0xff]
        %v554 = vld [vmem:[%s536 + $0x18] sm:$0xff]
        %555 = vst [vmem:[#allocation3] sm:$0xff] %v551
        %556 = vst [vmem:[#allocation3 + $0x8] sm:$0xff] %v552
        %557 = vst [vmem:[#allocation3 + $0x10] sm:$0xff] %v553
        %558 = vst [vmem:[#allocation3 + $0x18] sm:$0xff] %v554
      $region88: #{_lambda_.2} parent=83 // pred_fallthru
        _
      // Predicated region
      $region89: #{_lambda_.2} parent=83 // pred_check
        %p559 = pneg %p546
      $region90: #{_lambda_.2} parent=83 // pred_check_branch
        %561 = sbr.rel (%p559) target = $region92
      $region91: #{_lambda_.2} parent=83 // pred_region
        %v562 = vld [vmem:[#allocation3] sm:$0xff]
        %v563 = vld [vmem:[#allocation3 + $0x8] sm:$0xff]
        %v564 = vld [vmem:[#allocation3 + $0x10] sm:$0xff]
        %v565 = vld [vmem:[#allocation3 + $0x18] sm:$0xff]
        %566 = vst [vmem:[#allocation2] sm:$0xff] %v562
        %567 = vst [vmem:[#allocation2 + $0x8] sm:$0xff] %v563
        %568 = vst [vmem:[#allocation2 + $0x10] sm:$0xff] %v564
        %569 = vst [vmem:[#allocation2 + $0x18] sm:$0xff] %v565
      $region92: #{_lambda_.2} parent=83 // pred_fallthru
        _
      %v570 = vld [vmem:[#allocation2] sm:$0xff]
      %v571 = vld [vmem:[#allocation2 + $0x8] sm:$0xff]
      %v572 = vld [vmem:[#allocation2 + $0x10] sm:$0xff]
      %v573 = vld [vmem:[#allocation2 + $0x18] sm:$0xff]
      %s574 = scalar_lea.vmem %s1, %s34
      %v575 = vld [vmem:[%s574] sm:$0x1]
      %s576 = scalar_lea.vmem %s2, %s34
      %v577 = vld [vmem:[%s576] sm:$0x1]
      %578 = vadd.xlane.f32.xlu0 %v570
      %v579 = vpop.xlane.xlu0 %578
      %580 = vadd.xlane.f32.xlu0 %v571
      %v581 = vpop.xlane.xlu0 %580
      %582 = vadd.xlane.f32.xlu0 %v572
      %v583 = vpop.xlane.xlu0 %582
      %584 = vadd.xlane.f32.xlu0 %v573
      %v585 = vpop.xlane.xlu0 %584
      %v586 = vrcp.pop 128.0
      %v587 = vmul.f32 %v579, %v586
      %v588 = vmul.f32 %v581, %v586
      %v589 = vmul.f32 %v583, %v586
      %v590 = vmul.f32 %v585, %v586
      %v591 = vsub.f32 %v570, %v587
      %v592 = vsub.f32 %v571, %v588
      %v593 = vsub.f32 %v572, %v589
      %v594 = vsub.f32 %v573, %v590
      %v595 = vmul.f32 %v591, %v591
      %v596 = vmul.f32 %v592, %v592
      %v597 = vmul.f32 %v593, %v593
      %v598 = vmul.f32 %v594, %v594
      %599 = vadd.xlane.f32.xlu0 %v595
      %v600 = vpop.xlane.xlu0 %599
      %601 = vadd.xlane.f32.xlu0 %v596
      %v602 = vpop.xlane.xlu0 %601
      %603 = vadd.xlane.f32.xlu0 %v597
      %v604 = vpop.xlane.xlu0 %603
      %605 = vadd.xlane.f32.xlu0 %v598
      %v606 = vpop.xlane.xlu0 %605
      %v607 = vmul.f32 %v600, %v586
      %v608 = vmul.f32 %v602, %v586
      %v609 = vmul.f32 %v604, %v586
      %v610 = vmul.f32 %v606, %v586
      %v612 = vlaneseq
      %v613 = vshrl.u32 %v612, 7
      %v614 = vsub.s32 0, %v613
      %v615 = vrot.slane %v575, %v614
      %v617 = vmul.f32 %v615, %v591
      %v618 = vmul.f32 %v615, %v592
      %v619 = vmul.f32 %v615, %v593
      %v620 = vmul.f32 %v615, %v594
      %v621 = vadd.f32 %v607, 1e-05
      %v622 = vadd.f32 %v608, 1e-05
      %v623 = vadd.f32 %v609, 1e-05
      %v624 = vadd.f32 %v610, 1e-05
      %v625 = vrsqrt.pop %v621
      %v626 = vrsqrt.pop %v622
      %v627 = vrsqrt.pop %v623
      %v628 = vrsqrt.pop %v624
      %v629 = vmul.f32 %v617, %v625
      %v630 = vmul.f32 %v618, %v626
      %v631 = vmul.f32 %v619, %v627
      %v632 = vmul.f32 %v620, %v628
      %v634 = vlaneseq
      %v635 = vshrl.u32 %v634, 7
      %v636 = vsub.s32 0, %v635
      %v637 = vrot.slane %v577, %v636
      %v639 = vadd.f32 %v629, %v637
      %v640 = vadd.f32 %v630, %v637
      %v641 = vadd.f32 %v631, %v637
      %v642 = vadd.f32 %v632, %v637
      %v643 = vpack.c.bf16 %v640, %v639
      %v644 = vpack.c.bf16 %v642, %v641
      %s645 = smul.u32 %s34, 48
      %s646 = smul.addr %s645, 4
      %s647 = scalar_lea.vmem %s3, %s646
      %v648 = vld [vmem:[%s647] sm:$0xff]
      %v649 = vld [vmem:[%s647 + $0x8] sm:$0xf]
      %v650 = vld [vmem:[%s647 + $0xc] sm:$0xff]
      %v651 = vld [vmem:[%s647 + $0x14] sm:$0xf]
      %v652 = vld [vmem:[%s647 + $0x18] sm:$0xff]
      %v653 = vld [vmem:[%s647 + $0x20] sm:$0xf]
      %v654 = vld [vmem:[%s647 + $0x24] sm:$0xff]
      %v655 = vld [vmem:[%s647 + $0x2c] sm:$0xf]
      %v656 = vld [vmem:[%s647 + $0x30] sm:$0xff]
      %v657 = vld [vmem:[%s647 + $0x38] sm:$0xf]
      %v658 = vld [vmem:[%s647 + $0x3c] sm:$0xff]
      %v659 = vld [vmem:[%s647 + $0x44] sm:$0xf]
      %v660 = vld [vmem:[%s647 + $0x48] sm:$0xff]
      %v661 = vld [vmem:[%s647 + $0x50] sm:$0xf]
      %v662 = vld [vmem:[%s647 + $0x54] sm:$0xff]
      %v663 = vld [vmem:[%s647 + $0x5c] sm:$0xf]
      %v664 = vld [vmem:[%s647 + $0x60] sm:$0xff]
      %v665 = vld [vmem:[%s647 + $0x68] sm:$0xf]
      %v666 = vld [vmem:[%s647 + $0x6c] sm:$0xff]
      %v667 = vld [vmem:[%s647 + $0x74] sm:$0xf]
      %v668 = vld [vmem:[%s647 + $0x78] sm:$0xff]
      %v669 = vld [vmem:[%s647 + $0x80] sm:$0xf]
      %v670 = vld [vmem:[%s647 + $0x84] sm:$0xff]
      %v671 = vld [vmem:[%s647 + $0x8c] sm:$0xf]
      %v672 = vld [vmem:[%s647 + $0x90] sm:$0xff]
      %v673 = vld [vmem:[%s647 + $0x98] sm:$0xf]
      %v674 = vld [vmem:[%s647 + $0x9c] sm:$0xff]
      %v675 = vld [vmem:[%s647 + $0xa4] sm:$0xf]
      %v676 = vld [vmem:[%s647 + $0xa8] sm:$0xff]
      %v677 = vld [vmem:[%s647 + $0xb0] sm:$0xf]
      %v678 = vld [vmem:[%s647 + $0xb4] sm:$0xff]
      %v679 = vld [vmem:[%s647 + $0xbc] sm:$0xf]
      %v712 = vunpack.c.l.b16 %v648
      %v713 = vunpack.c.h.b16 %v648
      %v714 = vunpack.c.l.b16 %v649
      %v715 = vunpack.c.l.b16 %v650
      %v716 = vunpack.c.h.b16 %v650
      %v717 = vunpack.c.l.b16 %v651
      %v718 = vunpack.c.l.b16 %v652
      %v719 = vunpack.c.h.b16 %v652
      %v720 = vunpack.c.l.b16 %v653
      %v721 = vunpack.c.l.b16 %v654
      %v722 = vunpack.c.h.b16 %v654
      %v723 = vunpack.c.l.b16 %v655
      %v724 = vunpack.c.l.b16 %v656
      %v725 = vunpack.c.h.b16 %v656
      %v726 = vunpack.c.l.b16 %v657
      %v727 = vunpack.c.l.b16 %v658
      %v728 = vunpack.c.h.b16 %v658
      %v729 = vunpack.c.l.b16 %v659
      %v730 = vunpack.c.l.b16 %v660
      %v731 = vunpack.c.h.b16 %v660
      %v732 = vunpack.c.l.b16 %v661
      %v733 = vunpack.c.l.b16 %v662
      %v734 = vunpack.c.h.b16 %v662
      %v735 = vunpack.c.l.b16 %v663
      %v736 = vunpack.c.l.b16 %v664
      %v737 = vunpack.c.h.b16 %v664
      %v738 = vunpack.c.l.b16 %v665
      %v739 = vunpack.c.l.b16 %v666
      %v740 = vunpack.c.h.b16 %v666
      %v741 = vunpack.c.l.b16 %v667
      %v742 = vunpack.c.l.b16 %v668
      %v743 = vunpack.c.h.b16 %v668
      %v744 = vunpack.c.l.b16 %v669
      %v745 = vunpack.c.l.b16 %v670
      %v746 = vunpack.c.h.b16 %v670
      %v747 = vunpack.c.l.b16 %v671
      %v748 = vunpack.c.l.b16 %v672
      %v749 = vunpack.c.h.b16 %v672
      %v750 = vunpack.c.l.b16 %v673
      %v751 = vunpack.c.l.b16 %v674
      %v752 = vunpack.c.h.b16 %v674
      %v753 = vunpack.c.l.b16 %v675
      %v754 = vunpack.c.l.b16 %v676
      %v755 = vunpack.c.h.b16 %v676
      %v756 = vunpack.c.l.b16 %v677
      %v757 = vunpack.c.l.b16 %v678
      %v758 = vunpack.c.h.b16 %v678
      %v759 = vunpack.c.l.b16 %v679
      %v760 = vpack.c.b16 %v715, %v712
      %v761 = vpack.c.b16 %v716, %v713
      %v762 = vpack.c.b16 %v717, %v714
      %v763 = vpack.c.b16 %v721, %v718
      %v764 = vpack.c.b16 %v722, %v719
      %v765 = vpack.c.b16 %v723, %v720
      %v766 = vpack.c.b16 %v727, %v724
      %v767 = vpack.c.b16 %v728, %v725
      %v768 = vpack.c.b16 %v729, %v726
      %v769 = vpack.c.b16 %v733, %v730
      %v770 = vpack.c.b16 %v734, %v731
      %v771 = vpack.c.b16 %v735, %v732
      %v772 = vpack.c.b16 %v739, %v736
      %v773 = vpack.c.b16 %v740, %v737
      %v774 = vpack.c.b16 %v741, %v738
      %v775 = vpack.c.b16 %v745, %v742
      %v776 = vpack.c.b16 %v746, %v743
      %v777 = vpack.c.b16 %v747, %v744
      %v778 = vpack.c.b16 %v751, %v748
      %v779 = vpack.c.b16 %v752, %v749
      %v780 = vpack.c.b16 %v753, %v750
      %v781 = vpack.c.b16 %v757, %v754
      %v782 = vpack.c.b16 %v758, %v755
      %v783 = vpack.c.b16 %v759, %v756
      %808 = vmatprep.subr.bf16.mxu0 %v761
      %809 = vmatpush1.bf16.msra.mxu0 %v760
      %810 = vmatprep.subr.bf16.mxu0 %v764
      %811 = vmatpush1.bf16.msra.mxu0 %v763
      %812 = vmatprep.subr.bf16.mxu0 %v767
      %813 = vmatpush1.bf16.msra.mxu0 %v766
      %814 = vmatprep.subr.bf16.mxu0 %v770
      %815 = vmatpush1.bf16.msra.mxu0 %v769
      %816 = vmatprep.subr.bf16.mxu0 %v773
      %817 = vmatpush1.bf16.msra.mxu0 %v772
      %818 = vmatprep.subr.bf16.mxu0 %v776
      %819 = vmatpush1.bf16.msra.mxu0 %v775
      %820 = vmatprep.subr.bf16.mxu0 %v779
      %821 = vmatpush1.bf16.msra.mxu0 %v778
      %822 = vmatprep.subr.bf16.mxu0 %v782
      %823 = vmatpush1.bf16.msra.mxu0 %v781
      %824 = vmatprep.subr.bf16.mxu0 0
      %825 = vmatpush1.bf16.msra.mxu0 0
      %826 = vmatprep.subr.bf16.mxu0 0
      %827 = vmatpush1.bf16.msra.mxu0 0
      %828 = vmatprep.subr.bf16.mxu0 0
      %829 = vmatpush1.bf16.msra.mxu0 0
      %830 = vmatprep.subr.bf16.mxu0 0
      %831 = vmatpush1.bf16.msra.mxu0 0
      %832 = vmatprep.subr.bf16.mxu0 0
      %833 = vmatpush1.bf16.msra.mxu0 0
      %834 = vmatprep.subr.bf16.mxu0 0
      %835 = vmatpush1.bf16.msra.mxu0 0
      %836 = vmatprep.subr.bf16.mxu0 0
      %837 = vmatpush1.bf16.msra.mxu0 0
      %838 = vmatprep.subr.bf16.mxu0 0
      %839 = vmatpush1.bf16.msra.mxu0 0
      %840 = vmatprep.mubr.bf16.mxu0 0
      %841 = vmatmul.mubr.bf16.gmra.mrb[0].mxu0 %v643
      %v842 = vpop.f32.mrb[0].mxu0
      %v843 = vadd.f32 0.0, %v842
      %v844 = vpop.f32.mrb[0].mxu0
      %v845 = vadd.f32 0.0, %v844
      %v846 = vpop.f32.mrb[0].mxu0
      %v847 = vadd.f32 0.0, %v846
      %v848 = vpop.f32.mrb[0].mxu0
      %v849 = vadd.f32 0.0, %v848
      %850 = vmatprep.mubr.bf16.mxu0 0
      %851 = vmatmul.mubr.bf16.gmra.mrb[0].mxu0 %v644
      %v852 = vpop.f32.mrb[0].mxu0
      %v853 = vadd.f32 0.0, %v852
      %v854 = vpop.f32.mrb[0].mxu0
      %v855 = vadd.f32 0.0, %v854
      %v856 = vpop.f32.mrb[0].mxu0
      %v857 = vadd.f32 0.0, %v856
      %v858 = vpop.f32.mrb[0].mxu0
      %v859 = vadd.f32 0.0, %v858
      %860 = vdwg.mxu0
      %861 = vmatprep.subr.bf16.mxu0 0
      %862 = vmatpush1.bf16.msra.mxu0 %v762
      %863 = vmatprep.subr.bf16.mxu0 0
      %864 = vmatpush1.bf16.msra.mxu0 %v765
      %865 = vmatprep.subr.bf16.mxu0 0
      %866 = vmatpush1.bf16.msra.mxu0 %v768
      %867 = vmatprep.subr.bf16.mxu0 0
      %868 = vmatpush1.bf16.msra.mxu0 %v771
      %869 = vmatprep.subr.bf16.mxu0 0
      %870 = vmatpush1.bf16.msra.mxu0 %v774
      %871 = vmatprep.subr.bf16.mxu0 0
      %872 = vmatpush1.bf16.msra.mxu0 %v777
      %873 = vmatprep.subr.bf16.mxu0 0
      %874 = vmatpush1.bf16.msra.mxu0 %v780
      %875 = vmatprep.subr.bf16.mxu0 0
      %876 = vmatpush1.bf16.msra.mxu0 %v783
      %877 = vmatprep.subr.bf16.mxu0 0
      %878 = vmatpush1.bf16.msra.mxu0 0
      %879 = vmatprep.subr.bf16.mxu0 0
      %880 = vmatpush1.bf16.msra.mxu0 0
      %881 = vmatprep.subr.bf16.mxu0 0
      %882 = vmatpush1.bf16.msra.mxu0 0
      %883 = vmatprep.subr.bf16.mxu0 0
      %884 = vmatpush1.bf16.msra.mxu0 0
      %885 = vmatprep.subr.bf16.mxu0 0
      %886 = vmatpush1.bf16.msra.mxu0 0
      %887 = vmatprep.subr.bf16.mxu0 0
      %888 = vmatpush1.bf16.msra.mxu0 0
      %889 = vmatprep.subr.bf16.mxu0 0
      %890 = vmatpush1.bf16.msra.mxu0 0
      %891 = vmatprep.subr.bf16.mxu0 0
      %892 = vmatpush1.bf16.msra.mxu0 0
      %893 = vmatprep.mubr.bf16.mxu0 0
      %894 = vmatmul.mubr.bf16.gmra.mrb[0].mxu0 %v643
      %v895 = vpop.f32.mrb[0].mxu0
      %v896 = vadd.f32 0.0, %v895
      %v897 = vpop.f32.mrb[0].mxu0
      %v898 = vpop.f32.mrb[0].mxu0
      %v899 = vadd.f32 0.0, %v898
      %v900 = vpop.f32.mrb[0].mxu0
      %901 = vmatprep.mubr.bf16.mxu0 0
      %902 = vmatmul.mubr.bf16.gmra.mrb[0].mxu0 %v644
      %v903 = vpop.f32.mrb[0].mxu0
      %v904 = vadd.f32 0.0, %v903
      %v905 = vpop.f32.mrb[0].mxu0
      %v906 = vpop.f32.mrb[0].mxu0
      %v907 = vadd.f32 0.0, %v906
      %v908 = vpop.f32.mrb[0].mxu0
      %909 = vdwg.mxu0
      %v910 = vpack.c.bf16 %v847, %v843
      %v911 = vpack.c.bf16 %v849, %v845
      %v912 = vpack.c.bf16 %v899, %v896
      %v913 = vpack.c.bf16 %v857, %v853
      %v914 = vpack.c.bf16 %v859, %v855
      %v915 = vpack.c.bf16 %v907, %v904
      %918 = vrot.lane.b32.xlu0 %v910, 96
      %v919 = vpop.permute.xlu0 %918
      %920 = vrot.lane.b32.xlu0 %v913, 96
      %v921 = vpop.permute.xlu0 %920
      %922 = vrot.lane.b32.xlu0 %v910, 64
      %v923 = vpop.permute.xlu0 %922
      %924 = vrot.lane.b32.xlu0 %v913, 64
      %v925 = vpop.permute.xlu0 %924
      %926 = vrot.lane.b32.xlu0 %v910, 32
      %v927 = vpop.permute.xlu0 %926
      %928 = vrot.lane.b32.xlu0 %v913, 32
      %v929 = vpop.permute.xlu0 %928
      %v932 = vpack.i.b16 %v919, %v910
      %v934 = vshrl.u32 %v910, 16
      %v935 = vshrl.u32 %v919, 16
      %v936 = vpack.i.b16 %v935, %v934
      %v940 = vpack.i.b16 %v927, %v923
      %v942 = vshrl.u32 %v923, 16
      %v943 = vshrl.u32 %v927, 16
      %v944 = vpack.i.b16 %v943, %v942
      %v947 = vpack.i.b16 0, 0
      %v949 = vshrl.u32 0, 16
      %v950 = vpack.i.b16 %v949, %v949
      %v954 = vpack.i.b16 %v921, %v913
      %v956 = vshrl.u32 %v913, 16
      %v957 = vshrl.u32 %v921, 16
      %v958 = vpack.i.b16 %v957, %v956
      %v962 = vpack.i.b16 %v929, %v925
      %v964 = vshrl.u32 %v925, 16
      %v965 = vshrl.u32 %v929, 16
      %v966 = vpack.i.b16 %v965, %v964
      %v968 = vcombine.high %v932, %v947
      %v970 = vunpack.c.l.s4 1983009808
      %v971 = vunpack.c.0.s8 %v970
      %v972 = vlaneseq
      %v973 = vshrl.u32 %v972, 7
      %v974 = vsub.s32 %v971, %v973
      %v975 = vrot.slane %v932, %v974
      %v977 = vunpack.c.l.s4 1983009808
      %v978 = vunpack.c.0.s8 %v977
      %v979 = vlaneseq
      %v980 = vshrl.u32 %v979, 7
      %v981 = vsub.s32 %v978, %v980
      %v982 = vrot.slane %v968, %v981
      %v983 = vcombine.high %v940, %v947
      %v985 = vunpack.c.l.s4 1983009808
      %v986 = vunpack.c.0.s8 %v985
      %v987 = vlaneseq
      %v988 = vshrl.u32 %v987, 7
      %v989 = vsub.s32 %v986, %v988
      %v990 = vrot.slane %v940, %v989
      %v992 = vunpack.c.l.s4 1983009808
      %v993 = vunpack.c.0.s8 %v992
      %v994 = vlaneseq
      %v995 = vshrl.u32 %v994, 7
      %v996 = vsub.s32 %v993, %v995
      %v997 = vrot.slane %v983, %v996
      %v998 = vcombine.low %v975, %v990
      %v999 = vcombine.high %v975, %v990
      %v1001 = vunpack.c.l.s4 1934713408
      %v1002 = vunpack.c.0.s8 %v1001
      %v1003 = vlaneseq
      %v1004 = vshrl.u32 %v1003, 7
      %v1005 = vsub.s32 %v1002, %v1004
      %v1006 = vrot.slane %v998, %v1005
      %v1008 = vunpack.c.l.s4 1934713408
      %v1009 = vunpack.c.0.s8 %v1008
      %v1010 = vlaneseq
      %v1011 = vshrl.u32 %v1010, 7
      %v1012 = vsub.s32 %v1009, %v1011
      %v1013 = vrot.slane %v999, %v1012
      %v1014 = vcombine.low %v982, %v997
      %v1015 = vcombine.high %v982, %v997
      %v1017 = vunpack.c.l.s4 1934713408
      %v1018 = vunpack.c.0.s8 %v1017
      %v1019 = vlaneseq
      %v1020 = vshrl.u32 %v1019, 7
      %v1021 = vsub.s32 %v1018, %v1020
      %v1022 = vrot.slane %v1014, %v1021
      %v1024 = vunpack.c.l.s4 1934713408
      %v1025 = vunpack.c.0.s8 %v1024
      %v1026 = vlaneseq
      %v1027 = vshrl.u32 %v1026, 7
      %v1028 = vsub.s32 %v1025, %v1027
      %v1029 = vrot.slane %v1015, %v1028
      %v1030 = vcombine.high %v1006, 0
      %v1031 = vcombine.high %v1013, 0
      %v1032 = vcombine.high %v1022, 0
      %v1033 = vcombine.high %v1029, 0
      %v1034 = vcombine.high %v936, %v950
      %v1036 = vunpack.c.l.s4 1983009808
      %v1037 = vunpack.c.0.s8 %v1036
      %v1038 = vlaneseq
      %v1039 = vshrl.u32 %v1038, 7
      %v1040 = vsub.s32 %v1037, %v1039
      %v1041 = vrot.slane %v936, %v1040
      %v1043 = vunpack.c.l.s4 1983009808
      %v1044 = vunpack.c.0.s8 %v1043
      %v1045 = vlaneseq
      %v1046 = vshrl.u32 %v1045, 7
      %v1047 = vsub.s32 %v1044, %v1046
      %v1048 = vrot.slane %v1034, %v1047
      %v1049 = vcombine.high %v944, %v950
      %v1051 = vunpack.c.l.s4 1983009808
      %v1052 = vunpack.c.0.s8 %v1051
      %v1053 = vlaneseq
      %v1054 = vshrl.u32 %v1053, 7
      %v1055 = vsub.s32 %v1052, %v1054
      %v1056 = vrot.slane %v944, %v1055
      %v1058 = vunpack.c.l.s4 1983009808
      %v1059 = vunpack.c.0.s8 %v1058
      %v1060 = vlaneseq
      %v1061 = vshrl.u32 %v1060, 7
      %v1062 = vsub.s32 %v1059, %v1061
      %v1063 = vrot.slane %v1049, %v1062
      %v1064 = vcombine.low %v1041, %v1056
      %v1065 = vcombine.high %v1041, %v1056
      %v1067 = vunpack.c.l.s4 1934713408
      %v1068 = vunpack.c.0.s8 %v1067
      %v1069 = vlaneseq
      %v1070 = vshrl.u32 %v1069, 7
      %v1071 = vsub.s32 %v1068, %v1070
      %v1072 = vrot.slane %v1064, %v1071
      %v1074 = vunpack.c.l.s4 1934713408
      %v1075 = vunpack.c.0.s8 %v1074
      %v1076 = vlaneseq
      %v1077 = vshrl.u32 %v1076, 7
      %v1078 = vsub.s32 %v1075, %v1077
      %v1079 = vrot.slane %v1065, %v1078
      %v1080 = vcombine.low %v1048, %v1063
      %v1081 = vcombine.high %v1048, %v1063
      %v1083 = vunpack.c.l.s4 1934713408
      %v1084 = vunpack.c.0.s8 %v1083
      %v1085 = vlaneseq
      %v1086 = vshrl.u32 %v1085, 7
      %v1087 = vsub.s32 %v1084, %v1086
      %v1088 = vrot.slane %v1080, %v1087
      %v1090 = vunpack.c.l.s4 1934713408
      %v1091 = vunpack.c.0.s8 %v1090
      %v1092 = vlaneseq
      %v1093 = vshrl.u32 %v1092, 7
      %v1094 = vsub.s32 %v1091, %v1093
      %v1095 = vrot.slane %v1081, %v1094
      %v1096 = vcombine.high %v1072, 0
      %v1097 = vcombine.high %v1079, 0
      %v1098 = vcombine.high %v1088, 0
      %v1099 = vcombine.high %v1095, 0
      %v1100 = vcombine.high %v954, %v947
      %v1102 = vunpack.c.l.s4 1983009808
      %v1103 = vunpack.c.0.s8 %v1102
      %v1104 = vlaneseq
      %v1105 = vshrl.u32 %v1104, 7
      %v1106 = vsub.s32 %v1103, %v1105
      %v1107 = vrot.slane %v954, %v1106
      %v1109 = vunpack.c.l.s4 1983009808
      %v1110 = vunpack.c.0.s8 %v1109
      %v1111 = vlaneseq
      %v1112 = vshrl.u32 %v1111, 7
      %v1113 = vsub.s32 %v1110, %v1112
      %v1114 = vrot.slane %v1100, %v1113
      %v1115 = vcombine.high %v962, %v947
      %v1117 = vunpack.c.l.s4 1983009808
      %v1118 = vunpack.c.0.s8 %v1117
      %v1119 = vlaneseq
      %v1120 = vshrl.u32 %v1119, 7
      %v1121 = vsub.s32 %v1118, %v1120
      %v1122 = vrot.slane %v962, %v1121
      %v1124 = vunpack.c.l.s4 1983009808
      %v1125 = vunpack.c.0.s8 %v1124
      %v1126 = vlaneseq
      %v1127 = vshrl.u32 %v1126, 7
      %v1128 = vsub.s32 %v1125, %v1127
      %v1129 = vrot.slane %v1115, %v1128
      %v1130 = vcombine.low %v1107, %v1122
      %v1131 = vcombine.high %v1107, %v1122
      %v1133 = vunpack.c.l.s4 1934713408
      %v1134 = vunpack.c.0.s8 %v1133
      %v1135 = vlaneseq
      %v1136 = vshrl.u32 %v1135, 7
      %v1137 = vsub.s32 %v1134, %v1136
      %v1138 = vrot.slane %v1130, %v1137
      %v1140 = vunpack.c.l.s4 1934713408
      %v1141 = vunpack.c.0.s8 %v1140
      %v1142 = vlaneseq
      %v1143 = vshrl.u32 %v1142, 7
      %v1144 = vsub.s32 %v1141, %v1143
      %v1145 = vrot.slane %v1131, %v1144
      %v1146 = vcombine.low %v1114, %v1129
      %v1147 = vcombine.high %v1114, %v1129
      %v1149 = vunpack.c.l.s4 1934713408
      %v1150 = vunpack.c.0.s8 %v1149
      %v1151 = vlaneseq
      %v1152 = vshrl.u32 %v1151, 7
      %v1153 = vsub.s32 %v1150, %v1152
      %v1154 = vrot.slane %v1146, %v1153
      %v1156 = vunpack.c.l.s4 1934713408
      %v1157 = vunpack.c.0.s8 %v1156
      %v1158 = vlaneseq
      %v1159 = vshrl.u32 %v1158, 7
      %v1160 = vsub.s32 %v1157, %v1159
      %v1161 = vrot.slane %v1147, %v1160
      %v1162 = vcombine.high %v1138, 0
      %v1163 = vcombine.high %v1145, 0
      %v1164 = vcombine.high %v1154, 0
      %v1165 = vcombine.high %v1161, 0
      %v1166 = vcombine.high %v958, %v950
      %v1168 = vunpack.c.l.s4 1983009808
      %v1169 = vunpack.c.0.s8 %v1168
      %v1170 = vlaneseq
      %v1171 = vshrl.u32 %v1170, 7
      %v1172 = vsub.s32 %v1169, %v1171
      %v1173 = vrot.slane %v958, %v1172
      %v1175 = vunpack.c.l.s4 1983009808
      %v1176 = vunpack.c.0.s8 %v1175
      %v1177 = vlaneseq
      %v1178 = vshrl.u32 %v1177, 7
      %v1179 = vsub.s32 %v1176, %v1178
      %v1180 = vrot.slane %v1166, %v1179
      %v1181 = vcombine.high %v966, %v950
      %v1183 = vunpack.c.l.s4 1983009808
      %v1184 = vunpack.c.0.s8 %v1183
      %v1185 = vlaneseq
      %v1186 = vshrl.u32 %v1185, 7
      %v1187 = vsub.s32 %v1184, %v1186
      %v1188 = vrot.slane %v966, %v1187
      %v1190 = vunpack.c.l.s4 1983009808
      %v1191 = vunpack.c.0.s8 %v1190
      %v1192 = vlaneseq
      %v1193 = vshrl.u32 %v1192, 7
      %v1194 = vsub.s32 %v1191, %v1193
      %v1195 = vrot.slane %v1181, %v1194
      %v1196 = vcombine.low %v1173, %v1188
      %v1197 = vcombine.high %v1173, %v1188
      %v1199 = vunpack.c.l.s4 1934713408
      %v1200 = vunpack.c.0.s8 %v1199
      %v1201 = vlaneseq
      %v1202 = vshrl.u32 %v1201, 7
      %v1203 = vsub.s32 %v1200, %v1202
      %v1204 = vrot.slane %v1196, %v1203
      %v1206 = vunpack.c.l.s4 1934713408
      %v1207 = vunpack.c.0.s8 %v1206
      %v1208 = vlaneseq
      %v1209 = vshrl.u32 %v1208, 7
      %v1210 = vsub.s32 %v1207, %v1209
      %v1211 = vrot.slane %v1197, %v1210
      %v1212 = vcombine.low %v1180, %v1195
      %v1213 = vcombine.high %v1180, %v1195
      %v1215 = vunpack.c.l.s4 1934713408
      %v1216 = vunpack.c.0.s8 %v1215
      %v1217 = vlaneseq
      %v1218 = vshrl.u32 %v1217, 7
      %v1219 = vsub.s32 %v1216, %v1218
      %v1220 = vrot.slane %v1212, %v1219
      %v1222 = vunpack.c.l.s4 1934713408
      %v1223 = vunpack.c.0.s8 %v1222
      %v1224 = vlaneseq
      %v1225 = vshrl.u32 %v1224, 7
      %v1226 = vsub.s32 %v1223, %v1225
      %v1227 = vrot.slane %v1213, %v1226
      %v1228 = vcombine.high %v1204, 0
      %v1229 = vcombine.high %v1211, 0
      %v1230 = vcombine.high %v1220, 0
      %v1231 = vcombine.high %v1227, 0
      %v1232 = vcombine.low %v1006, %v1013
      %v1234 = vunpack.c.l.s4 1983009808
      %v1235 = vunpack.c.0.s8 %v1234
      %v1236 = vlaneseq
      %v1237 = vshrl.u32 %v1236, 7
      %v1238 = vsub.s32 %v1235, %v1237
      %v1239 = vrot.slane %v1232, %v1238
      %v1240 = vcombine.low %v1030, %v1031
      %v1242 = vunpack.c.l.s4 1983009808
      %v1243 = vunpack.c.0.s8 %v1242
      %v1244 = vlaneseq
      %v1245 = vshrl.u32 %v1244, 7
      %v1246 = vsub.s32 %v1243, %v1245
      %v1247 = vrot.slane %v1240, %v1246
      %v1248 = vcombine.low %v1022, %v1029
      %v1250 = vunpack.c.l.s4 1983009808
      %v1251 = vunpack.c.0.s8 %v1250
      %v1252 = vlaneseq
      %v1253 = vshrl.u32 %v1252, 7
      %v1254 = vsub.s32 %v1251, %v1253
      %v1255 = vrot.slane %v1248, %v1254
      %v1256 = vcombine.low %v1032, %v1033
      %v1258 = vunpack.c.l.s4 1983009808
      %v1259 = vunpack.c.0.s8 %v1258
      %v1260 = vlaneseq
      %v1261 = vshrl.u32 %v1260, 7
      %v1262 = vsub.s32 %v1259, %v1261
      %v1263 = vrot.slane %v1256, %v1262
      %v1264 = vcombine.low %v1239, %v1247
      %v1266 = vunpack.c.l.s4 1934713408
      %v1267 = vunpack.c.0.s8 %v1266
      %v1268 = vlaneseq
      %v1269 = vshrl.u32 %v1268, 7
      %v1270 = vsub.s32 %v1267, %v1269
      %v1271 = vrot.slane %v1264, %v1270
      %v1272 = vcombine.low %v1255, %v1263
      %v1274 = vunpack.c.l.s4 1934713408
      %v1275 = vunpack.c.0.s8 %v1274
      %v1276 = vlaneseq
      %v1277 = vshrl.u32 %v1276, 7
      %v1278 = vsub.s32 %v1275, %v1277
      %v1279 = vrot.slane %v1272, %v1278
      %v1280 = vcombine.low %v1271, %v1279
      %v1281 = vcombine.high %v1271, %v1279
      %v1282 = vcombine.low %v1072, %v1079
      %v1284 = vunpack.c.l.s4 1983009808
      %v1285 = vunpack.c.0.s8 %v1284
      %v1286 = vlaneseq
      %v1287 = vshrl.u32 %v1286, 7
      %v1288 = vsub.s32 %v1285, %v1287
      %v1289 = vrot.slane %v1282, %v1288
      %v1290 = vcombine.low %v1096, %v1097
      %v1292 = vunpack.c.l.s4 1983009808
      %v1293 = vunpack.c.0.s8 %v1292
      %v1294 = vlaneseq
      %v1295 = vshrl.u32 %v1294, 7
      %v1296 = vsub.s32 %v1293, %v1295
      %v1297 = vrot.slane %v1290, %v1296
      %v1298 = vcombine.low %v1088, %v1095
      %v1300 = vunpack.c.l.s4 1983009808
      %v1301 = vunpack.c.0.s8 %v1300
      %v1302 = vlaneseq
      %v1303 = vshrl.u32 %v1302, 7
      %v1304 = vsub.s32 %v1301, %v1303
      %v1305 = vrot.slane %v1298, %v1304
      %v1306 = vcombine.low %v1098, %v1099
      %v1308 = vunpack.c.l.s4 1983009808
      %v1309 = vunpack.c.0.s8 %v1308
      %v1310 = vlaneseq
      %v1311 = vshrl.u32 %v1310, 7
      %v1312 = vsub.s32 %v1309, %v1311
      %v1313 = vrot.slane %v1306, %v1312
      %v1314 = vcombine.low %v1289, %v1297
      %v1316 = vunpack.c.l.s4 1934713408
      %v1317 = vunpack.c.0.s8 %v1316
      %v1318 = vlaneseq
      %v1319 = vshrl.u32 %v1318, 7
      %v1320 = vsub.s32 %v1317, %v1319
      %v1321 = vrot.slane %v1314, %v1320
      %v1322 = vcombine.low %v1305, %v1313
      %v1324 = vunpack.c.l.s4 1934713408
      %v1325 = vunpack.c.0.s8 %v1324
      %v1326 = vlaneseq
      %v1327 = vshrl.u32 %v1326, 7
      %v1328 = vsub.s32 %v1325, %v1327
      %v1329 = vrot.slane %v1322, %v1328
      %v1330 = vcombine.low %v1321, %v1329
      %v1331 = vcombine.high %v1321, %v1329
      %v1332 = vcombine.low %v1138, %v1145
      %v1334 = vunpack.c.l.s4 1983009808
      %v1335 = vunpack.c.0.s8 %v1334
      %v1336 = vlaneseq
      %v1337 = vshrl.u32 %v1336, 7
      %v1338 = vsub.s32 %v1335, %v1337
      %v1339 = vrot.slane %v1332, %v1338
      %v1340 = vcombine.low %v1162, %v1163
      %v1342 = vunpack.c.l.s4 1983009808
      %v1343 = vunpack.c.0.s8 %v1342
      %v1344 = vlaneseq
      %v1345 = vshrl.u32 %v1344, 7
      %v1346 = vsub.s32 %v1343, %v1345
      %v1347 = vrot.slane %v1340, %v1346
      %v1348 = vcombine.low %v1154, %v1161
      %v1350 = vunpack.c.l.s4 1983009808
      %v1351 = vunpack.c.0.s8 %v1350
      %v1352 = vlaneseq
      %v1353 = vshrl.u32 %v1352, 7
      %v1354 = vsub.s32 %v1351, %v1353
      %v1355 = vrot.slane %v1348, %v1354
      %v1356 = vcombine.low %v1164, %v1165
      %v1358 = vunpack.c.l.s4 1983009808
      %v1359 = vunpack.c.0.s8 %v1358
      %v1360 = vlaneseq
      %v1361 = vshrl.u32 %v1360, 7
      %v1362 = vsub.s32 %v1359, %v1361
      %v1363 = vrot.slane %v1356, %v1362
      %v1364 = vcombine.low %v1339, %v1347
      %v1366 = vunpack.c.l.s4 1934713408
      %v1367 = vunpack.c.0.s8 %v1366
      %v1368 = vlaneseq
      %v1369 = vshrl.u32 %v1368, 7
      %v1370 = vsub.s32 %v1367, %v1369
      %v1371 = vrot.slane %v1364, %v1370
      %v1372 = vcombine.low %v1355, %v1363
      %v1374 = vunpack.c.l.s4 1934713408
      %v1375 = vunpack.c.0.s8 %v1374
      %v1376 = vlaneseq
      %v1377 = vshrl.u32 %v1376, 7
      %v1378 = vsub.s32 %v1375, %v1377
      %v1379 = vrot.slane %v1372, %v1378
      %v1380 = vcombine.low %v1371, %v1379
      %v1381 = vcombine.high %v1371, %v1379
      %v1382 = vcombine.low %v1204, %v1211
      %v1384 = vunpack.c.l.s4 1983009808
      %v1385 = vunpack.c.0.s8 %v1384
      %v1386 = vlaneseq
      %v1387 = vshrl.u32 %v1386, 7
      %v1388 = vsub.s32 %v1385, %v1387
      %v1389 = vrot.slane %v1382, %v1388
      %v1390 = vcombine.low %v1228, %v1229
      %v1392 = vunpack.c.l.s4 1983009808
      %v1393 = vunpack.c.0.s8 %v1392
      %v1394 = vlaneseq
      %v1395 = vshrl.u32 %v1394, 7
      %v1396 = vsub.s32 %v1393, %v1395
      %v1397 = vrot.slane %v1390, %v1396
      %v1398 = vcombine.low %v1220, %v1227
      %v1400 = vunpack.c.l.s4 1983009808
      %v1401 = vunpack.c.0.s8 %v1400
      %v1402 = vlaneseq
      %v1403 = vshrl.u32 %v1402, 7
      %v1404 = vsub.s32 %v1401, %v1403
      %v1405 = vrot.slane %v1398, %v1404
      %v1406 = vcombine.low %v1230, %v1231
      %v1408 = vunpack.c.l.s4 1983009808
      %v1409 = vunpack.c.0.s8 %v1408
      %v1410 = vlaneseq
      %v1411 = vshrl.u32 %v1410, 7
      %v1412 = vsub.s32 %v1409, %v1411
      %v1413 = vrot.slane %v1406, %v1412
      %v1414 = vcombine.low %v1389, %v1397
      %v1416 = vunpack.c.l.s4 1934713408
      %v1417 = vunpack.c.0.s8 %v1416
      %v1418 = vlaneseq
      %v1419 = vshrl.u32 %v1418, 7
      %v1420 = vsub.s32 %v1417, %v1419
      %v1421 = vrot.slane %v1414, %v1420
      %v1422 = vcombine.low %v1405, %v1413
      %v1424 = vunpack.c.l.s4 1934713408
      %v1425 = vunpack.c.0.s8 %v1424
      %v1426 = vlaneseq
      %v1427 = vshrl.u32 %v1426, 7
      %v1428 = vsub.s32 %v1425, %v1427
      %v1429 = vrot.slane %v1422, %v1428
      %v1430 = vcombine.low %v1421, %v1429
      %v1431 = vcombine.high %v1421, %v1429
      %v1434 = vpack.i.b16 %v1330, %v1280
      %v1435 = vshrl.u32 %v1280, 16
      %v1436 = vshrl.u32 %v1330, 16
      %v1437 = vpack.i.b16 %v1436, %v1435
      %v1440 = vpack.i.b16 %v1331, %v1281
      %v1441 = vshrl.u32 %v1281, 16
      %v1442 = vshrl.u32 %v1331, 16
      %v1443 = vpack.i.b16 %v1442, %v1441
      %v1446 = vpack.i.b16 %v1430, %v1380
      %v1447 = vshrl.u32 %v1380, 16
      %v1448 = vshrl.u32 %v1430, 16
      %v1449 = vpack.i.b16 %v1448, %v1447
      %v1452 = vpack.i.b16 %v1431, %v1381
      %v1453 = vshrl.u32 %v1381, 16
      %v1454 = vshrl.u32 %v1431, 16
      %v1455 = vpack.i.b16 %v1454, %v1453
      %1458 = vrot.lane.b32.xlu0 %v911, 96
      %v1459 = vpop.permute.xlu0 %1458
      %1460 = vrot.lane.b32.xlu0 %v914, 96
      %v1461 = vpop.permute.xlu0 %1460
      %1462 = vrot.lane.b32.xlu0 %v911, 64
      %v1463 = vpop.permute.xlu0 %1462
      %1464 = vrot.lane.b32.xlu0 %v914, 64
      %v1465 = vpop.permute.xlu0 %1464
      %1466 = vrot.lane.b32.xlu0 %v911, 32
      %v1467 = vpop.permute.xlu0 %1466
      %1468 = vrot.lane.b32.xlu0 %v914, 32
      %v1469 = vpop.permute.xlu0 %1468
      %v1472 = vpack.i.b16 %v1459, %v911
      %v1474 = vshrl.u32 %v911, 16
      %v1475 = vshrl.u32 %v1459, 16
      %v1476 = vpack.i.b16 %v1475, %v1474
      %v1480 = vpack.i.b16 %v1467, %v1463
      %v1482 = vshrl.u32 %v1463, 16
      %v1483 = vshrl.u32 %v1467, 16
      %v1484 = vpack.i.b16 %v1483, %v1482
      %v1488 = vpack.i.b16 %v1461, %v914
      %v1490 = vshrl.u32 %v914, 16
      %v1491 = vshrl.u32 %v1461, 16
      %v1492 = vpack.i.b16 %v1491, %v1490
      %v1496 = vpack.i.b16 %v1469, %v1465
      %v1498 = vshrl.u32 %v1465, 16
      %v1499 = vshrl.u32 %v1469, 16
      %v1500 = vpack.i.b16 %v1499, %v1498
      %v1502 = vcombine.high %v1472, %v947
      %v1504 = vunpack.c.l.s4 1983009808
      %v1505 = vunpack.c.0.s8 %v1504
      %v1506 = vlaneseq
      %v1507 = vshrl.u32 %v1506, 7
      %v1508 = vsub.s32 %v1505, %v1507
      %v1509 = vrot.slane %v1472, %v1508
      %v1511 = vunpack.c.l.s4 1983009808
      %v1512 = vunpack.c.0.s8 %v1511
      %v1513 = vlaneseq
      %v1514 = vshrl.u32 %v1513, 7
      %v1515 = vsub.s32 %v1512, %v1514
      %v1516 = vrot.slane %v1502, %v1515
      %v1517 = vcombine.high %v1480, %v947
      %v1519 = vunpack.c.l.s4 1983009808
      %v1520 = vunpack.c.0.s8 %v1519
      %v1521 = vlaneseq
      %v1522 = vshrl.u32 %v1521, 7
      %v1523 = vsub.s32 %v1520, %v1522
      %v1524 = vrot.slane %v1480, %v1523
      %v1526 = vunpack.c.l.s4 1983009808
      %v1527 = vunpack.c.0.s8 %v1526
      %v1528 = vlaneseq
      %v1529 = vshrl.u32 %v1528, 7
      %v1530 = vsub.s32 %v1527, %v1529
      %v1531 = vrot.slane %v1517, %v1530
      %v1532 = vcombine.low %v1509, %v1524
      %v1533 = vcombine.high %v1509, %v1524
      %v1535 = vunpack.c.l.s4 1934713408
      %v1536 = vunpack.c.0.s8 %v1535
      %v1537 = vlaneseq
      %v1538 = vshrl.u32 %v1537, 7
      %v1539 = vsub.s32 %v1536, %v1538
      %v1540 = vrot.slane %v1532, %v1539
      %v1542 = vunpack.c.l.s4 1934713408
      %v1543 = vunpack.c.0.s8 %v1542
      %v1544 = vlaneseq
      %v1545 = vshrl.u32 %v1544, 7
      %v1546 = vsub.s32 %v1543, %v1545
      %v1547 = vrot.slane %v1533, %v1546
      %v1548 = vcombine.low %v1516, %v1531
      %v1549 = vcombine.high %v1516, %v1531
      %v1551 = vunpack.c.l.s4 1934713408
      %v1552 = vunpack.c.0.s8 %v1551
      %v1553 = vlaneseq
      %v1554 = vshrl.u32 %v1553, 7
      %v1555 = vsub.s32 %v1552, %v1554
      %v1556 = vrot.slane %v1548, %v1555
      %v1558 = vunpack.c.l.s4 1934713408
      %v1559 = vunpack.c.0.s8 %v1558
      %v1560 = vlaneseq
      %v1561 = vshrl.u32 %v1560, 7
      %v1562 = vsub.s32 %v1559, %v1561
      %v1563 = vrot.slane %v1549, %v1562
      %v1564 = vcombine.high %v1540, 0
      %v1565 = vcombine.high %v1547, 0
      %v1566 = vcombine.high %v1556, 0
      %v1567 = vcombine.high %v1563, 0
      %v1568 = vcombine.high %v1476, %v950
      %v1570 = vunpack.c.l.s4 1983009808
      %v1571 = vunpack.c.0.s8 %v1570
      %v1572 = vlaneseq
      %v1573 = vshrl.u32 %v1572, 7
      %v1574 = vsub.s32 %v1571, %v1573
      %v1575 = vrot.slane %v1476, %v1574
      %v1577 = vunpack.c.l.s4 1983009808
      %v1578 = vunpack.c.0.s8 %v1577
      %v1579 = vlaneseq
      %v1580 = vshrl.u32 %v1579, 7
      %v1581 = vsub.s32 %v1578, %v1580
      %v1582 = vrot.slane %v1568, %v1581
      %v1583 = vcombine.high %v1484, %v950
      %v1585 = vunpack.c.l.s4 1983009808
      %v1586 = vunpack.c.0.s8 %v1585
      %v1587 = vlaneseq
      %v1588 = vshrl.u32 %v1587, 7
      %v1589 = vsub.s32 %v1586, %v1588
      %v1590 = vrot.slane %v1484, %v1589
      %v1592 = vunpack.c.l.s4 1983009808
      %v1593 = vunpack.c.0.s8 %v1592
      %v1594 = vlaneseq
      %v1595 = vshrl.u32 %v1594, 7
      %v1596 = vsub.s32 %v1593, %v1595
      %v1597 = vrot.slane %v1583, %v1596
      %v1598 = vcombine.low %v1575, %v1590
      %v1599 = vcombine.high %v1575, %v1590
      %v1601 = vunpack.c.l.s4 1934713408
      %v1602 = vunpack.c.0.s8 %v1601
      %v1603 = vlaneseq
      %v1604 = vshrl.u32 %v1603, 7
      %v1605 = vsub.s32 %v1602, %v1604
      %v1606 = vrot.slane %v1598, %v1605
      %v1608 = vunpack.c.l.s4 1934713408
      %v1609 = vunpack.c.0.s8 %v1608
      %v1610 = vlaneseq
      %v1611 = vshrl.u32 %v1610, 7
      %v1612 = vsub.s32 %v1609, %v1611
      %v1613 = vrot.slane %v1599, %v1612
      %v1614 = vcombine.low %v1582, %v1597
      %v1615 = vcombine.high %v1582, %v1597
      %v1617 = vunpack.c.l.s4 1934713408
      %v1618 = vunpack.c.0.s8 %v1617
      %v1619 = vlaneseq
      %v1620 = vshrl.u32 %v1619, 7
      %v1621 = vsub.s32 %v1618, %v1620
      %v1622 = vrot.slane %v1614, %v1621
      %v1624 = vunpack.c.l.s4 1934713408
      %v1625 = vunpack.c.0.s8 %v1624
      %v1626 = vlaneseq
      %v1627 = vshrl.u32 %v1626, 7
      %v1628 = vsub.s32 %v1625, %v1627
      %v1629 = vrot.slane %v1615, %v1628
      %v1630 = vcombine.high %v1606, 0
      %v1631 = vcombine.high %v1613, 0
      %v1632 = vcombine.high %v1622, 0
      %v1633 = vcombine.high %v1629, 0
      %v1634 = vcombine.high %v1488, %v947
      %v1636 = vunpack.c.l.s4 1983009808
      %v1637 = vunpack.c.0.s8 %v1636
      %v1638 = vlaneseq
      %v1639 = vshrl.u32 %v1638, 7
      %v1640 = vsub.s32 %v1637, %v1639
      %v1641 = vrot.slane %v1488, %v1640
      %v1643 = vunpack.c.l.s4 1983009808
      %v1644 = vunpack.c.0.s8 %v1643
      %v1645 = vlaneseq
      %v1646 = vshrl.u32 %v1645, 7
      %v1647 = vsub.s32 %v1644, %v1646
      %v1648 = vrot.slane %v1634, %v1647
      %v1649 = vcombine.high %v1496, %v947
      %v1651 = vunpack.c.l.s4 1983009808
      %v1652 = vunpack.c.0.s8 %v1651
      %v1653 = vlaneseq
      %v1654 = vshrl.u32 %v1653, 7
      %v1655 = vsub.s32 %v1652, %v1654
      %v1656 = vrot.slane %v1496, %v1655
      %v1658 = vunpack.c.l.s4 1983009808
      %v1659 = vunpack.c.0.s8 %v1658
      %v1660 = vlaneseq
      %v1661 = vshrl.u32 %v1660, 7
      %v1662 = vsub.s32 %v1659, %v1661
      %v1663 = vrot.slane %v1649, %v1662
      %v1664 = vcombine.low %v1641, %v1656
      %v1665 = vcombine.high %v1641, %v1656
      %v1667 = vunpack.c.l.s4 1934713408
      %v1668 = vunpack.c.0.s8 %v1667
      %v1669 = vlaneseq
      %v1670 = vshrl.u32 %v1669, 7
      %v1671 = vsub.s32 %v1668, %v1670
      %v1672 = vrot.slane %v1664, %v1671
      %v1674 = vunpack.c.l.s4 1934713408
      %v1675 = vunpack.c.0.s8 %v1674
      %v1676 = vlaneseq
      %v1677 = vshrl.u32 %v1676, 7
      %v1678 = vsub.s32 %v1675, %v1677
      %v1679 = vrot.slane %v1665, %v1678
      %v1680 = vcombine.low %v1648, %v1663
      %v1681 = vcombine.high %v1648, %v1663
      %v1683 = vunpack.c.l.s4 1934713408
      %v1684 = vunpack.c.0.s8 %v1683
      %v1685 = vlaneseq
      %v1686 = vshrl.u32 %v1685, 7
      %v1687 = vsub.s32 %v1684, %v1686
      %v1688 = vrot.slane %v1680, %v1687
      %v1690 = vunpack.c.l.s4 1934713408
      %v1691 = vunpack.c.0.s8 %v1690
      %v1692 = vlaneseq
      %v1693 = vshrl.u32 %v1692, 7
      %v1694 = vsub.s32 %v1691, %v1693
      %v1695 = vrot.slane %v1681, %v1694
      %v1696 = vcombine.high %v1672, 0
      %v1697 = vcombine.high %v1679, 0
      %v1698 = vcombine.high %v1688, 0
      %v1699 = vcombine.high %v1695, 0
      %v1700 = vcombine.high %v1492, %v950
      %v1702 = vunpack.c.l.s4 1983009808
      %v1703 = vunpack.c.0.s8 %v1702
      %v1704 = vlaneseq
      %v1705 = vshrl.u32 %v1704, 7
      %v1706 = vsub.s32 %v1703, %v1705
      %v1707 = vrot.slane %v1492, %v1706
      %v1709 = vunpack.c.l.s4 1983009808
      %v1710 = vunpack.c.0.s8 %v1709
      %v1711 = vlaneseq
      %v1712 = vshrl.u32 %v1711, 7
      %v1713 = vsub.s32 %v1710, %v1712
      %v1714 = vrot.slane %v1700, %v1713
      %v1715 = vcombine.high %v1500, %v950
      %v1717 = vunpack.c.l.s4 1983009808
      %v1718 = vunpack.c.0.s8 %v1717
      %v1719 = vlaneseq
      %v1720 = vshrl.u32 %v1719, 7
      %v1721 = vsub.s32 %v1718, %v1720
      %v1722 = vrot.slane %v1500, %v1721
      %v1724 = vunpack.c.l.s4 1983009808
      %v1725 = vunpack.c.0.s8 %v1724
      %v1726 = vlaneseq
      %v1727 = vshrl.u32 %v1726, 7
      %v1728 = vsub.s32 %v1725, %v1727
      %v1729 = vrot.slane %v1715, %v1728
      %v1730 = vcombine.low %v1707, %v1722
      %v1731 = vcombine.high %v1707, %v1722
      %v1733 = vunpack.c.l.s4 1934713408
      %v1734 = vunpack.c.0.s8 %v1733
      %v1735 = vlaneseq
      %v1736 = vshrl.u32 %v1735, 7
      %v1737 = vsub.s32 %v1734, %v1736
      %v1738 = vrot.slane %v1730, %v1737
      %v1740 = vunpack.c.l.s4 1934713408
      %v1741 = vunpack.c.0.s8 %v1740
      %v1742 = vlaneseq
      %v1743 = vshrl.u32 %v1742, 7
      %v1744 = vsub.s32 %v1741, %v1743
      %v1745 = vrot.slane %v1731, %v1744
      %v1746 = vcombine.low %v1714, %v1729
      %v1747 = vcombine.high %v1714, %v1729
      %v1749 = vunpack.c.l.s4 1934713408
      %v1750 = vunpack.c.0.s8 %v1749
      %v1751 = vlaneseq
      %v1752 = vshrl.u32 %v1751, 7
      %v1753 = vsub.s32 %v1750, %v1752
      %v1754 = vrot.slane %v1746, %v1753
      %v1756 = vunpack.c.l.s4 1934713408
      %v1757 = vunpack.c.0.s8 %v1756
      %v1758 = vlaneseq
      %v1759 = vshrl.u32 %v1758, 7
      %v1760 = vsub.s32 %v1757, %v1759
      %v1761 = vrot.slane %v1747, %v1760
      %v1762 = vcombine.high %v1738, 0
      %v1763 = vcombine.high %v1745, 0
      %v1764 = vcombine.high %v1754, 0
      %v1765 = vcombine.high %v1761, 0
      %v1766 = vcombine.low %v1540, %v1547
      %v1768 = vunpack.c.l.s4 1983009808
      %v1769 = vunpack.c.0.s8 %v1768
      %v1770 = vlaneseq
      %v1771 = vshrl.u32 %v1770, 7
      %v1772 = vsub.s32 %v1769, %v1771
      %v1773 = vrot.slane %v1766, %v1772
      %v1774 = vcombine.low %v1564, %v1565
      %v1776 = vunpack.c.l.s4 1983009808
      %v1777 = vunpack.c.0.s8 %v1776
      %v1778 = vlaneseq
      %v1779 = vshrl.u32 %v1778, 7
      %v1780 = vsub.s32 %v1777, %v1779
      %v1781 = vrot.slane %v1774, %v1780
      %v1782 = vcombine.low %v1556, %v1563
      %v1784 = vunpack.c.l.s4 1983009808
      %v1785 = vunpack.c.0.s8 %v1784
      %v1786 = vlaneseq
      %v1787 = vshrl.u32 %v1786, 7
      %v1788 = vsub.s32 %v1785, %v1787
      %v1789 = vrot.slane %v1782, %v1788
      %v1790 = vcombine.low %v1566, %v1567
      %v1792 = vunpack.c.l.s4 1983009808
      %v1793 = vunpack.c.0.s8 %v1792
      %v1794 = vlaneseq
      %v1795 = vshrl.u32 %v1794, 7
      %v1796 = vsub.s32 %v1793, %v1795
      %v1797 = vrot.slane %v1790, %v1796
      %v1798 = vcombine.low %v1773, %v1781
      %v1800 = vunpack.c.l.s4 1934713408
      %v1801 = vunpack.c.0.s8 %v1800
      %v1802 = vlaneseq
      %v1803 = vshrl.u32 %v1802, 7
      %v1804 = vsub.s32 %v1801, %v1803
      %v1805 = vrot.slane %v1798, %v1804
      %v1806 = vcombine.low %v1789, %v1797
      %v1808 = vunpack.c.l.s4 1934713408
      %v1809 = vunpack.c.0.s8 %v1808
      %v1810 = vlaneseq
      %v1811 = vshrl.u32 %v1810, 7
      %v1812 = vsub.s32 %v1809, %v1811
      %v1813 = vrot.slane %v1806, %v1812
      %v1814 = vcombine.low %v1805, %v1813
      %v1815 = vcombine.high %v1805, %v1813
      %v1816 = vcombine.low %v1606, %v1613
      %v1818 = vunpack.c.l.s4 1983009808
      %v1819 = vunpack.c.0.s8 %v1818
      %v1820 = vlaneseq
      %v1821 = vshrl.u32 %v1820, 7
      %v1822 = vsub.s32 %v1819, %v1821
      %v1823 = vrot.slane %v1816, %v1822
      %v1824 = vcombine.low %v1630, %v1631
      %v1826 = vunpack.c.l.s4 1983009808
      %v1827 = vunpack.c.0.s8 %v1826
      %v1828 = vlaneseq
      %v1829 = vshrl.u32 %v1828, 7
      %v1830 = vsub.s32 %v1827, %v1829
      %v1831 = vrot.slane %v1824, %v1830
      %v1832 = vcombine.low %v1622, %v1629
      %v1834 = vunpack.c.l.s4 1983009808
      %v1835 = vunpack.c.0.s8 %v1834
      %v1836 = vlaneseq
      %v1837 = vshrl.u32 %v1836, 7
      %v1838 = vsub.s32 %v1835, %v1837
      %v1839 = vrot.slane %v1832, %v1838
      %v1840 = vcombine.low %v1632, %v1633
      %v1842 = vunpack.c.l.s4 1983009808
      %v1843 = vunpack.c.0.s8 %v1842
      %v1844 = vlaneseq
      %v1845 = vshrl.u32 %v1844, 7
      %v1846 = vsub.s32 %v1843, %v1845
      %v1847 = vrot.slane %v1840, %v1846
      %v1848 = vcombine.low %v1823, %v1831
      %v1850 = vunpack.c.l.s4 1934713408
      %v1851 = vunpack.c.0.s8 %v1850
      %v1852 = vlaneseq
      %v1853 = vshrl.u32 %v1852, 7
      %v1854 = vsub.s32 %v1851, %v1853
      %v1855 = vrot.slane %v1848, %v1854
      %v1856 = vcombine.low %v1839, %v1847
      %v1858 = vunpack.c.l.s4 1934713408
      %v1859 = vunpack.c.0.s8 %v1858
      %v1860 = vlaneseq
      %v1861 = vshrl.u32 %v1860, 7
      %v1862 = vsub.s32 %v1859, %v1861
      %v1863 = vrot.slane %v1856, %v1862
      %v1864 = vcombine.low %v1855, %v1863
      %v1865 = vcombine.high %v1855, %v1863
      %v1866 = vcombine.low %v1672, %v1679
      %v1868 = vunpack.c.l.s4 1983009808
      %v1869 = vunpack.c.0.s8 %v1868
      %v1870 = vlaneseq
      %v1871 = vshrl.u32 %v1870, 7
      %v1872 = vsub.s32 %v1869, %v1871
      %v1873 = vrot.slane %v1866, %v1872
      %v1874 = vcombine.low %v1696, %v1697
      %v1876 = vunpack.c.l.s4 1983009808
      %v1877 = vunpack.c.0.s8 %v1876
      %v1878 = vlaneseq
      %v1879 = vshrl.u32 %v1878, 7
      %v1880 = vsub.s32 %v1877, %v1879
      %v1881 = vrot.slane %v1874, %v1880
      %v1882 = vcombine.low %v1688, %v1695
      %v1884 = vunpack.c.l.s4 1983009808
      %v1885 = vunpack.c.0.s8 %v1884
      %v1886 = vlaneseq
      %v1887 = vshrl.u32 %v1886, 7
      %v1888 = vsub.s32 %v1885, %v1887
      %v1889 = vrot.slane %v1882, %v1888
      %v1890 = vcombine.low %v1698, %v1699
      %v1892 = vunpack.c.l.s4 1983009808
      %v1893 = vunpack.c.0.s8 %v1892
      %v1894 = vlaneseq
      %v1895 = vshrl.u32 %v1894, 7
      %v1896 = vsub.s32 %v1893, %v1895
      %v1897 = vrot.slane %v1890, %v1896
      %v1898 = vcombine.low %v1873, %v1881
      %v1900 = vunpack.c.l.s4 1934713408
      %v1901 = vunpack.c.0.s8 %v1900
      %v1902 = vlaneseq
      %v1903 = vshrl.u32 %v1902, 7
      %v1904 = vsub.s32 %v1901, %v1903
      %v1905 = vrot.slane %v1898, %v1904
      %v1906 = vcombine.low %v1889, %v1897
      %v1908 = vunpack.c.l.s4 1934713408
      %v1909 = vunpack.c.0.s8 %v1908
      %v1910 = vlaneseq
      %v1911 = vshrl.u32 %v1910, 7
      %v1912 = vsub.s32 %v1909, %v1911
      %v1913 = vrot.slane %v1906, %v1912
      %v1914 = vcombine.low %v1905, %v1913
      %v1915 = vcombine.high %v1905, %v1913
      %v1916 = vcombine.low %v1738, %v1745
      %v1918 = vunpack.c.l.s4 1983009808
      %v1919 = vunpack.c.0.s8 %v1918
      %v1920 = vlaneseq
      %v1921 = vshrl.u32 %v1920, 7
      %v1922 = vsub.s32 %v1919, %v1921
      %v1923 = vrot.slane %v1916, %v1922
      %v1924 = vcombine.low %v1762, %v1763
      %v1926 = vunpack.c.l.s4 1983009808
      %v1927 = vunpack.c.0.s8 %v1926
      %v1928 = vlaneseq
      %v1929 = vshrl.u32 %v1928, 7
      %v1930 = vsub.s32 %v1927, %v1929
      %v1931 = vrot.slane %v1924, %v1930
      %v1932 = vcombine.low %v1754, %v1761
      %v1934 = vunpack.c.l.s4 1983009808
      %v1935 = vunpack.c.0.s8 %v1934
      %v1936 = vlaneseq
      %v1937 = vshrl.u32 %v1936, 7
      %v1938 = vsub.s32 %v1935, %v1937
      %v1939 = vrot.slane %v1932, %v1938
      %v1940 = vcombine.low %v1764, %v1765
      %v1942 = vunpack.c.l.s4 1983009808
      %v1943 = vunpack.c.0.s8 %v1942
      %v1944 = vlaneseq
      %v1945 = vshrl.u32 %v1944, 7
      %v1946 = vsub.s32 %v1943, %v1945
      %v1947 = vrot.slane %v1940, %v1946
      %v1948 = vcombine.low %v1923, %v1931
      %v1950 = vunpack.c.l.s4 1934713408
      %v1951 = vunpack.c.0.s8 %v1950
      %v1952 = vlaneseq
      %v1953 = vshrl.u32 %v1952, 7
      %v1954 = vsub.s32 %v1951, %v1953
      %v1955 = vrot.slane %v1948, %v1954
      %v1956 = vcombine.low %v1939, %v1947
      %v1958 = vunpack.c.l.s4 1934713408
      %v1959 = vunpack.c.0.s8 %v1958
      %v1960 = vlaneseq
      %v1961 = vshrl.u32 %v1960, 7
      %v1962 = vsub.s32 %v1959, %v1961
      %v1963 = vrot.slane %v1956, %v1962
      %v1964 = vcombine.low %v1955, %v1963
      %v1965 = vcombine.high %v1955, %v1963
      %v1968 = vpack.i.b16 %v1864, %v1814
      %v1969 = vshrl.u32 %v1814, 16
      %v1970 = vshrl.u32 %v1864, 16
      %v1971 = vpack.i.b16 %v1970, %v1969
      %v1974 = vpack.i.b16 %v1865, %v1815
      %v1975 = vshrl.u32 %v1815, 16
      %v1976 = vshrl.u32 %v1865, 16
      %v1977 = vpack.i.b16 %v1976, %v1975
      %v1980 = vpack.i.b16 %v1964, %v1914
      %v1981 = vshrl.u32 %v1914, 16
      %v1982 = vshrl.u32 %v1964, 16
      %v1983 = vpack.i.b16 %v1982, %v1981
      %v1986 = vpack.i.b16 %v1965, %v1915
      %v1987 = vshrl.u32 %v1915, 16
      %v1988 = vshrl.u32 %v1965, 16
      %v1989 = vpack.i.b16 %v1988, %v1987
      %1992 = vrot.lane.b32.xlu0 %v912, 96
      %v1993 = vpop.permute.xlu0 %1992
      %1994 = vrot.lane.b32.xlu0 %v915, 96
      %v1995 = vpop.permute.xlu0 %1994
      %1996 = vrot.lane.b32.xlu0 %v912, 64
      %v1997 = vpop.permute.xlu0 %1996
      %1998 = vrot.lane.b32.xlu0 %v915, 64
      %v1999 = vpop.permute.xlu0 %1998
      %2000 = vrot.lane.b32.xlu0 %v912, 32
      %v2001 = vpop.permute.xlu0 %2000
      %2002 = vrot.lane.b32.xlu0 %v915, 32
      %v2003 = vpop.permute.xlu0 %2002
      %v2006 = vpack.i.b16 %v1993, %v912
      %v2008 = vshrl.u32 %v912, 16
      %v2009 = vshrl.u32 %v1993, 16
      %v2010 = vpack.i.b16 %v2009, %v2008
      %v2014 = vpack.i.b16 %v2001, %v1997
      %v2016 = vshrl.u32 %v1997, 16
      %v2017 = vshrl.u32 %v2001, 16
      %v2018 = vpack.i.b16 %v2017, %v2016
      %v2022 = vpack.i.b16 %v1995, %v915
      %v2024 = vshrl.u32 %v915, 16
      %v2025 = vshrl.u32 %v1995, 16
      %v2026 = vpack.i.b16 %v2025, %v2024
      %v2030 = vpack.i.b16 %v2003, %v1999
      %v2032 = vshrl.u32 %v1999, 16
      %v2033 = vshrl.u32 %v2003, 16
      %v2034 = vpack.i.b16 %v2033, %v2032
      %v2036 = vcombine.high %v2006, %v947
      %v2038 = vunpack.c.l.s4 1983009808
      %v2039 = vunpack.c.0.s8 %v2038
      %v2040 = vlaneseq
      %v2041 = vshrl.u32 %v2040, 7
      %v2042 = vsub.s32 %v2039, %v2041
      %v2043 = vrot.slane %v2006, %v2042
      %v2045 = vunpack.c.l.s4 1983009808
      %v2046 = vunpack.c.0.s8 %v2045
      %v2047 = vlaneseq
      %v2048 = vshrl.u32 %v2047, 7
      %v2049 = vsub.s32 %v2046, %v2048
      %v2050 = vrot.slane %v2036, %v2049
      %v2051 = vcombine.high %v2014, %v947
      %v2053 = vunpack.c.l.s4 1983009808
      %v2054 = vunpack.c.0.s8 %v2053
      %v2055 = vlaneseq
      %v2056 = vshrl.u32 %v2055, 7
      %v2057 = vsub.s32 %v2054, %v2056
      %v2058 = vrot.slane %v2014, %v2057
      %v2060 = vunpack.c.l.s4 1983009808
      %v2061 = vunpack.c.0.s8 %v2060
      %v2062 = vlaneseq
      %v2063 = vshrl.u32 %v2062, 7
      %v2064 = vsub.s32 %v2061, %v2063
      %v2065 = vrot.slane %v2051, %v2064
      %v2066 = vcombine.low %v2043, %v2058
      %v2067 = vcombine.high %v2043, %v2058
      %v2069 = vunpack.c.l.s4 1934713408
      %v2070 = vunpack.c.0.s8 %v2069
      %v2071 = vlaneseq
      %v2072 = vshrl.u32 %v2071, 7
      %v2073 = vsub.s32 %v2070, %v2072
      %v2074 = vrot.slane %v2066, %v2073
      %v2076 = vunpack.c.l.s4 1934713408
      %v2077 = vunpack.c.0.s8 %v2076
      %v2078 = vlaneseq
      %v2079 = vshrl.u32 %v2078, 7
      %v2080 = vsub.s32 %v2077, %v2079
      %v2081 = vrot.slane %v2067, %v2080
      %v2082 = vcombine.low %v2050, %v2065
      %v2083 = vcombine.high %v2050, %v2065
      %v2085 = vunpack.c.l.s4 1934713408
      %v2086 = vunpack.c.0.s8 %v2085
      %v2087 = vlaneseq
      %v2088 = vshrl.u32 %v2087, 7
      %v2089 = vsub.s32 %v2086, %v2088
      %v2090 = vrot.slane %v2082, %v2089
      %v2092 = vunpack.c.l.s4 1934713408
      %v2093 = vunpack.c.0.s8 %v2092
      %v2094 = vlaneseq
      %v2095 = vshrl.u32 %v2094, 7
      %v2096 = vsub.s32 %v2093, %v2095
      %v2097 = vrot.slane %v2083, %v2096
      %v2098 = vcombine.high %v2074, 0
      %v2099 = vcombine.high %v2081, 0
      %v2100 = vcombine.high %v2090, 0
      %v2101 = vcombine.high %v2097, 0
      %v2102 = vcombine.high %v2010, %v950
      %v2104 = vunpack.c.l.s4 1983009808
      %v2105 = vunpack.c.0.s8 %v2104
      %v2106 = vlaneseq
      %v2107 = vshrl.u32 %v2106, 7
      %v2108 = vsub.s32 %v2105, %v2107
      %v2109 = vrot.slane %v2010, %v2108
      %v2111 = vunpack.c.l.s4 1983009808
      %v2112 = vunpack.c.0.s8 %v2111
      %v2113 = vlaneseq
      %v2114 = vshrl.u32 %v2113, 7
      %v2115 = vsub.s32 %v2112, %v2114
      %v2116 = vrot.slane %v2102, %v2115
      %v2117 = vcombine.high %v2018, %v950
      %v2119 = vunpack.c.l.s4 1983009808
      %v2120 = vunpack.c.0.s8 %v2119
      %v2121 = vlaneseq
      %v2122 = vshrl.u32 %v2121, 7
      %v2123 = vsub.s32 %v2120, %v2122
      %v2124 = vrot.slane %v2018, %v2123
      %v2126 = vunpack.c.l.s4 1983009808
      %v2127 = vunpack.c.0.s8 %v2126
      %v2128 = vlaneseq
      %v2129 = vshrl.u32 %v2128, 7
      %v2130 = vsub.s32 %v2127, %v2129
      %v2131 = vrot.slane %v2117, %v2130
      %v2132 = vcombine.low %v2109, %v2124
      %v2133 = vcombine.high %v2109, %v2124
      %v2135 = vunpack.c.l.s4 1934713408
      %v2136 = vunpack.c.0.s8 %v2135
      %v2137 = vlaneseq
      %v2138 = vshrl.u32 %v2137, 7
      %v2139 = vsub.s32 %v2136, %v2138
      %v2140 = vrot.slane %v2132, %v2139
      %v2142 = vunpack.c.l.s4 1934713408
      %v2143 = vunpack.c.0.s8 %v2142
      %v2144 = vlaneseq
      %v2145 = vshrl.u32 %v2144, 7
      %v2146 = vsub.s32 %v2143, %v2145
      %v2147 = vrot.slane %v2133, %v2146
      %v2148 = vcombine.low %v2116, %v2131
      %v2149 = vcombine.high %v2116, %v2131
      %v2151 = vunpack.c.l.s4 1934713408
      %v2152 = vunpack.c.0.s8 %v2151
      %v2153 = vlaneseq
      %v2154 = vshrl.u32 %v2153, 7
      %v2155 = vsub.s32 %v2152, %v2154
      %v2156 = vrot.slane %v2148, %v2155
      %v2158 = vunpack.c.l.s4 1934713408
      %v2159 = vunpack.c.0.s8 %v2158
      %v2160 = vlaneseq
      %v2161 = vshrl.u32 %v2160, 7
      %v2162 = vsub.s32 %v2159, %v2161
      %v2163 = vrot.slane %v2149, %v2162
      %v2164 = vcombine.high %v2140, 0
      %v2165 = vcombine.high %v2147, 0
      %v2166 = vcombine.high %v2156, 0
      %v2167 = vcombine.high %v2163, 0
      %v2168 = vcombine.high %v2022, %v947
      %v2170 = vunpack.c.l.s4 1983009808
      %v2171 = vunpack.c.0.s8 %v2170
      %v2172 = vlaneseq
      %v2173 = vshrl.u32 %v2172, 7
      %v2174 = vsub.s32 %v2171, %v2173
      %v2175 = vrot.slane %v2022, %v2174
      %v2177 = vunpack.c.l.s4 1983009808
      %v2178 = vunpack.c.0.s8 %v2177
      %v2179 = vlaneseq
      %v2180 = vshrl.u32 %v2179, 7
      %v2181 = vsub.s32 %v2178, %v2180
      %v2182 = vrot.slane %v2168, %v2181
      %v2183 = vcombine.high %v2030, %v947
      %v2185 = vunpack.c.l.s4 1983009808
      %v2186 = vunpack.c.0.s8 %v2185
      %v2187 = vlaneseq
      %v2188 = vshrl.u32 %v2187, 7
      %v2189 = vsub.s32 %v2186, %v2188
      %v2190 = vrot.slane %v2030, %v2189
      %v2192 = vunpack.c.l.s4 1983009808
      %v2193 = vunpack.c.0.s8 %v2192
      %v2194 = vlaneseq
      %v2195 = vshrl.u32 %v2194, 7
      %v2196 = vsub.s32 %v2193, %v2195
      %v2197 = vrot.slane %v2183, %v2196
      %v2198 = vcombine.low %v2175, %v2190
      %v2199 = vcombine.high %v2175, %v2190
      %v2201 = vunpack.c.l.s4 1934713408
      %v2202 = vunpack.c.0.s8 %v2201
      %v2203 = vlaneseq
      %v2204 = vshrl.u32 %v2203, 7
      %v2205 = vsub.s32 %v2202, %v2204
      %v2206 = vrot.slane %v2198, %v2205
      %v2208 = vunpack.c.l.s4 1934713408
      %v2209 = vunpack.c.0.s8 %v2208
      %v2210 = vlaneseq
      %v2211 = vshrl.u32 %v2210, 7
      %v2212 = vsub.s32 %v2209, %v2211
      %v2213 = vrot.slane %v2199, %v2212
      %v2214 = vcombine.low %v2182, %v2197
      %v2215 = vcombine.high %v2182, %v2197
      %v2217 = vunpack.c.l.s4 1934713408
      %v2218 = vunpack.c.0.s8 %v2217
      %v2219 = vlaneseq
      %v2220 = vshrl.u32 %v2219, 7
      %v2221 = vsub.s32 %v2218, %v2220
      %v2222 = vrot.slane %v2214, %v2221
      %v2224 = vunpack.c.l.s4 1934713408
      %v2225 = vunpack.c.0.s8 %v2224
      %v2226 = vlaneseq
      %v2227 = vshrl.u32 %v2226, 7
      %v2228 = vsub.s32 %v2225, %v2227
      %v2229 = vrot.slane %v2215, %v2228
      %v2230 = vcombine.high %v2206, 0
      %v2231 = vcombine.high %v2213, 0
      %v2232 = vcombine.high %v2222, 0
      %v2233 = vcombine.high %v2229, 0
      %v2234 = vcombine.high %v2026, %v950
      %v2236 = vunpack.c.l.s4 1983009808
      %v2237 = vunpack.c.0.s8 %v2236
      %v2238 = vlaneseq
      %v2239 = vshrl.u32 %v2238, 7
      %v2240 = vsub.s32 %v2237, %v2239
      %v2241 = vrot.slane %v2026, %v2240
      %v2243 = vunpack.c.l.s4 1983009808
      %v2244 = vunpack.c.0.s8 %v2243
      %v2245 = vlaneseq
      %v2246 = vshrl.u32 %v2245, 7
      %v2247 = vsub.s32 %v2244, %v2246
      %v2248 = vrot.slane %v2234, %v2247
      %v2249 = vcombine.high %v2034, %v950
      %v2251 = vunpack.c.l.s4 1983009808
      %v2252 = vunpack.c.0.s8 %v2251
      %v2253 = vlaneseq
      %v2254 = vshrl.u32 %v2253, 7
      %v2255 = vsub.s32 %v2252, %v2254
      %v2256 = vrot.slane %v2034, %v2255
      %v2258 = vunpack.c.l.s4 1983009808
      %v2259 = vunpack.c.0.s8 %v2258
      %v2260 = vlaneseq
      %v2261 = vshrl.u32 %v2260, 7
      %v2262 = vsub.s32 %v2259, %v2261
      %v2263 = vrot.slane %v2249, %v2262
      %v2264 = vcombine.low %v2241, %v2256
      %v2265 = vcombine.high %v2241, %v2256
      %v2267 = vunpack.c.l.s4 1934713408
      %v2268 = vunpack.c.0.s8 %v2267
      %v2269 = vlaneseq
      %v2270 = vshrl.u32 %v2269, 7
      %v2271 = vsub.s32 %v2268, %v2270
      %v2272 = vrot.slane %v2264, %v2271
      %v2274 = vunpack.c.l.s4 1934713408
      %v2275 = vunpack.c.0.s8 %v2274
      %v2276 = vlaneseq
      %v2277 = vshrl.u32 %v2276, 7
      %v2278 = vsub.s32 %v2275, %v2277
      %v2279 = vrot.slane %v2265, %v2278
      %v2280 = vcombine.low %v2248, %v2263
      %v2281 = vcombine.high %v2248, %v2263
      %v2283 = vunpack.c.l.s4 1934713408
      %v2284 = vunpack.c.0.s8 %v2283
      %v2285 = vlaneseq
      %v2286 = vshrl.u32 %v2285, 7
      %v2287 = vsub.s32 %v2284, %v2286
      %v2288 = vrot.slane %v2280, %v2287
      %v2290 = vunpack.c.l.s4 1934713408
      %v2291 = vunpack.c.0.s8 %v2290
      %v2292 = vlaneseq
      %v2293 = vshrl.u32 %v2292, 7
      %v2294 = vsub.s32 %v2291, %v2293
      %v2295 = vrot.slane %v2281, %v2294
      %v2296 = vcombine.high %v2272, 0
      %v2297 = vcombine.high %v2279, 0
      %v2298 = vcombine.high %v2288, 0
      %v2299 = vcombine.high %v2295, 0
      %v2300 = vcombine.low %v2074, %v2081
      %v2302 = vunpack.c.l.s4 1983009808
      %v2303 = vunpack.c.0.s8 %v2302
      %v2304 = vlaneseq
      %v2305 = vshrl.u32 %v2304, 7
      %v2306 = vsub.s32 %v2303, %v2305
      %v2307 = vrot.slane %v2300, %v2306
      %v2308 = vcombine.low %v2098, %v2099
      %v2310 = vunpack.c.l.s4 1983009808
      %v2311 = vunpack.c.0.s8 %v2310
      %v2312 = vlaneseq
      %v2313 = vshrl.u32 %v2312, 7
      %v2314 = vsub.s32 %v2311, %v2313
      %v2315 = vrot.slane %v2308, %v2314
      %v2316 = vcombine.low %v2090, %v2097
      %v2318 = vunpack.c.l.s4 1983009808
      %v2319 = vunpack.c.0.s8 %v2318
      %v2320 = vlaneseq
      %v2321 = vshrl.u32 %v2320, 7
      %v2322 = vsub.s32 %v2319, %v2321
      %v2323 = vrot.slane %v2316, %v2322
      %v2324 = vcombine.low %v2100, %v2101
      %v2326 = vunpack.c.l.s4 1983009808
      %v2327 = vunpack.c.0.s8 %v2326
      %v2328 = vlaneseq
      %v2329 = vshrl.u32 %v2328, 7
      %v2330 = vsub.s32 %v2327, %v2329
      %v2331 = vrot.slane %v2324, %v2330
      %v2332 = vcombine.low %v2307, %v2315
      %v2334 = vunpack.c.l.s4 1934713408
      %v2335 = vunpack.c.0.s8 %v2334
      %v2336 = vlaneseq
      %v2337 = vshrl.u32 %v2336, 7
      %v2338 = vsub.s32 %v2335, %v2337
      %v2339 = vrot.slane %v2332, %v2338
      %v2340 = vcombine.low %v2323, %v2331
      %v2342 = vunpack.c.l.s4 1934713408
      %v2343 = vunpack.c.0.s8 %v2342
      %v2344 = vlaneseq
      %v2345 = vshrl.u32 %v2344, 7
      %v2346 = vsub.s32 %v2343, %v2345
      %v2347 = vrot.slane %v2340, %v2346
      %v2348 = vcombine.low %v2339, %v2347
      %v2349 = vcombine.high %v2339, %v2347
      %v2350 = vcombine.low %v2140, %v2147
      %v2352 = vunpack.c.l.s4 1983009808
      %v2353 = vunpack.c.0.s8 %v2352
      %v2354 = vlaneseq
      %v2355 = vshrl.u32 %v2354, 7
      %v2356 = vsub.s32 %v2353, %v2355
      %v2357 = vrot.slane %v2350, %v2356
      %v2358 = vcombine.low %v2164, %v2165
      %v2360 = vunpack.c.l.s4 1983009808
      %v2361 = vunpack.c.0.s8 %v2360
      %v2362 = vlaneseq
      %v2363 = vshrl.u32 %v2362, 7
      %v2364 = vsub.s32 %v2361, %v2363
      %v2365 = vrot.slane %v2358, %v2364
      %v2366 = vcombine.low %v2156, %v2163
      %v2368 = vunpack.c.l.s4 1983009808
      %v2369 = vunpack.c.0.s8 %v2368
      %v2370 = vlaneseq
      %v2371 = vshrl.u32 %v2370, 7
      %v2372 = vsub.s32 %v2369, %v2371
      %v2373 = vrot.slane %v2366, %v2372
      %v2374 = vcombine.low %v2166, %v2167
      %v2376 = vunpack.c.l.s4 1983009808
      %v2377 = vunpack.c.0.s8 %v2376
      %v2378 = vlaneseq
      %v2379 = vshrl.u32 %v2378, 7
      %v2380 = vsub.s32 %v2377, %v2379
      %v2381 = vrot.slane %v2374, %v2380
      %v2382 = vcombine.low %v2357, %v2365
      %v2384 = vunpack.c.l.s4 1934713408
      %v2385 = vunpack.c.0.s8 %v2384
      %v2386 = vlaneseq
      %v2387 = vshrl.u32 %v2386, 7
      %v2388 = vsub.s32 %v2385, %v2387
      %v2389 = vrot.slane %v2382, %v2388
      %v2390 = vcombine.low %v2373, %v2381
      %v2392 = vunpack.c.l.s4 1934713408
      %v2393 = vunpack.c.0.s8 %v2392
      %v2394 = vlaneseq
      %v2395 = vshrl.u32 %v2394, 7
      %v2396 = vsub.s32 %v2393, %v2395
      %v2397 = vrot.slane %v2390, %v2396
      %v2398 = vcombine.low %v2389, %v2397
      %v2399 = vcombine.high %v2389, %v2397
      %v2400 = vcombine.low %v2206, %v2213
      %v2402 = vunpack.c.l.s4 1983009808
      %v2403 = vunpack.c.0.s8 %v2402
      %v2404 = vlaneseq
      %v2405 = vshrl.u32 %v2404, 7
      %v2406 = vsub.s32 %v2403, %v2405
      %v2407 = vrot.slane %v2400, %v2406
      %v2408 = vcombine.low %v2230, %v2231
      %v2410 = vunpack.c.l.s4 1983009808
      %v2411 = vunpack.c.0.s8 %v2410
      %v2412 = vlaneseq
      %v2413 = vshrl.u32 %v2412, 7
      %v2414 = vsub.s32 %v2411, %v2413
      %v2415 = vrot.slane %v2408, %v2414
      %v2416 = vcombine.low %v2222, %v2229
      %v2418 = vunpack.c.l.s4 1983009808
      %v2419 = vunpack.c.0.s8 %v2418
      %v2420 = vlaneseq
      %v2421 = vshrl.u32 %v2420, 7
      %v2422 = vsub.s32 %v2419, %v2421
      %v2423 = vrot.slane %v2416, %v2422
      %v2424 = vcombine.low %v2232, %v2233
      %v2426 = vunpack.c.l.s4 1983009808
      %v2427 = vunpack.c.0.s8 %v2426
      %v2428 = vlaneseq
      %v2429 = vshrl.u32 %v2428, 7
      %v2430 = vsub.s32 %v2427, %v2429
      %v2431 = vrot.slane %v2424, %v2430
      %v2432 = vcombine.low %v2407, %v2415
      %v2434 = vunpack.c.l.s4 1934713408
      %v2435 = vunpack.c.0.s8 %v2434
      %v2436 = vlaneseq
      %v2437 = vshrl.u32 %v2436, 7
      %v2438 = vsub.s32 %v2435, %v2437
      %v2439 = vrot.slane %v2432, %v2438
      %v2440 = vcombine.low %v2423, %v2431
      %v2442 = vunpack.c.l.s4 1934713408
      %v2443 = vunpack.c.0.s8 %v2442
      %v2444 = vlaneseq
      %v2445 = vshrl.u32 %v2444, 7
      %v2446 = vsub.s32 %v2443, %v2445
      %v2447 = vrot.slane %v2440, %v2446
      %v2448 = vcombine.low %v2439, %v2447
      %v2449 = vcombine.high %v2439, %v2447
      %v2450 = vcombine.low %v2272, %v2279
      %v2452 = vunpack.c.l.s4 1983009808
      %v2453 = vunpack.c.0.s8 %v2452
      %v2454 = vlaneseq
      %v2455 = vshrl.u32 %v2454, 7
      %v2456 = vsub.s32 %v2453, %v2455
      %v2457 = vrot.slane %v2450, %v2456
      %v2458 = vcombine.low %v2296, %v2297
      %v2460 = vunpack.c.l.s4 1983009808
      %v2461 = vunpack.c.0.s8 %v2460
      %v2462 = vlaneseq
      %v2463 = vshrl.u32 %v2462, 7
      %v2464 = vsub.s32 %v2461, %v2463
      %v2465 = vrot.slane %v2458, %v2464
      %v2466 = vcombine.low %v2288, %v2295
      %v2468 = vunpack.c.l.s4 1983009808
      %v2469 = vunpack.c.0.s8 %v2468
      %v2470 = vlaneseq
      %v2471 = vshrl.u32 %v2470, 7
      %v2472 = vsub.s32 %v2469, %v2471
      %v2473 = vrot.slane %v2466, %v2472
      %v2474 = vcombine.low %v2298, %v2299
      %v2476 = vunpack.c.l.s4 1983009808
      %v2477 = vunpack.c.0.s8 %v2476
      %v2478 = vlaneseq
      %v2479 = vshrl.u32 %v2478, 7
      %v2480 = vsub.s32 %v2477, %v2479
      %v2481 = vrot.slane %v2474, %v2480
      %v2482 = vcombine.low %v2457, %v2465
      %v2484 = vunpack.c.l.s4 1934713408
      %v2485 = vunpack.c.0.s8 %v2484
      %v2486 = vlaneseq
      %v2487 = vshrl.u32 %v2486, 7
      %v2488 = vsub.s32 %v2485, %v2487
      %v2489 = vrot.slane %v2482, %v2488
      %v2490 = vcombine.low %v2473, %v2481
      %v2492 = vunpack.c.l.s4 1934713408
      %v2493 = vunpack.c.0.s8 %v2492
      %v2494 = vlaneseq
      %v2495 = vshrl.u32 %v2494, 7
      %v2496 = vsub.s32 %v2493, %v2495
      %v2497 = vrot.slane %v2490, %v2496
      %v2498 = vcombine.low %v2489, %v2497
      %v2499 = vcombine.high %v2489, %v2497
      %v2502 = vpack.i.b16 %v2398, %v2348
      %v2504 = vshrl.u32 %v2348, 16
      %v2505 = vshrl.u32 %v2398, 16
      %v2506 = vpack.i.b16 %v2505, %v2504
      %v2510 = vpack.i.b16 %v2399, %v2349
      %v2512 = vshrl.u32 %v2349, 16
      %v2513 = vshrl.u32 %v2399, 16
      %v2514 = vpack.i.b16 %v2513, %v2512
      %v2518 = vpack.i.b16 %v2498, %v2448
      %v2520 = vshrl.u32 %v2448, 16
      %v2521 = vshrl.u32 %v2498, 16
      %v2522 = vpack.i.b16 %v2521, %v2520
      %v2526 = vpack.i.b16 %v2499, %v2449
      %v2528 = vshrl.u32 %v2449, 16
      %v2529 = vshrl.u32 %v2499, 16
      %v2530 = vpack.i.b16 %v2529, %v2528
      %v2532 = vlaneseq
      %v2533 = vshrl.u32 %v2532, 7
      %v2534 = vadd.s32 %v2533, 8
      %v2535 = vadd.s32 %v2533, 16
      %v2536 = vadd.s32 %v2533, 24
      %v2537 = vlaneseq
      %v2538 = vand.u32 %v2537, 127
      %vm2539 = vcmp.ge.s32.totalorder %v2533, %v2538
      %vm2540 = vcmp.ge.s32.totalorder %v2534, %v2538
      %vm2541 = vcmp.ge.s32.totalorder %v2535, %v2538
      %vm2542 = vcmp.ge.s32.totalorder %v2536, %v2538
      %v2543 = vsel %vm2539, 0.0, -1e+30
      %v2544 = vsel %vm2540, 0.0, -1e+30
      %v2545 = vsel %vm2541, 0.0, -1e+30
      %v2546 = vsel %vm2542, 0.0, -1e+30
      %vm2547 = vcmask 261120
      %v2549 = vsel %vm2547, %v1434, 0
      %v2552 = vsel %vm2547, %v1446, 0
      %v2555 = vsel %vm2547, %v1968, 0
      %v2558 = vsel %vm2547, %v1980, 0
      %2560 = vmatprep.subr.bf16.mxu0 0
      %2561 = vmatpush1.bf16.xpose.msra.mxu0 %v2555
      %2562 = vmatprep.subr.bf16.mxu0 0
      %2563 = vmatpush1.bf16.xpose.msra.mxu0 %v2558
      %2564 = vmatprep.subr.bf16.mxu0 0
      %2565 = vmatpush1.bf16.xpose.msra.mxu0 0
      %2566 = vmatprep.subr.bf16.mxu0 0
      %2567 = vmatpush1.bf16.xpose.msra.mxu0 0
      %2568 = vmatprep.subr.bf16.mxu0 0
      %2569 = vmatpush1.bf16.xpose.msra.mxu0 0
      %2570 = vmatprep.subr.bf16.mxu0 0
      %2571 = vmatpush1.bf16.xpose.msra.mxu0 0
      %2572 = vmatprep.subr.bf16.mxu0 0
      %2573 = vmatpush1.bf16.xpose.msra.mxu0 0
      %2574 = vmatprep.subr.bf16.mxu0 0
      %2575 = vmatpush1.bf16.xpose.msra.mxu0 0
      %2576 = vmatprep.subr.bf16.mxu0 0
      %2577 = vmatpush1.bf16.xpose.msra.mxu0 0
      %2578 = vmatprep.subr.bf16.mxu0 0
      %2579 = vmatpush1.bf16.xpose.msra.mxu0 0
      %2580 = vmatprep.subr.bf16.mxu0 0
      %2581 = vmatpush1.bf16.xpose.msra.mxu0 0
      %2582 = vmatprep.subr.bf16.mxu0 0
      %2583 = vmatpush1.bf16.xpose.msra.mxu0 0
      %2584 = vmatprep.subr.bf16.mxu0 0
      %2585 = vmatpush1.bf16.xpose.msra.mxu0 0
      %2586 = vmatprep.subr.bf16.mxu0 0
      %2587 = vmatpush1.bf16.xpose.msra.mxu0 0
      %2588 = vmatprep.subr.bf16.mxu0 0
      %2589 = vmatpush1.bf16.xpose.msra.mxu0 0
      %2590 = vmatprep.subr.bf16.mxu0 0
      %2591 = vmatpush1.bf16.xpose.msra.mxu0 0
      %2592 = vmatprep.mubr.bf16.mxu0 0
      %2593 = vmatmul.mubr.bf16.gmra.mrb[0].mxu0 %v2549
      %v2594 = vpop.f32.mrb[0].mxu0
      %v2595 = vadd.f32 %v2543, %v2594
      %v2596 = vpop.f32.mrb[0].mxu0
      %v2597 = vpop.f32.mrb[0].mxu0
      %v2598 = vadd.f32 %v2544, %v2597
      %v2599 = vpop.f32.mrb[0].mxu0
      %2600 = vmatprep.mubr.bf16.mxu0 0
      %2601 = vmatmul.mubr.bf16.gmra.mrb[0].mxu0 %v2552
      %v2602 = vpop.f32.mrb[0].mxu0
      %v2603 = vadd.f32 %v2545, %v2602
      %v2604 = vpop.f32.mrb[0].mxu0
      %v2605 = vpop.f32.mrb[0].mxu0
      %v2606 = vadd.f32 %v2546, %v2605
      %v2607 = vpop.f32.mrb[0].mxu0
      %2608 = vdwg.mxu0
      %v2610 = vsel %vm2547, %v1437, 0
      %v2613 = vsel %vm2547, %v1449, 0
      %v2616 = vsel %vm2547, %v1971, 0
      %v2619 = vsel %vm2547, %v1983, 0
      %2621 = vmatprep.subr.bf16.mxu0 0
      %2622 = vmatpush1.bf16.xpose.msra.mxu0 %v2616
      %2623 = vmatprep.subr.bf16.mxu0 0
      %2624 = vmatpush1.bf16.xpose.msra.mxu0 %v2619
      %2625 = vmatprep.subr.bf16.mxu0 0
      %2626 = vmatpush1.bf16.xpose.msra.mxu0 0
      %2627 = vmatprep.subr.bf16.mxu0 0
      %2628 = vmatpush1.bf16.xpose.msra.mxu0 0
      %2629 = vmatprep.subr.bf16.mxu0 0
      %2630 = vmatpush1.bf16.xpose.msra.mxu0 0
      %2631 = vmatprep.subr.bf16.mxu0 0
      %2632 = vmatpush1.bf16.xpose.msra.mxu0 0
      %2633 = vmatprep.subr.bf16.mxu0 0
      %2634 = vmatpush1.bf16.xpose.msra.mxu0 0
      %2635 = vmatprep.subr.bf16.mxu0 0
      %2636 = vmatpush1.bf16.xpose.msra.mxu0 0
      %2637 = vmatprep.subr.bf16.mxu0 0
      %2638 = vmatpush1.bf16.xpose.msra.mxu0 0
      %2639 = vmatprep.subr.bf16.mxu0 0
      %2640 = vmatpush1.bf16.xpose.msra.mxu0 0
      %2641 = vmatprep.subr.bf16.mxu0 0
      %2642 = vmatpush1.bf16.xpose.msra.mxu0 0
      %2643 = vmatprep.subr.bf16.mxu0 0
      %2644 = vmatpush1.bf16.xpose.msra.mxu0 0
      %2645 = vmatprep.subr.bf16.mxu0 0
      %2646 = vmatpush1.bf16.xpose.msra.mxu0 0
      %2647 = vmatprep.subr.bf16.mxu0 0
      %2648 = vmatpush1.bf16.xpose.msra.mxu0 0
      %2649 = vmatprep.subr.bf16.mxu0 0
      %2650 = vmatpush1.bf16.xpose.msra.mxu0 0
      %2651 = vmatprep.subr.bf16.mxu0 0
      %2652 = vmatpush1.bf16.xpose.msra.mxu0 0
      %2653 = vmatprep.mubr.bf16.mxu0 0
      %2654 = vmatmul.mubr.bf16.gmra.mrb[0].mxu0 %v2610
      %v2655 = vpop.f32.mrb[0].mxu0
      %v2656 = vadd.f32 %v2543, %v2655
      %v2657 = vpop.f32.mrb[0].mxu0
      %v2658 = vpop.f32.mrb[0].mxu0
      %v2659 = vadd.f32 %v2544, %v2658
      %v2660 = vpop.f32.mrb[0].mxu0
      %2661 = vmatprep.mubr.bf16.mxu0 0
      %2662 = vmatmul.mubr.bf16.gmra.mrb[0].mxu0 %v2613
      %v2663 = vpop.f32.mrb[0].mxu0
      %v2664 = vadd.f32 %v2545, %v2663
      %v2665 = vpop.f32.mrb[0].mxu0
      %v2666 = vpop.f32.mrb[0].mxu0
      %v2667 = vadd.f32 %v2546, %v2666
      %v2668 = vpop.f32.mrb[0].mxu0
      %2669 = vdwg.mxu0
      %v2671 = vsel %vm2547, %v1440, 0
      %v2674 = vsel %vm2547, %v1452, 0
      %v2677 = vsel %vm2547, %v1974, 0
      %v2680 = vsel %vm2547, %v1986, 0
      %2682 = vmatprep.subr.bf16.mxu0 0
      %2683 = vmatpush1.bf16.xpose.msra.mxu0 %v2677
      %2684 = vmatprep.subr.bf16.mxu0 0
      %2685 = vmatpush1.bf16.xpose.msra.mxu0 %v2680
      %2686 = vmatprep.subr.bf16.mxu0 0
      %2687 = vmatpush1.bf16.xpose.msra.mxu0 0
      %2688 = vmatprep.subr.bf16.mxu0 0
      %2689 = vmatpush1.bf16.xpose.msra.mxu0 0
      %2690 = vmatprep.subr.bf16.mxu0 0
      %2691 = vmatpush1.bf16.xpose.msra.mxu0 0
      %2692 = vmatprep.subr.bf16.mxu0 0
      %2693 = vmatpush1.bf16.xpose.msra.mxu0 0
      %2694 = vmatprep.subr.bf16.mxu0 0
      %2695 = vmatpush1.bf16.xpose.msra.mxu0 0
      %2696 = vmatprep.subr.bf16.mxu0 0
      %2697 = vmatpush1.bf16.xpose.msra.mxu0 0
      %2698 = vmatprep.subr.bf16.mxu0 0
      %2699 = vmatpush1.bf16.xpose.msra.mxu0 0
      %2700 = vmatprep.subr.bf16.mxu0 0
      %2701 = vmatpush1.bf16.xpose.msra.mxu0 0
      %2702 = vmatprep.subr.bf16.mxu0 0
      %2703 = vmatpush1.bf16.xpose.msra.mxu0 0
      %2704 = vmatprep.subr.bf16.mxu0 0
      %2705 = vmatpush1.bf16.xpose.msra.mxu0 0
      %2706 = vmatprep.subr.bf16.mxu0 0
      %2707 = vmatpush1.bf16.xpose.msra.mxu0 0
      %2708 = vmatprep.subr.bf16.mxu0 0
      %2709 = vmatpush1.bf16.xpose.msra.mxu0 0
      %2710 = vmatprep.subr.bf16.mxu0 0
      %2711 = vmatpush1.bf16.xpose.msra.mxu0 0
      %2712 = vmatprep.subr.bf16.mxu0 0
      %2713 = vmatpush1.bf16.xpose.msra.mxu0 0
      %2714 = vmatprep.mubr.bf16.mxu0 0
      %2715 = vmatmul.mubr.bf16.gmra.mrb[0].mxu0 %v2671
      %v2716 = vpop.f32.mrb[0].mxu0
      %v2717 = vadd.f32 %v2543, %v2716
      %v2718 = vpop.f32.mrb[0].mxu0
      %v2719 = vpop.f32.mrb[0].mxu0
      %v2720 = vadd.f32 %v2544, %v2719
      %v2721 = vpop.f32.mrb[0].mxu0
      %2722 = vmatprep.mubr.bf16.mxu0 0
      %2723 = vmatmul.mubr.bf16.gmra.mrb[0].mxu0 %v2674
      %v2724 = vpop.f32.mrb[0].mxu0
      %v2725 = vadd.f32 %v2545, %v2724
      %v2726 = vpop.f32.mrb[0].mxu0
      %v2727 = vpop.f32.mrb[0].mxu0
      %v2728 = vadd.f32 %v2546, %v2727
      %v2729 = vpop.f32.mrb[0].mxu0
      %2730 = vdwg.mxu0
      %v2732 = vsel %vm2547, %v1443, 0
      %v2735 = vsel %vm2547, %v1455, 0
      %v2738 = vsel %vm2547, %v1977, 0
      %v2741 = vsel %vm2547, %v1989, 0
      %2743 = vmatprep.subr.bf16.mxu0 0
      %2744 = vmatpush1.bf16.xpose.msra.mxu0 %v2738
      %2745 = vmatprep.subr.bf16.mxu0 0
      %2746 = vmatpush1.bf16.xpose.msra.mxu0 %v2741
      %2747 = vmatprep.subr.bf16.mxu0 0
      %2748 = vmatpush1.bf16.xpose.msra.mxu0 0
      %2749 = vmatprep.subr.bf16.mxu0 0
      %2750 = vmatpush1.bf16.xpose.msra.mxu0 0
      %2751 = vmatprep.subr.bf16.mxu0 0
      %2752 = vmatpush1.bf16.xpose.msra.mxu0 0
      %2753 = vmatprep.subr.bf16.mxu0 0
      %2754 = vmatpush1.bf16.xpose.msra.mxu0 0
      %2755 = vmatprep.subr.bf16.mxu0 0
      %2756 = vmatpush1.bf16.xpose.msra.mxu0 0
      %2757 = vmatprep.subr.bf16.mxu0 0
      %2758 = vmatpush1.bf16.xpose.msra.mxu0 0
      %2759 = vmatprep.subr.bf16.mxu0 0
      %2760 = vmatpush1.bf16.xpose.msra.mxu0 0
      %2761 = vmatprep.subr.bf16.mxu0 0
      %2762 = vmatpush1.bf16.xpose.msra.mxu0 0
      %2763 = vmatprep.subr.bf16.mxu0 0
      %2764 = vmatpush1.bf16.xpose.msra.mxu0 0
      %2765 = vmatprep.subr.bf16.mxu0 0
      %2766 = vmatpush1.bf16.xpose.msra.mxu0 0
      %2767 = vmatprep.subr.bf16.mxu0 0
      %2768 = vmatpush1.bf16.xpose.msra.mxu0 0
      %2769 = vmatprep.subr.bf16.mxu0 0
      %2770 = vmatpush1.bf16.xpose.msra.mxu0 0
      %2771 = vmatprep.subr.bf16.mxu0 0
      %2772 = vmatpush1.bf16.xpose.msra.mxu0 0
      %2773 = vmatprep.subr.bf16.mxu0 0
      %2774 = vmatpush1.bf16.xpose.msra.mxu0 0
      %2775 = vmatprep.mubr.bf16.mxu0 0
      %2776 = vmatmul.mubr.bf16.gmra.mrb[0].mxu0 %v2732
      %v2777 = vpop.f32.mrb[0].mxu0
      %v2778 = vadd.f32 %v2543, %v2777
      %v2779 = vpop.f32.mrb[0].mxu0
      %v2780 = vpop.f32.mrb[0].mxu0
      %v2781 = vadd.f32 %v2544, %v2780
      %v2782 = vpop.f32.mrb[0].mxu0
      %2783 = vmatprep.mubr.bf16.mxu0 0
      %2784 = vmatmul.mubr.bf16.gmra.mrb[0].mxu0 %v2735
      %v2785 = vpop.f32.mrb[0].mxu0
      %v2786 = vadd.f32 %v2545, %v2785
      %v2787 = vpop.f32.mrb[0].mxu0
      %v2788 = vpop.f32.mrb[0].mxu0
      %v2789 = vadd.f32 %v2546, %v2788
      %v2790 = vpop.f32.mrb[0].mxu0
      %2791 = vdwg.mxu0
      %v2792 = vsel %vm2547, %v2595, -inf
      %2793 = vmax.xlane.f32.xlu0 %v2792
      %v2794 = vpop.xlane.xlu0 %2793
      %v2795 = vsel %vm2547, %v2598, -inf
      %2796 = vmax.xlane.f32.xlu0 %v2795
      %v2797 = vpop.xlane.xlu0 %2796
      %v2798 = vsel %vm2547, %v2603, -inf
      %2799 = vmax.xlane.f32.xlu0 %v2798
      %v2800 = vpop.xlane.xlu0 %2799
      %v2801 = vsel %vm2547, %v2606, -inf
      %2802 = vmax.xlane.f32.xlu0 %v2801
      %v2803 = vpop.xlane.xlu0 %2802
      %v2804 = vsel %vm2547, %v2656, -inf
      %2805 = vmax.xlane.f32.xlu0 %v2804
      %v2806 = vpop.xlane.xlu0 %2805
      %v2807 = vsel %vm2547, %v2659, -inf
      %2808 = vmax.xlane.f32.xlu0 %v2807
      %v2809 = vpop.xlane.xlu0 %2808
      %v2810 = vsel %vm2547, %v2664, -inf
      %2811 = vmax.xlane.f32.xlu0 %v2810
      %v2812 = vpop.xlane.xlu0 %2811
      %v2813 = vsel %vm2547, %v2667, -inf
      %2814 = vmax.xlane.f32.xlu0 %v2813
      %v2815 = vpop.xlane.xlu0 %2814
      %v2816 = vsel %vm2547, %v2717, -inf
      %2817 = vmax.xlane.f32.xlu0 %v2816
      %v2818 = vpop.xlane.xlu0 %2817
      %v2819 = vsel %vm2547, %v2720, -inf
      %2820 = vmax.xlane.f32.xlu0 %v2819
      %v2821 = vpop.xlane.xlu0 %2820
      %v2822 = vsel %vm2547, %v2725, -inf
      %2823 = vmax.xlane.f32.xlu0 %v2822
      %v2824 = vpop.xlane.xlu0 %2823
      %v2825 = vsel %vm2547, %v2728, -inf
      %2826 = vmax.xlane.f32.xlu0 %v2825
      %v2827 = vpop.xlane.xlu0 %2826
      %v2828 = vsel %vm2547, %v2778, -inf
      %2829 = vmax.xlane.f32.xlu0 %v2828
      %v2830 = vpop.xlane.xlu0 %2829
      %v2831 = vsel %vm2547, %v2781, -inf
      %2832 = vmax.xlane.f32.xlu0 %v2831
      %v2833 = vpop.xlane.xlu0 %2832
      %v2834 = vsel %vm2547, %v2786, -inf
      %2835 = vmax.xlane.f32.xlu0 %v2834
      %v2836 = vpop.xlane.xlu0 %2835
      %v2837 = vsel %vm2547, %v2789, -inf
      %2838 = vmax.xlane.f32.xlu0 %v2837
      %v2839 = vpop.xlane.xlu0 %2838
      %v2840 = vsub.f32 %v2595, %v2794
      %v2841 = vsub.f32 %v2598, %v2797
      %v2842 = vsub.f32 %v2603, %v2800
      %v2843 = vsub.f32 %v2606, %v2803
      %v2844 = vsub.f32 %v2656, %v2806
      %v2845 = vsub.f32 %v2659, %v2809
      %v2846 = vsub.f32 %v2664, %v2812
      %v2847 = vsub.f32 %v2667, %v2815
      %v2848 = vsub.f32 %v2717, %v2818
      %v2849 = vsub.f32 %v2720, %v2821
      %v2850 = vsub.f32 %v2725, %v2824
      %v2851 = vsub.f32 %v2728, %v2827
      %v2852 = vsub.f32 %v2778, %v2830
      %v2853 = vsub.f32 %v2781, %v2833
      %v2854 = vsub.f32 %v2786, %v2836
      %v2855 = vsub.f32 %v2789, %v2839
      %v2856 = vmul.f32 %v2840, 1.442695
      %v2857 = vpow.pop %v2856
      %v2858 = vmul.f32 %v2841, 1.442695
      %v2859 = vpow.pop %v2858
      %v2860 = vmul.f32 %v2842, 1.442695
      %v2861 = vpow.pop %v2860
      %v2862 = vmul.f32 %v2843, 1.442695
      %v2863 = vpow.pop %v2862
      %v2864 = vmul.f32 %v2844, 1.442695
      %v2865 = vpow.pop %v2864
      %v2866 = vmul.f32 %v2845, 1.442695
      %v2867 = vpow.pop %v2866
      %v2868 = vmul.f32 %v2846, 1.442695
      %v2869 = vpow.pop %v2868
      %v2870 = vmul.f32 %v2847, 1.442695
      %v2871 = vpow.pop %v2870
      %v2872 = vmul.f32 %v2848, 1.442695
      %v2873 = vpow.pop %v2872
      %v2874 = vmul.f32 %v2849, 1.442695
      %v2875 = vpow.pop %v2874
      %v2876 = vmul.f32 %v2850, 1.442695
      %v2877 = vpow.pop %v2876
      %v2878 = vmul.f32 %v2851, 1.442695
      %v2879 = vpow.pop %v2878
      %v2880 = vmul.f32 %v2852, 1.442695
      %v2881 = vpow.pop %v2880
      %v2882 = vmul.f32 %v2853, 1.442695
      %v2883 = vpow.pop %v2882
      %v2884 = vmul.f32 %v2854, 1.442695
      %v2885 = vpow.pop %v2884
      %v2886 = vmul.f32 %v2855, 1.442695
      %v2887 = vpow.pop %v2886
      %v2888 = vsel %vm2547, %v2857, 0.0
      %2889 = vadd.xlane.f32.xlu0 %v2888
      %v2890 = vpop.xlane.xlu0 %2889
      %v2891 = vsel %vm2547, %v2859, 0.0
      %2892 = vadd.xlane.f32.xlu0 %v2891
      %v2893 = vpop.xlane.xlu0 %2892
      %v2894 = vsel %vm2547, %v2861, 0.0
      %2895 = vadd.xlane.f32.xlu0 %v2894
      %v2896 = vpop.xlane.xlu0 %2895
      %v2897 = vsel %vm2547, %v2863, 0.0
      %2898 = vadd.xlane.f32.xlu0 %v2897
      %v2899 = vpop.xlane.xlu0 %2898
      %v2900 = vsel %vm2547, %v2865, 0.0
      %2901 = vadd.xlane.f32.xlu0 %v2900
      %v2902 = vpop.xlane.xlu0 %2901
      %v2903 = vsel %vm2547, %v2867, 0.0
      %2904 = vadd.xlane.f32.xlu0 %v2903
      %v2905 = vpop.xlane.xlu0 %2904
      %v2906 = vsel %vm2547, %v2869, 0.0
      %2907 = vadd.xlane.f32.xlu0 %v2906
      %v2908 = vpop.xlane.xlu0 %2907
      %v2909 = vsel %vm2547, %v2871, 0.0
      %2910 = vadd.xlane.f32.xlu0 %v2909
      %v2911 = vpop.xlane.xlu0 %2910
      %v2912 = vsel %vm2547, %v2873, 0.0
      %2913 = vadd.xlane.f32.xlu0 %v2912
      %v2914 = vpop.xlane.xlu0 %2913
      %v2915 = vsel %vm2547, %v2875, 0.0
      %2916 = vadd.xlane.f32.xlu0 %v2915
      %v2917 = vpop.xlane.xlu0 %2916
      %v2918 = vsel %vm2547, %v2877, 0.0
      %2919 = vadd.xlane.f32.xlu0 %v2918
      %v2920 = vpop.xlane.xlu0 %2919
      %v2921 = vsel %vm2547, %v2879, 0.0
      %2922 = vadd.xlane.f32.xlu0 %v2921
      %v2923 = vpop.xlane.xlu0 %2922
      %v2924 = vsel %vm2547, %v2881, 0.0
      %2925 = vadd.xlane.f32.xlu0 %v2924
      %v2926 = vpop.xlane.xlu0 %2925
      %v2927 = vsel %vm2547, %v2883, 0.0
      %2928 = vadd.xlane.f32.xlu0 %v2927
      %v2929 = vpop.xlane.xlu0 %2928
      %v2930 = vsel %vm2547, %v2885, 0.0
      %2931 = vadd.xlane.f32.xlu0 %v2930
      %v2932 = vpop.xlane.xlu0 %2931
      %v2933 = vsel %vm2547, %v2887, 0.0
      %2934 = vadd.xlane.f32.xlu0 %v2933
      %v2935 = vpop.xlane.xlu0 %2934
      %v2936 = vrcp.pop %v2890
      %v2937 = vrcp.pop %v2893
      %v2938 = vrcp.pop %v2896
      %v2939 = vrcp.pop %v2899
      %v2940 = vrcp.pop %v2902
      %v2941 = vrcp.pop %v2905
      %v2942 = vrcp.pop %v2908
      %v2943 = vrcp.pop %v2911
      %v2944 = vrcp.pop %v2914
      %v2945 = vrcp.pop %v2917
      %v2946 = vrcp.pop %v2920
      %v2947 = vrcp.pop %v2923
      %v2948 = vrcp.pop %v2926
      %v2949 = vrcp.pop %v2929
      %v2950 = vrcp.pop %v2932
      %v2951 = vrcp.pop %v2935
      %v2952 = vmul.f32 %v2857, %v2936
      %v2953 = vmul.f32 %v2859, %v2937
      %v2954 = vmul.f32 %v2861, %v2938
      %v2955 = vmul.f32 %v2863, %v2939
      %v2956 = vmul.f32 %v2865, %v2940
      %v2957 = vmul.f32 %v2867, %v2941
      %v2958 = vmul.f32 %v2869, %v2942
      %v2959 = vmul.f32 %v2871, %v2943
      %v2960 = vmul.f32 %v2873, %v2944
      %v2961 = vmul.f32 %v2875, %v2945
      %v2962 = vmul.f32 %v2877, %v2946
      %v2963 = vmul.f32 %v2879, %v2947
      %v2964 = vmul.f32 %v2881, %v2948
      %v2965 = vmul.f32 %v2883, %v2949
      %v2966 = vmul.f32 %v2885, %v2950
      %v2967 = vmul.f32 %v2887, %v2951
      %v2968 = vpack.c.bf16 %v2953, %v2952
      %v2969 = vpack.c.bf16 %v2955, %v2954
      %v2970 = vpack.c.bf16 %v2957, %v2956
      %v2971 = vpack.c.bf16 %v2959, %v2958
      %v2972 = vpack.c.bf16 %v2961, %v2960
      %v2973 = vpack.c.bf16 %v2963, %v2962
      %v2974 = vpack.c.bf16 %v2965, %v2964
      %v2975 = vpack.c.bf16 %v2967, %v2966
      %v2977 = vsel %vm2547, %v2968, 0
      %v2980 = vsel %vm2547, %v2969, 0
      %2982 = vmatprep.subr.bf16.mxu0 0
      %2983 = vmatpush1.bf16.msra.mxu0 %v2502
      %2984 = vmatprep.subr.bf16.mxu0 0
      %2985 = vmatpush1.bf16.msra.mxu0 %v2518
      %2986 = vmatprep.subr.bf16.mxu0 0
      %2987 = vmatpush1.bf16.msra.mxu0 0
      %2988 = vmatprep.subr.bf16.mxu0 0
      %2989 = vmatpush1.bf16.msra.mxu0 0
      %2990 = vmatprep.subr.bf16.mxu0 0
      %2991 = vmatpush1.bf16.msra.mxu0 0
      %2992 = vmatprep.subr.bf16.mxu0 0
      %2993 = vmatpush1.bf16.msra.mxu0 0
      %2994 = vmatprep.subr.bf16.mxu0 0
      %2995 = vmatpush1.bf16.msra.mxu0 0
      %2996 = vmatprep.subr.bf16.mxu0 0
      %2997 = vmatpush1.bf16.msra.mxu0 0
      %2998 = vmatprep.subr.bf16.mxu0 0
      %2999 = vmatpush1.bf16.msra.mxu0 0
      %3000 = vmatprep.subr.bf16.mxu0 0
      %3001 = vmatpush1.bf16.msra.mxu0 0
      %3002 = vmatprep.subr.bf16.mxu0 0
      %3003 = vmatpush1.bf16.msra.mxu0 0
      %3004 = vmatprep.subr.bf16.mxu0 0
      %3005 = vmatpush1.bf16.msra.mxu0 0
      %3006 = vmatprep.subr.bf16.mxu0 0
      %3007 = vmatpush1.bf16.msra.mxu0 0
      %3008 = vmatprep.subr.bf16.mxu0 0
      %3009 = vmatpush1.bf16.msra.mxu0 0
      %3010 = vmatprep.subr.bf16.mxu0 0
      %3011 = vmatpush1.bf16.msra.mxu0 0
      %3012 = vmatprep.subr.bf16.mxu0 0
      %3013 = vmatpush1.bf16.msra.mxu0 0
      %3014 = vmatprep.mubr.bf16.mxu0 0
      %3015 = vmatmul.mubr.bf16.gmra.mrb[0].mxu0 %v2977
      %v3016 = vpop.f32.mrb[0].mxu0
      %v3017 = vadd.f32 0.0, %v3016
      %v3018 = vpop.f32.mrb[0].mxu0
      %v3019 = vpop.f32.mrb[0].mxu0
      %v3020 = vadd.f32 0.0, %v3019
      %v3021 = vpop.f32.mrb[0].mxu0
      %3022 = vmatprep.mubr.bf16.mxu0 0
      %3023 = vmatmul.mubr.bf16.gmra.mrb[0].mxu0 %v2980
      %v3024 = vpop.f32.mrb[0].mxu0
      %v3025 = vadd.f32 0.0, %v3024
      %v3026 = vpop.f32.mrb[0].mxu0
      %v3027 = vpop.f32.mrb[0].mxu0
      %v3028 = vadd.f32 0.0, %v3027
      %v3029 = vpop.f32.mrb[0].mxu0
      %3030 = vdwg.mxu0
      %v3032 = vsel %vm2547, %v2970, 0
      %v3035 = vsel %vm2547, %v2971, 0
      %3037 = vmatprep.subr.bf16.mxu0 0
      %3038 = vmatpush1.bf16.msra.mxu0 %v2506
      %3039 = vmatprep.subr.bf16.mxu0 0
      %3040 = vmatpush1.bf16.msra.mxu0 %v2522
      %3041 = vmatprep.subr.bf16.mxu0 0
      %3042 = vmatpush1.bf16.msra.mxu0 0
      %3043 = vmatprep.subr.bf16.mxu0 0
      %3044 = vmatpush1.bf16.msra.mxu0 0
      %3045 = vmatprep.subr.bf16.mxu0 0
      %3046 = vmatpush1.bf16.msra.mxu0 0
      %3047 = vmatprep.subr.bf16.mxu0 0
      %3048 = vmatpush1.bf16.msra.mxu0 0
      %3049 = vmatprep.subr.bf16.mxu0 0
      %3050 = vmatpush1.bf16.msra.mxu0 0
      %3051 = vmatprep.subr.bf16.mxu0 0
      %3052 = vmatpush1.bf16.msra.mxu0 0
      %3053 = vmatprep.subr.bf16.mxu0 0
      %3054 = vmatpush1.bf16.msra.mxu0 0
      %3055 = vmatprep.subr.bf16.mxu0 0
      %3056 = vmatpush1.bf16.msra.mxu0 0
      %3057 = vmatprep.subr.bf16.mxu0 0
      %3058 = vmatpush1.bf16.msra.mxu0 0
      %3059 = vmatprep.subr.bf16.mxu0 0
      %3060 = vmatpush1.bf16.msra.mxu0 0
      %3061 = vmatprep.subr.bf16.mxu0 0
      %3062 = vmatpush1.bf16.msra.mxu0 0
      %3063 = vmatprep.subr.bf16.mxu0 0
      %3064 = vmatpush1.bf16.msra.mxu0 0
      %3065 = vmatprep.subr.bf16.mxu0 0
      %3066 = vmatpush1.bf16.msra.mxu0 0
      %3067 = vmatprep.subr.bf16.mxu0 0
      %3068 = vmatpush1.bf16.msra.mxu0 0
      %3069 = vmatprep.mubr.bf16.mxu0 0
      %3070 = vmatmul.mubr.bf16.gmra.mrb[0].mxu0 %v3032
      %v3071 = vpop.f32.mrb[0].mxu0
      %v3072 = vadd.f32 0.0, %v3071
      %v3073 = vpop.f32.mrb[0].mxu0
      %v3074 = vpop.f32.mrb[0].mxu0
      %v3075 = vadd.f32 0.0, %v3074
      %v3076 = vpop.f32.mrb[0].mxu0
      %3077 = vmatprep.mubr.bf16.mxu0 0
      %3078 = vmatmul.mubr.bf16.gmra.mrb[0].mxu0 %v3035
      %v3079 = vpop.f32.mrb[0].mxu0
      %v3080 = vadd.f32 0.0, %v3079
      %v3081 = vpop.f32.mrb[0].mxu0
      %v3082 = vpop.f32.mrb[0].mxu0
      %v3083 = vadd.f32 0.0, %v3082
      %v3084 = vpop.f32.mrb[0].mxu0
      %3085 = vdwg.mxu0
      %v3087 = vsel %vm2547, %v2972, 0
      %v3090 = vsel %vm2547, %v2973, 0
      %3092 = vmatprep.subr.bf16.mxu0 0
      %3093 = vmatpush1.bf16.msra.mxu0 %v2510
      %3094 = vmatprep.subr.bf16.mxu0 0
      %3095 = vmatpush1.bf16.msra.mxu0 %v2526
      %3096 = vmatprep.subr.bf16.mxu0 0
      %3097 = vmatpush1.bf16.msra.mxu0 0
      %3098 = vmatprep.subr.bf16.mxu0 0
      %3099 = vmatpush1.bf16.msra.mxu0 0
      %3100 = vmatprep.subr.bf16.mxu0 0
      %3101 = vmatpush1.bf16.msra.mxu0 0
      %3102 = vmatprep.subr.bf16.mxu0 0
      %3103 = vmatpush1.bf16.msra.mxu0 0
      %3104 = vmatprep.subr.bf16.mxu0 0
      %3105 = vmatpush1.bf16.msra.mxu0 0
      %3106 = vmatprep.subr.bf16.mxu0 0
      %3107 = vmatpush1.bf16.msra.mxu0 0
      %3108 = vmatprep.subr.bf16.mxu0 0
      %3109 = vmatpush1.bf16.msra.mxu0 0
      %3110 = vmatprep.subr.bf16.mxu0 0
      %3111 = vmatpush1.bf16.msra.mxu0 0
      %3112 = vmatprep.subr.bf16.mxu0 0
      %3113 = vmatpush1.bf16.msra.mxu0 0
      %3114 = vmatprep.subr.bf16.mxu0 0
      %3115 = vmatpush1.bf16.msra.mxu0 0
      %3116 = vmatprep.subr.bf16.mxu0 0
      %3117 = vmatpush1.bf16.msra.mxu0 0
      %3118 = vmatprep.subr.bf16.mxu0 0
      %3119 = vmatpush1.bf16.msra.mxu0 0
      %3120 = vmatprep.subr.bf16.mxu0 0
      %3121 = vmatpush1.bf16.msra.mxu0 0
      %3122 = vmatprep.subr.bf16.mxu0 0
      %3123 = vmatpush1.bf16.msra.mxu0 0
      %3124 = vmatprep.mubr.bf16.mxu0 0
      %3125 = vmatmul.mubr.bf16.gmra.mrb[0].mxu0 %v3087
      %v3126 = vpop.f32.mrb[0].mxu0
      %v3127 = vadd.f32 0.0, %v3126
      %v3128 = vpop.f32.mrb[0].mxu0
      %v3129 = vpop.f32.mrb[0].mxu0
      %v3130 = vadd.f32 0.0, %v3129
      %v3131 = vpop.f32.mrb[0].mxu0
      %3132 = vmatprep.mubr.bf16.mxu0 0
      %3133 = vmatmul.mubr.bf16.gmra.mrb[0].mxu0 %v3090
      %v3134 = vpop.f32.mrb[0].mxu0
      %v3135 = vadd.f32 0.0, %v3134
      %v3136 = vpop.f32.mrb[0].mxu0
      %v3137 = vpop.f32.mrb[0].mxu0
      %v3138 = vadd.f32 0.0, %v3137
      %v3139 = vpop.f32.mrb[0].mxu0
      %3140 = vdwg.mxu0
      %v3142 = vsel %vm2547, %v2974, 0
      %v3145 = vsel %vm2547, %v2975, 0
      %3147 = vmatprep.subr.bf16.mxu0 0
      %3148 = vmatpush1.bf16.msra.mxu0 %v2514
      %3149 = vmatprep.subr.bf16.mxu0 0
      %3150 = vmatpush1.bf16.msra.mxu0 %v2530
      %3151 = vmatprep.subr.bf16.mxu0 0
      %3152 = vmatpush1.bf16.msra.mxu0 0
      %3153 = vmatprep.subr.bf16.mxu0 0
      %3154 = vmatpush1.bf16.msra.mxu0 0
      %3155 = vmatprep.subr.bf16.mxu0 0
      %3156 = vmatpush1.bf16.msra.mxu0 0
      %3157 = vmatprep.subr.bf16.mxu0 0
      %3158 = vmatpush1.bf16.msra.mxu0 0
      %3159 = vmatprep.subr.bf16.mxu0 0
      %3160 = vmatpush1.bf16.msra.mxu0 0
      %3161 = vmatprep.subr.bf16.mxu0 0
      %3162 = vmatpush1.bf16.msra.mxu0 0
      %3163 = vmatprep.subr.bf16.mxu0 0
      %3164 = vmatpush1.bf16.msra.mxu0 0
      %3165 = vmatprep.subr.bf16.mxu0 0
      %3166 = vmatpush1.bf16.msra.mxu0 0
      %3167 = vmatprep.subr.bf16.mxu0 0
      %3168 = vmatpush1.bf16.msra.mxu0 0
      %3169 = vmatprep.subr.bf16.mxu0 0
      %3170 = vmatpush1.bf16.msra.mxu0 0
      %3171 = vmatprep.subr.bf16.mxu0 0
      %3172 = vmatpush1.bf16.msra.mxu0 0
      %3173 = vmatprep.subr.bf16.mxu0 0
      %3174 = vmatpush1.bf16.msra.mxu0 0
      %3175 = vmatprep.subr.bf16.mxu0 0
      %3176 = vmatpush1.bf16.msra.mxu0 0
      %3177 = vmatprep.subr.bf16.mxu0 0
      %3178 = vmatpush1.bf16.msra.mxu0 0
      %3179 = vmatprep.mubr.bf16.mxu0 0
      %3180 = vmatmul.mubr.bf16.gmra.mrb[0].mxu0 %v3142
      %v3181 = vpop.f32.mrb[0].mxu0
      %v3182 = vadd.f32 0.0, %v3181
      %v3183 = vpop.f32.mrb[0].mxu0
      %v3184 = vpop.f32.mrb[0].mxu0
      %v3185 = vadd.f32 0.0, %v3184
      %v3186 = vpop.f32.mrb[0].mxu0
      %3187 = vmatprep.mubr.bf16.mxu0 0
      %3188 = vmatmul.mubr.bf16.gmra.mrb[0].mxu0 %v3145
      %v3189 = vpop.f32.mrb[0].mxu0
      %v3190 = vadd.f32 0.0, %v3189
      %v3191 = vpop.f32.mrb[0].mxu0
      %v3192 = vpop.f32.mrb[0].mxu0
      %v3193 = vadd.f32 0.0, %v3192
      %v3194 = vpop.f32.mrb[0].mxu0
      %3195 = vdwg.mxu0
      %v3196 = vpack.c.bf16 %v3020, %v3017
      %v3197 = vpack.c.bf16 %v3028, %v3025
      %v3198 = vpack.c.bf16 %v3075, %v3072
      %v3199 = vpack.c.bf16 %v3083, %v3080
      %v3200 = vpack.c.bf16 %v3130, %v3127
      %v3201 = vpack.c.bf16 %v3138, %v3135
      %v3202 = vpack.c.bf16 %v3185, %v3182
      %v3203 = vpack.c.bf16 %v3193, %v3190
      %v3206 = vpack.i.b16 %v3198, %v3196
      %v3208 = vshrl.u32 %v3196, 16
      %v3209 = vshrl.u32 %v3198, 16
      %v3210 = vpack.i.b16 %v3209, %v3208
      %v3214 = vpack.i.b16 %v3202, %v3200
      %v3216 = vshrl.u32 %v3200, 16
      %v3217 = vshrl.u32 %v3202, 16
      %v3218 = vpack.i.b16 %v3217, %v3216
      %v3222 = vpack.i.b16 %v3199, %v3197
      %v3224 = vshrl.u32 %v3197, 16
      %v3225 = vshrl.u32 %v3199, 16
      %v3226 = vpack.i.b16 %v3225, %v3224
      %v3230 = vpack.i.b16 %v3203, %v3201
      %v3232 = vshrl.u32 %v3201, 16
      %v3233 = vshrl.u32 %v3203, 16
      %v3234 = vpack.i.b16 %v3233, %v3232
      %v3236 = vcombine.high %v3206, %v947
      %v3238 = vunpack.c.l.s4 1983009808
      %v3239 = vunpack.c.0.s8 %v3238
      %v3240 = vlaneseq
      %v3241 = vshrl.u32 %v3240, 7
      %v3242 = vsub.s32 %v3239, %v3241
      %v3243 = vrot.slane %v3206, %v3242
      %v3245 = vunpack.c.l.s4 1983009808
      %v3246 = vunpack.c.0.s8 %v3245
      %v3247 = vlaneseq
      %v3248 = vshrl.u32 %v3247, 7
      %v3249 = vsub.s32 %v3246, %v3248
      %v3250 = vrot.slane %v3236, %v3249
      %v3251 = vcombine.high %v3214, %v947
      %v3253 = vunpack.c.l.s4 1983009808
      %v3254 = vunpack.c.0.s8 %v3253
      %v3255 = vlaneseq
      %v3256 = vshrl.u32 %v3255, 7
      %v3257 = vsub.s32 %v3254, %v3256
      %v3258 = vrot.slane %v3214, %v3257
      %v3260 = vunpack.c.l.s4 1983009808
      %v3261 = vunpack.c.0.s8 %v3260
      %v3262 = vlaneseq
      %v3263 = vshrl.u32 %v3262, 7
      %v3264 = vsub.s32 %v3261, %v3263
      %v3265 = vrot.slane %v3251, %v3264
      %v3266 = vcombine.low %v3243, %v3258
      %v3267 = vcombine.high %v3243, %v3258
      %v3269 = vunpack.c.l.s4 1934713408
      %v3270 = vunpack.c.0.s8 %v3269
      %v3271 = vlaneseq
      %v3272 = vshrl.u32 %v3271, 7
      %v3273 = vsub.s32 %v3270, %v3272
      %v3274 = vrot.slane %v3266, %v3273
      %v3276 = vunpack.c.l.s4 1934713408
      %v3277 = vunpack.c.0.s8 %v3276
      %v3278 = vlaneseq
      %v3279 = vshrl.u32 %v3278, 7
      %v3280 = vsub.s32 %v3277, %v3279
      %v3281 = vrot.slane %v3267, %v3280
      %v3282 = vcombine.low %v3250, %v3265
      %v3283 = vcombine.high %v3250, %v3265
      %v3285 = vunpack.c.l.s4 1934713408
      %v3286 = vunpack.c.0.s8 %v3285
      %v3287 = vlaneseq
      %v3288 = vshrl.u32 %v3287, 7
      %v3289 = vsub.s32 %v3286, %v3288
      %v3290 = vrot.slane %v3282, %v3289
      %v3292 = vunpack.c.l.s4 1934713408
      %v3293 = vunpack.c.0.s8 %v3292
      %v3294 = vlaneseq
      %v3295 = vshrl.u32 %v3294, 7
      %v3296 = vsub.s32 %v3293, %v3295
      %v3297 = vrot.slane %v3283, %v3296
      %v3298 = vcombine.high %v3274, 0
      %v3299 = vcombine.high %v3281, 0
      %v3300 = vcombine.high %v3290, 0
      %v3301 = vcombine.high %v3297, 0
      %v3302 = vcombine.high %v3210, %v950
      %v3304 = vunpack.c.l.s4 1983009808
      %v3305 = vunpack.c.0.s8 %v3304
      %v3306 = vlaneseq
      %v3307 = vshrl.u32 %v3306, 7
      %v3308 = vsub.s32 %v3305, %v3307
      %v3309 = vrot.slane %v3210, %v3308
      %v3311 = vunpack.c.l.s4 1983009808
      %v3312 = vunpack.c.0.s8 %v3311
      %v3313 = vlaneseq
      %v3314 = vshrl.u32 %v3313, 7
      %v3315 = vsub.s32 %v3312, %v3314
      %v3316 = vrot.slane %v3302, %v3315
      %v3317 = vcombine.high %v3218, %v950
      %v3319 = vunpack.c.l.s4 1983009808
      %v3320 = vunpack.c.0.s8 %v3319
      %v3321 = vlaneseq
      %v3322 = vshrl.u32 %v3321, 7
      %v3323 = vsub.s32 %v3320, %v3322
      %v3324 = vrot.slane %v3218, %v3323
      %v3326 = vunpack.c.l.s4 1983009808
      %v3327 = vunpack.c.0.s8 %v3326
      %v3328 = vlaneseq
      %v3329 = vshrl.u32 %v3328, 7
      %v3330 = vsub.s32 %v3327, %v3329
      %v3331 = vrot.slane %v3317, %v3330
      %v3332 = vcombine.low %v3309, %v3324
      %v3333 = vcombine.high %v3309, %v3324
      %v3335 = vunpack.c.l.s4 1934713408
      %v3336 = vunpack.c.0.s8 %v3335
      %v3337 = vlaneseq
      %v3338 = vshrl.u32 %v3337, 7
      %v3339 = vsub.s32 %v3336, %v3338
      %v3340 = vrot.slane %v3332, %v3339
      %v3342 = vunpack.c.l.s4 1934713408
      %v3343 = vunpack.c.0.s8 %v3342
      %v3344 = vlaneseq
      %v3345 = vshrl.u32 %v3344, 7
      %v3346 = vsub.s32 %v3343, %v3345
      %v3347 = vrot.slane %v3333, %v3346
      %v3348 = vcombine.low %v3316, %v3331
      %v3349 = vcombine.high %v3316, %v3331
      %v3351 = vunpack.c.l.s4 1934713408
      %v3352 = vunpack.c.0.s8 %v3351
      %v3353 = vlaneseq
      %v3354 = vshrl.u32 %v3353, 7
      %v3355 = vsub.s32 %v3352, %v3354
      %v3356 = vrot.slane %v3348, %v3355
      %v3358 = vunpack.c.l.s4 1934713408
      %v3359 = vunpack.c.0.s8 %v3358
      %v3360 = vlaneseq
      %v3361 = vshrl.u32 %v3360, 7
      %v3362 = vsub.s32 %v3359, %v3361
      %v3363 = vrot.slane %v3349, %v3362
      %v3364 = vcombine.high %v3340, 0
      %v3365 = vcombine.high %v3347, 0
      %v3366 = vcombine.high %v3356, 0
      %v3367 = vcombine.high %v3363, 0
      %v3368 = vcombine.high %v3222, %v947
      %v3370 = vunpack.c.l.s4 1983009808
      %v3371 = vunpack.c.0.s8 %v3370
      %v3372 = vlaneseq
      %v3373 = vshrl.u32 %v3372, 7
      %v3374 = vsub.s32 %v3371, %v3373
      %v3375 = vrot.slane %v3222, %v3374
      %v3377 = vunpack.c.l.s4 1983009808
      %v3378 = vunpack.c.0.s8 %v3377
      %v3379 = vlaneseq
      %v3380 = vshrl.u32 %v3379, 7
      %v3381 = vsub.s32 %v3378, %v3380
      %v3382 = vrot.slane %v3368, %v3381
      %v3383 = vcombine.high %v3230, %v947
      %v3385 = vunpack.c.l.s4 1983009808
      %v3386 = vunpack.c.0.s8 %v3385
      %v3387 = vlaneseq
      %v3388 = vshrl.u32 %v3387, 7
      %v3389 = vsub.s32 %v3386, %v3388
      %v3390 = vrot.slane %v3230, %v3389
      %v3392 = vunpack.c.l.s4 1983009808
      %v3393 = vunpack.c.0.s8 %v3392
      %v3394 = vlaneseq
      %v3395 = vshrl.u32 %v3394, 7
      %v3396 = vsub.s32 %v3393, %v3395
      %v3397 = vrot.slane %v3383, %v3396
      %v3398 = vcombine.low %v3375, %v3390
      %v3399 = vcombine.high %v3375, %v3390
      %v3401 = vunpack.c.l.s4 1934713408
      %v3402 = vunpack.c.0.s8 %v3401
      %v3403 = vlaneseq
      %v3404 = vshrl.u32 %v3403, 7
      %v3405 = vsub.s32 %v3402, %v3404
      %v3406 = vrot.slane %v3398, %v3405
      %v3408 = vunpack.c.l.s4 1934713408
      %v3409 = vunpack.c.0.s8 %v3408
      %v3410 = vlaneseq
      %v3411 = vshrl.u32 %v3410, 7
      %v3412 = vsub.s32 %v3409, %v3411
      %v3413 = vrot.slane %v3399, %v3412
      %v3414 = vcombine.low %v3382, %v3397
      %v3415 = vcombine.high %v3382, %v3397
      %v3417 = vunpack.c.l.s4 1934713408
      %v3418 = vunpack.c.0.s8 %v3417
      %v3419 = vlaneseq
      %v3420 = vshrl.u32 %v3419, 7
      %v3421 = vsub.s32 %v3418, %v3420
      %v3422 = vrot.slane %v3414, %v3421
      %v3424 = vunpack.c.l.s4 1934713408
      %v3425 = vunpack.c.0.s8 %v3424
      %v3426 = vlaneseq
      %v3427 = vshrl.u32 %v3426, 7
      %v3428 = vsub.s32 %v3425, %v3427
      %v3429 = vrot.slane %v3415, %v3428
      %v3430 = vcombine.high %v3406, 0
      %v3431 = vcombine.high %v3413, 0
      %v3432 = vcombine.high %v3422, 0
      %v3433 = vcombine.high %v3429, 0
      %v3434 = vcombine.high %v3226, %v950
      %v3436 = vunpack.c.l.s4 1983009808
      %v3437 = vunpack.c.0.s8 %v3436
      %v3438 = vlaneseq
      %v3439 = vshrl.u32 %v3438, 7
      %v3440 = vsub.s32 %v3437, %v3439
      %v3441 = vrot.slane %v3226, %v3440
      %v3443 = vunpack.c.l.s4 1983009808
      %v3444 = vunpack.c.0.s8 %v3443
      %v3445 = vlaneseq
      %v3446 = vshrl.u32 %v3445, 7
      %v3447 = vsub.s32 %v3444, %v3446
      %v3448 = vrot.slane %v3434, %v3447
      %v3449 = vcombine.high %v3234, %v950
      %v3451 = vunpack.c.l.s4 1983009808
      %v3452 = vunpack.c.0.s8 %v3451
      %v3453 = vlaneseq
      %v3454 = vshrl.u32 %v3453, 7
      %v3455 = vsub.s32 %v3452, %v3454
      %v3456 = vrot.slane %v3234, %v3455
      %v3458 = vunpack.c.l.s4 1983009808
      %v3459 = vunpack.c.0.s8 %v3458
      %v3460 = vlaneseq
      %v3461 = vshrl.u32 %v3460, 7
      %v3462 = vsub.s32 %v3459, %v3461
      %v3463 = vrot.slane %v3449, %v3462
      %v3464 = vcombine.low %v3441, %v3456
      %v3465 = vcombine.high %v3441, %v3456
      %v3467 = vunpack.c.l.s4 1934713408
      %v3468 = vunpack.c.0.s8 %v3467
      %v3469 = vlaneseq
      %v3470 = vshrl.u32 %v3469, 7
      %v3471 = vsub.s32 %v3468, %v3470
      %v3472 = vrot.slane %v3464, %v3471
      %v3474 = vunpack.c.l.s4 1934713408
      %v3475 = vunpack.c.0.s8 %v3474
      %v3476 = vlaneseq
      %v3477 = vshrl.u32 %v3476, 7
      %v3478 = vsub.s32 %v3475, %v3477
      %v3479 = vrot.slane %v3465, %v3478
      %v3480 = vcombine.low %v3448, %v3463
      %v3481 = vcombine.high %v3448, %v3463
      %v3483 = vunpack.c.l.s4 1934713408
      %v3484 = vunpack.c.0.s8 %v3483
      %v3485 = vlaneseq
      %v3486 = vshrl.u32 %v3485, 7
      %v3487 = vsub.s32 %v3484, %v3486
      %v3488 = vrot.slane %v3480, %v3487
      %v3490 = vunpack.c.l.s4 1934713408
      %v3491 = vunpack.c.0.s8 %v3490
      %v3492 = vlaneseq
      %v3493 = vshrl.u32 %v3492, 7
      %v3494 = vsub.s32 %v3491, %v3493
      %v3495 = vrot.slane %v3481, %v3494
      %v3496 = vcombine.high %v3472, 0
      %v3497 = vcombine.high %v3479, 0
      %v3498 = vcombine.high %v3488, 0
      %v3499 = vcombine.high %v3495, 0
      %v3500 = vcombine.low %v3274, %v3281
      %v3502 = vunpack.c.l.s4 1983009808
      %v3503 = vunpack.c.0.s8 %v3502
      %v3504 = vlaneseq
      %v3505 = vshrl.u32 %v3504, 7
      %v3506 = vsub.s32 %v3503, %v3505
      %v3507 = vrot.slane %v3500, %v3506
      %v3508 = vcombine.low %v3298, %v3299
      %v3510 = vunpack.c.l.s4 1983009808
      %v3511 = vunpack.c.0.s8 %v3510
      %v3512 = vlaneseq
      %v3513 = vshrl.u32 %v3512, 7
      %v3514 = vsub.s32 %v3511, %v3513
      %v3515 = vrot.slane %v3508, %v3514
      %v3516 = vcombine.low %v3290, %v3297
      %v3518 = vunpack.c.l.s4 1983009808
      %v3519 = vunpack.c.0.s8 %v3518
      %v3520 = vlaneseq
      %v3521 = vshrl.u32 %v3520, 7
      %v3522 = vsub.s32 %v3519, %v3521
      %v3523 = vrot.slane %v3516, %v3522
      %v3524 = vcombine.low %v3300, %v3301
      %v3526 = vunpack.c.l.s4 1983009808
      %v3527 = vunpack.c.0.s8 %v3526
      %v3528 = vlaneseq
      %v3529 = vshrl.u32 %v3528, 7
      %v3530 = vsub.s32 %v3527, %v3529
      %v3531 = vrot.slane %v3524, %v3530
      %v3532 = vcombine.low %v3507, %v3515
      %v3534 = vunpack.c.l.s4 1934713408
      %v3535 = vunpack.c.0.s8 %v3534
      %v3536 = vlaneseq
      %v3537 = vshrl.u32 %v3536, 7
      %v3538 = vsub.s32 %v3535, %v3537
      %v3539 = vrot.slane %v3532, %v3538
      %v3540 = vcombine.low %v3523, %v3531
      %v3542 = vunpack.c.l.s4 1934713408
      %v3543 = vunpack.c.0.s8 %v3542
      %v3544 = vlaneseq
      %v3545 = vshrl.u32 %v3544, 7
      %v3546 = vsub.s32 %v3543, %v3545
      %v3547 = vrot.slane %v3540, %v3546
      %v3548 = vcombine.low %v3539, %v3547
      %v3549 = vcombine.high %v3539, %v3547
      %v3550 = vcombine.low %v3340, %v3347
      %v3552 = vunpack.c.l.s4 1983009808
      %v3553 = vunpack.c.0.s8 %v3552
      %v3554 = vlaneseq
      %v3555 = vshrl.u32 %v3554, 7
      %v3556 = vsub.s32 %v3553, %v3555
      %v3557 = vrot.slane %v3550, %v3556
      %v3558 = vcombine.low %v3364, %v3365
      %v3560 = vunpack.c.l.s4 1983009808
      %v3561 = vunpack.c.0.s8 %v3560
      %v3562 = vlaneseq
      %v3563 = vshrl.u32 %v3562, 7
      %v3564 = vsub.s32 %v3561, %v3563
      %v3565 = vrot.slane %v3558, %v3564
      %v3566 = vcombine.low %v3356, %v3363
      %v3568 = vunpack.c.l.s4 1983009808
      %v3569 = vunpack.c.0.s8 %v3568
      %v3570 = vlaneseq
      %v3571 = vshrl.u32 %v3570, 7
      %v3572 = vsub.s32 %v3569, %v3571
      %v3573 = vrot.slane %v3566, %v3572
      %v3574 = vcombine.low %v3366, %v3367
      %v3576 = vunpack.c.l.s4 1983009808
      %v3577 = vunpack.c.0.s8 %v3576
      %v3578 = vlaneseq
      %v3579 = vshrl.u32 %v3578, 7
      %v3580 = vsub.s32 %v3577, %v3579
      %v3581 = vrot.slane %v3574, %v3580
      %v3582 = vcombine.low %v3557, %v3565
      %v3584 = vunpack.c.l.s4 1934713408
      %v3585 = vunpack.c.0.s8 %v3584
      %v3586 = vlaneseq
      %v3587 = vshrl.u32 %v3586, 7
      %v3588 = vsub.s32 %v3585, %v3587
      %v3589 = vrot.slane %v3582, %v3588
      %v3590 = vcombine.low %v3573, %v3581
      %v3592 = vunpack.c.l.s4 1934713408
      %v3593 = vunpack.c.0.s8 %v3592
      %v3594 = vlaneseq
      %v3595 = vshrl.u32 %v3594, 7
      %v3596 = vsub.s32 %v3593, %v3595
      %v3597 = vrot.slane %v3590, %v3596
      %v3598 = vcombine.low %v3589, %v3597
      %v3599 = vcombine.high %v3589, %v3597
      %v3600 = vcombine.low %v3406, %v3413
      %v3602 = vunpack.c.l.s4 1983009808
      %v3603 = vunpack.c.0.s8 %v3602
      %v3604 = vlaneseq
      %v3605 = vshrl.u32 %v3604, 7
      %v3606 = vsub.s32 %v3603, %v3605
      %v3607 = vrot.slane %v3600, %v3606
      %v3608 = vcombine.low %v3430, %v3431
      %v3610 = vunpack.c.l.s4 1983009808
      %v3611 = vunpack.c.0.s8 %v3610
      %v3612 = vlaneseq
      %v3613 = vshrl.u32 %v3612, 7
      %v3614 = vsub.s32 %v3611, %v3613
      %v3615 = vrot.slane %v3608, %v3614
      %v3616 = vcombine.low %v3422, %v3429
      %v3618 = vunpack.c.l.s4 1983009808
      %v3619 = vunpack.c.0.s8 %v3618
      %v3620 = vlaneseq
      %v3621 = vshrl.u32 %v3620, 7
      %v3622 = vsub.s32 %v3619, %v3621
      %v3623 = vrot.slane %v3616, %v3622
      %v3624 = vcombine.low %v3432, %v3433
      %v3626 = vunpack.c.l.s4 1983009808
      %v3627 = vunpack.c.0.s8 %v3626
      %v3628 = vlaneseq
      %v3629 = vshrl.u32 %v3628, 7
      %v3630 = vsub.s32 %v3627, %v3629
      %v3631 = vrot.slane %v3624, %v3630
      %v3632 = vcombine.low %v3607, %v3615
      %v3634 = vunpack.c.l.s4 1934713408
      %v3635 = vunpack.c.0.s8 %v3634
      %v3636 = vlaneseq
      %v3637 = vshrl.u32 %v3636, 7
      %v3638 = vsub.s32 %v3635, %v3637
      %v3639 = vrot.slane %v3632, %v3638
      %v3640 = vcombine.low %v3623, %v3631
      %v3642 = vunpack.c.l.s4 1934713408
      %v3643 = vunpack.c.0.s8 %v3642
      %v3644 = vlaneseq
      %v3645 = vshrl.u32 %v3644, 7
      %v3646 = vsub.s32 %v3643, %v3645
      %v3647 = vrot.slane %v3640, %v3646
      %v3648 = vcombine.low %v3639, %v3647
      %v3649 = vcombine.high %v3639, %v3647
      %v3650 = vcombine.low %v3472, %v3479
      %v3652 = vunpack.c.l.s4 1983009808
      %v3653 = vunpack.c.0.s8 %v3652
      %v3654 = vlaneseq
      %v3655 = vshrl.u32 %v3654, 7
      %v3656 = vsub.s32 %v3653, %v3655
      %v3657 = vrot.slane %v3650, %v3656
      %v3658 = vcombine.low %v3496, %v3497
      %v3660 = vunpack.c.l.s4 1983009808
      %v3661 = vunpack.c.0.s8 %v3660
      %v3662 = vlaneseq
      %v3663 = vshrl.u32 %v3662, 7
      %v3664 = vsub.s32 %v3661, %v3663
      %v3665 = vrot.slane %v3658, %v3664
      %v3666 = vcombine.low %v3488, %v3495
      %v3668 = vunpack.c.l.s4 1983009808
      %v3669 = vunpack.c.0.s8 %v3668
      %v3670 = vlaneseq
      %v3671 = vshrl.u32 %v3670, 7
      %v3672 = vsub.s32 %v3669, %v3671
      %v3673 = vrot.slane %v3666, %v3672
      %v3674 = vcombine.low %v3498, %v3499
      %v3676 = vunpack.c.l.s4 1983009808
      %v3677 = vunpack.c.0.s8 %v3676
      %v3678 = vlaneseq
      %v3679 = vshrl.u32 %v3678, 7
      %v3680 = vsub.s32 %v3677, %v3679
      %v3681 = vrot.slane %v3674, %v3680
      %v3682 = vcombine.low %v3657, %v3665
      %v3684 = vunpack.c.l.s4 1934713408
      %v3685 = vunpack.c.0.s8 %v3684
      %v3686 = vlaneseq
      %v3687 = vshrl.u32 %v3686, 7
      %v3688 = vsub.s32 %v3685, %v3687
      %v3689 = vrot.slane %v3682, %v3688
      %v3690 = vcombine.low %v3673, %v3681
      %v3692 = vunpack.c.l.s4 1934713408
      %v3693 = vunpack.c.0.s8 %v3692
      %v3694 = vlaneseq
      %v3695 = vshrl.u32 %v3694, 7
      %v3696 = vsub.s32 %v3693, %v3695
      %v3697 = vrot.slane %v3690, %v3696
      %v3698 = vcombine.low %v3689, %v3697
      %v3699 = vcombine.high %v3689, %v3697
      %v3702 = vpack.i.b16 %v3598, %v3548
      %v3703 = vshrl.u32 %v3548, 16
      %v3704 = vshrl.u32 %v3598, 16
      %v3705 = vpack.i.b16 %v3704, %v3703
      %v3708 = vpack.i.b16 %v3599, %v3549
      %v3709 = vshrl.u32 %v3549, 16
      %v3710 = vshrl.u32 %v3599, 16
      %v3711 = vpack.i.b16 %v3710, %v3709
      %v3714 = vpack.i.b16 %v3698, %v3648
      %v3715 = vshrl.u32 %v3648, 16
      %v3716 = vshrl.u32 %v3698, 16
      %v3717 = vpack.i.b16 %v3716, %v3715
      %v3720 = vpack.i.b16 %v3699, %v3649
      %v3721 = vshrl.u32 %v3649, 16
      %v3722 = vshrl.u32 %v3699, 16
      %v3723 = vpack.i.b16 %v3722, %v3721
      %3724 = vrot.lane.b32.xlu0 %v3705, 32
      %v3725 = vpop.permute.xlu0 %3724
      %3726 = vrot.lane.b32.xlu0 %v3717, 32
      %v3727 = vpop.permute.xlu0 %3726
      %3728 = vrot.lane.b32.xlu0 %v3708, 64
      %v3729 = vpop.permute.xlu0 %3728
      %3730 = vrot.lane.b32.xlu0 %v3720, 64
      %v3731 = vpop.permute.xlu0 %3730
      %3732 = vrot.lane.b32.xlu0 %v3711, 96
      %v3733 = vpop.permute.xlu0 %3732
      %3734 = vrot.lane.b32.xlu0 %v3723, 96
      %v3735 = vpop.permute.xlu0 %3734
      %v3738 = vsel %vm2547, %v3702, %v3725
      %v3741 = vsel %vm2547, %v3714, %v3727
      %vm3742 = vcmask 523264
      %v3744 = vsel %vm3742, %v3738, %v3729
      %v3746 = vsel %vm3742, %v3741, %v3731
      %vm3747 = vcmask 785408
      %v3749 = vsel %vm3747, %v3744, %v3733
      %v3752 = vsel %vm3747, %v3746, %v3735
      %s3754 = smul.u32 %s34, 16
      %s3755 = smul.addr %s3754, 4
      %s3756 = scalar_lea.vmem %s4, %s3755
      %v3757 = vld [vmem:[%s3756] sm:$0xf]
      %v3758 = vld [vmem:[%s3756 + $0x4] sm:$0xf]
      %v3759 = vld [vmem:[%s3756 + $0x8] sm:$0xf]
      %v3760 = vld [vmem:[%s3756 + $0xc] sm:$0xf]
      %v3761 = vld [vmem:[%s3756 + $0x10] sm:$0xf]
      %v3762 = vld [vmem:[%s3756 + $0x14] sm:$0xf]
      %v3763 = vld [vmem:[%s3756 + $0x18] sm:$0xf]
      %v3764 = vld [vmem:[%s3756 + $0x1c] sm:$0xf]
      %v3765 = vld [vmem:[%s3756 + $0x20] sm:$0xf]
      %v3766 = vld [vmem:[%s3756 + $0x24] sm:$0xf]
      %v3767 = vld [vmem:[%s3756 + $0x28] sm:$0xf]
      %v3768 = vld [vmem:[%s3756 + $0x2c] sm:$0xf]
      %v3769 = vld [vmem:[%s3756 + $0x30] sm:$0xf]
      %v3770 = vld [vmem:[%s3756 + $0x34] sm:$0xf]
      %v3771 = vld [vmem:[%s3756 + $0x38] sm:$0xf]
      %v3772 = vld [vmem:[%s3756 + $0x3c] sm:$0xf]
      %s3773 = scalar_lea.vmem %s5, %s34
      %v3774 = vld [vmem:[%s3773] sm:$0x1]
      %v3776 = vlaneseq
      %v3777 = vshrl.u32 %v3776, 7
      %v3778 = vsub.s32 0, %v3777
      %v3779 = vrot.slane %v3774, %v3778
      %v3797 = vunpack.c.l.b16 %v3757
      %v3798 = vunpack.c.l.b16 %v3758
      %v3799 = vunpack.c.l.b16 %v3759
      %v3800 = vunpack.c.l.b16 %v3760
      %v3801 = vunpack.c.l.b16 %v3761
      %v3802 = vunpack.c.l.b16 %v3762
      %v3803 = vunpack.c.l.b16 %v3763
      %v3804 = vunpack.c.l.b16 %v3764
      %v3805 = vunpack.c.l.b16 %v3765
      %v3806 = vunpack.c.l.b16 %v3766
      %v3807 = vunpack.c.l.b16 %v3767
      %v3808 = vunpack.c.l.b16 %v3768
      %v3809 = vunpack.c.l.b16 %v3769
      %v3810 = vunpack.c.l.b16 %v3770
      %v3811 = vunpack.c.l.b16 %v3771
      %v3812 = vunpack.c.l.b16 %v3772
      %v3813 = vpack.c.b16 %v3798, %v3797
      %v3814 = vpack.c.b16 %v3800, %v3799
      %v3815 = vpack.c.b16 %v3802, %v3801
      %v3816 = vpack.c.b16 %v3804, %v3803
      %v3817 = vpack.c.b16 %v3806, %v3805
      %v3818 = vpack.c.b16 %v3808, %v3807
      %v3819 = vpack.c.b16 %v3810, %v3809
      %v3820 = vpack.c.b16 %v3812, %v3811
      %3829 = vmatprep.subr.bf16.mxu0 0
      %3830 = vmatpush1.bf16.msra.mxu0 %v3813
      %3831 = vmatprep.subr.bf16.mxu0 0
      %3832 = vmatpush1.bf16.msra.mxu0 %v3814
      %3833 = vmatprep.subr.bf16.mxu0 0
      %3834 = vmatpush1.bf16.msra.mxu0 %v3815
      %3835 = vmatprep.subr.bf16.mxu0 0
      %3836 = vmatpush1.bf16.msra.mxu0 %v3816
      %3837 = vmatprep.subr.bf16.mxu0 0
      %3838 = vmatpush1.bf16.msra.mxu0 %v3817
      %3839 = vmatprep.subr.bf16.mxu0 0
      %3840 = vmatpush1.bf16.msra.mxu0 %v3818
      %3841 = vmatprep.subr.bf16.mxu0 0
      %3842 = vmatpush1.bf16.msra.mxu0 %v3819
      %3843 = vmatprep.subr.bf16.mxu0 0
      %3844 = vmatpush1.bf16.msra.mxu0 %v3820
      %3845 = vmatprep.subr.bf16.mxu0 0
      %3846 = vmatpush1.bf16.msra.mxu0 0
      %3847 = vmatprep.subr.bf16.mxu0 0
      %3848 = vmatpush1.bf16.msra.mxu0 0
      %3849 = vmatprep.subr.bf16.mxu0 0
      %3850 = vmatpush1.bf16.msra.mxu0 0
      %3851 = vmatprep.subr.bf16.mxu0 0
      %3852 = vmatpush1.bf16.msra.mxu0 0
      %3853 = vmatprep.subr.bf16.mxu0 0
      %3854 = vmatpush1.bf16.msra.mxu0 0
      %3855 = vmatprep.subr.bf16.mxu0 0
      %3856 = vmatpush1.bf16.msra.mxu0 0
      %3857 = vmatprep.subr.bf16.mxu0 0
      %3858 = vmatpush1.bf16.msra.mxu0 0
      %3859 = vmatprep.subr.bf16.mxu0 0
      %3860 = vmatpush1.bf16.msra.mxu0 0
      %3861 = vmatprep.mubr.bf16.mxu0 0
      %3862 = vmatmul.mubr.bf16.gmra.mrb[0].mxu0 %v3749
      %v3863 = vpop.f32.mrb[0].mxu0
      %v3864 = vadd.f32 %v3779, %v3863
      %v3865 = vpop.f32.mrb[0].mxu0
      %v3866 = vpop.f32.mrb[0].mxu0
      %v3867 = vadd.f32 %v3779, %v3866
      %v3868 = vpop.f32.mrb[0].mxu0
      %3869 = vmatprep.mubr.bf16.mxu0 0
      %3870 = vmatmul.mubr.bf16.gmra.mrb[0].mxu0 %v3752
      %v3871 = vpop.f32.mrb[0].mxu0
      %v3872 = vadd.f32 %v3779, %v3871
      %v3873 = vpop.f32.mrb[0].mxu0
      %v3874 = vpop.f32.mrb[0].mxu0
      %v3875 = vadd.f32 %v3779, %v3874
      %v3876 = vpop.f32.mrb[0].mxu0
      %3877 = vdwg.mxu0
      %v3878 = vadd.f32 %v3864, %v570
      %v3879 = vadd.f32 %v3867, %v571
      %v3880 = vadd.f32 %v3872, %v572
      %v3881 = vadd.f32 %v3875, %v573
      %s3882 = scalar_lea.vmem %s6, %s34
      %v3883 = vld [vmem:[%s3882] sm:$0x1]
      %s3884 = scalar_lea.vmem %s7, %s34
      %v3885 = vld [vmem:[%s3884] sm:$0x1]
      %3886 = vadd.xlane.f32.xlu0 %v3878
      %v3887 = vpop.xlane.xlu0 %3886
      %3888 = vadd.xlane.f32.xlu0 %v3879
      %v3889 = vpop.xlane.xlu0 %3888
      %3890 = vadd.xlane.f32.xlu0 %v3880
      %v3891 = vpop.xlane.xlu0 %3890
      %3892 = vadd.xlane.f32.xlu0 %v3881
      %v3893 = vpop.xlane.xlu0 %3892
      %v3894 = vmul.f32 %v3887, %v586
      %v3895 = vmul.f32 %v3889, %v586
      %v3896 = vmul.f32 %v3891, %v586
      %v3897 = vmul.f32 %v3893, %v586
      %v3898 = vsub.f32 %v3878, %v3894
      %v3899 = vsub.f32 %v3879, %v3895
      %v3900 = vsub.f32 %v3880, %v3896
      %v3901 = vsub.f32 %v3881, %v3897
      %v3902 = vmul.f32 %v3898, %v3898
      %v3903 = vmul.f32 %v3899, %v3899
      %v3904 = vmul.f32 %v3900, %v3900
      %v3905 = vmul.f32 %v3901, %v3901
      %3906 = vadd.xlane.f32.xlu0 %v3902
      %v3907 = vpop.xlane.xlu0 %3906
      %3908 = vadd.xlane.f32.xlu0 %v3903
      %v3909 = vpop.xlane.xlu0 %3908
      %3910 = vadd.xlane.f32.xlu0 %v3904
      %v3911 = vpop.xlane.xlu0 %3910
      %3912 = vadd.xlane.f32.xlu0 %v3905
      %v3913 = vpop.xlane.xlu0 %3912
      %v3914 = vmul.f32 %v3907, %v586
      %v3915 = vmul.f32 %v3909, %v586
      %v3916 = vmul.f32 %v3911, %v586
      %v3917 = vmul.f32 %v3913, %v586
      %v3919 = vlaneseq
      %v3920 = vshrl.u32 %v3919, 7
      %v3921 = vsub.s32 0, %v3920
      %v3922 = vrot.slane %v3883, %v3921
      %v3924 = vmul.f32 %v3922, %v3898
      %v3925 = vmul.f32 %v3922, %v3899
      %v3926 = vmul.f32 %v3922, %v3900
      %v3927 = vmul.f32 %v3922, %v3901
      %v3928 = vadd.f32 %v3914, 1e-05
      %v3929 = vadd.f32 %v3915, 1e-05
      %v3930 = vadd.f32 %v3916, 1e-05
      %v3931 = vadd.f32 %v3917, 1e-05
      %v3932 = vrsqrt.pop %v3928
      %v3933 = vrsqrt.pop %v3929
      %v3934 = vrsqrt.pop %v3930
      %v3935 = vrsqrt.pop %v3931
      %v3936 = vmul.f32 %v3924, %v3932
      %v3937 = vmul.f32 %v3925, %v3933
      %v3938 = vmul.f32 %v3926, %v3934
      %v3939 = vmul.f32 %v3927, %v3935
      %v3941 = vlaneseq
      %v3942 = vshrl.u32 %v3941, 7
      %v3943 = vsub.s32 0, %v3942
      %v3944 = vrot.slane %v3885, %v3943
      %v3946 = vadd.f32 %v3936, %v3944
      %v3947 = vadd.f32 %v3937, %v3944
      %v3948 = vadd.f32 %v3938, %v3944
      %v3949 = vadd.f32 %v3939, %v3944
      %v3950 = vpack.c.bf16 %v3947, %v3946
      %v3951 = vpack.c.bf16 %v3949, %v3948
      %s3952 = smul.u32 %s34, 64
      %s3953 = smul.addr %s3952, 4
      %s3954 = scalar_lea.vmem %s8, %s3953
      %v3955 = vld [vmem:[%s3954] sm:$0xff]
      %v3956 = vld [vmem:[%s3954 + $0x8] sm:$0xff]
      %v3957 = vld [vmem:[%s3954 + $0x10] sm:$0xff]
      %v3958 = vld [vmem:[%s3954 + $0x18] sm:$0xff]
      %v3959 = vld [vmem:[%s3954 + $0x20] sm:$0xff]
      %v3960 = vld [vmem:[%s3954 + $0x28] sm:$0xff]
      %v3961 = vld [vmem:[%s3954 + $0x30] sm:$0xff]
      %v3962 = vld [vmem:[%s3954 + $0x38] sm:$0xff]
      %v3963 = vld [vmem:[%s3954 + $0x40] sm:$0xff]
      %v3964 = vld [vmem:[%s3954 + $0x48] sm:$0xff]
      %v3965 = vld [vmem:[%s3954 + $0x50] sm:$0xff]
      %v3966 = vld [vmem:[%s3954 + $0x58] sm:$0xff]
      %v3967 = vld [vmem:[%s3954 + $0x60] sm:$0xff]
      %v3968 = vld [vmem:[%s3954 + $0x68] sm:$0xff]
      %v3969 = vld [vmem:[%s3954 + $0x70] sm:$0xff]
      %v3970 = vld [vmem:[%s3954 + $0x78] sm:$0xff]
      %v3971 = vld [vmem:[%s3954 + $0x80] sm:$0xff]
      %v3972 = vld [vmem:[%s3954 + $0x88] sm:$0xff]
      %v3973 = vld [vmem:[%s3954 + $0x90] sm:$0xff]
      %v3974 = vld [vmem:[%s3954 + $0x98] sm:$0xff]
      %v3975 = vld [vmem:[%s3954 + $0xa0] sm:$0xff]
      %v3976 = vld [vmem:[%s3954 + $0xa8] sm:$0xff]
      %v3977 = vld [vmem:[%s3954 + $0xb0] sm:$0xff]
      %v3978 = vld [vmem:[%s3954 + $0xb8] sm:$0xff]
      %v3979 = vld [vmem:[%s3954 + $0xc0] sm:$0xff]
      %v3980 = vld [vmem:[%s3954 + $0xc8] sm:$0xff]
      %v3981 = vld [vmem:[%s3954 + $0xd0] sm:$0xff]
      %v3982 = vld [vmem:[%s3954 + $0xd8] sm:$0xff]
      %v3983 = vld [vmem:[%s3954 + $0xe0] sm:$0xff]
      %v3984 = vld [vmem:[%s3954 + $0xe8] sm:$0xff]
      %v3985 = vld [vmem:[%s3954 + $0xf0] sm:$0xff]
      %v3986 = vld [vmem:[%s3954 + $0xf8] sm:$0xff]
      %s3987 = smul.u32 %s34, 4
      %s3988 = scalar_lea.vmem %s9, %s3987
      %v3989 = vld [vmem:[%s3988] sm:$0xf]
      %v3991 = vlaneseq
      %v3992 = vshrl.u32 %v3991, 7
      %v3993 = vsub.s32 0, %v3992
      %v3994 = vrot.slane %v3989, %v3993
      %v3995 = vlaneseq
      %v3996 = vshrl.u32 %v3995, 7
      %v3997 = vsub.s32 1, %v3996
      %v3998 = vrot.slane %v3989, %v3997
      %v3999 = vlaneseq
      %v4000 = vshrl.u32 %v3999, 7
      %v4001 = vsub.s32 2, %v4000
      %v4002 = vrot.slane %v3989, %v4001
      %v4003 = vlaneseq
      %v4004 = vshrl.u32 %v4003, 7
      %v4005 = vsub.s32 3, %v4004
      %v4006 = vrot.slane %v3989, %v4005
      %v4043 = vunpack.c.l.b16 %v3955
      %v4044 = vunpack.c.h.b16 %v3955
      %v4045 = vunpack.c.l.b16 %v3956
      %v4046 = vunpack.c.h.b16 %v3956
      %v4047 = vunpack.c.l.b16 %v3957
      %v4048 = vunpack.c.h.b16 %v3957
      %v4049 = vunpack.c.l.b16 %v3958
      %v4050 = vunpack.c.h.b16 %v3958
      %v4051 = vunpack.c.l.b16 %v3959
      %v4052 = vunpack.c.h.b16 %v3959
      %v4053 = vunpack.c.l.b16 %v3960
      %v4054 = vunpack.c.h.b16 %v3960
      %v4055 = vunpack.c.l.b16 %v3961
      %v4056 = vunpack.c.h.b16 %v3961
      %v4057 = vunpack.c.l.b16 %v3962
      %v4058 = vunpack.c.h.b16 %v3962
      %v4059 = vunpack.c.l.b16 %v3963
      %v4060 = vunpack.c.h.b16 %v3963
      %v4061 = vunpack.c.l.b16 %v3964
      %v4062 = vunpack.c.h.b16 %v3964
      %v4063 = vunpack.c.l.b16 %v3965
      %v4064 = vunpack.c.h.b16 %v3965
      %v4065 = vunpack.c.l.b16 %v3966
      %v4066 = vunpack.c.h.b16 %v3966
      %v4067 = vunpack.c.l.b16 %v3967
      %v4068 = vunpack.c.h.b16 %v3967
      %v4069 = vunpack.c.l.b16 %v3968
      %v4070 = vunpack.c.h.b16 %v3968
      %v4071 = vunpack.c.l.b16 %v3969
      %v4072 = vunpack.c.h.b16 %v3969
      %v4073 = vunpack.c.l.b16 %v3970
      %v4074 = vunpack.c.h.b16 %v3970
      %v4075 = vunpack.c.l.b16 %v3971
      %v4076 = vunpack.c.h.b16 %v3971
      %v4077 = vunpack.c.l.b16 %v3972
      %v4078 = vunpack.c.h.b16 %v3972
      %v4079 = vunpack.c.l.b16 %v3973
      %v4080 = vunpack.c.h.b16 %v3973
      %v4081 = vunpack.c.l.b16 %v3974
      %v4082 = vunpack.c.h.b16 %v3974
      %v4083 = vunpack.c.l.b16 %v3975
      %v4084 = vunpack.c.h.b16 %v3975
      %v4085 = vunpack.c.l.b16 %v3976
      %v4086 = vunpack.c.h.b16 %v3976
      %v4087 = vunpack.c.l.b16 %v3977
      %v4088 = vunpack.c.h.b16 %v3977
      %v4089 = vunpack.c.l.b16 %v3978
      %v4090 = vunpack.c.h.b16 %v3978
      %v4091 = vunpack.c.l.b16 %v3979
      %v4092 = vunpack.c.h.b16 %v3979
      %v4093 = vunpack.c.l.b16 %v3980
      %v4094 = vunpack.c.h.b16 %v3980
      %v4095 = vunpack.c.l.b16 %v3981
      %v4096 = vunpack.c.h.b16 %v3981
      %v4097 = vunpack.c.l.b16 %v3982
      %v4098 = vunpack.c.h.b16 %v3982
      %v4099 = vunpack.c.l.b16 %v3983
      %v4100 = vunpack.c.h.b16 %v3983
      %v4101 = vunpack.c.l.b16 %v3984
      %v4102 = vunpack.c.h.b16 %v3984
      %v4103 = vunpack.c.l.b16 %v3985
      %v4104 = vunpack.c.h.b16 %v3985
      %v4105 = vunpack.c.l.b16 %v3986
      %v4106 = vunpack.c.h.b16 %v3986
      %v4107 = vpack.c.b16 %v4047, %v4043
      %v4108 = vpack.c.b16 %v4048, %v4044
      %v4109 = vpack.c.b16 %v4049, %v4045
      %v4110 = vpack.c.b16 %v4050, %v4046
      %v4111 = vpack.c.b16 %v4055, %v4051
      %v4112 = vpack.c.b16 %v4056, %v4052
      %v4113 = vpack.c.b16 %v4057, %v4053
      %v4114 = vpack.c.b16 %v4058, %v4054
      %v4115 = vpack.c.b16 %v4063, %v4059
      %v4116 = vpack.c.b16 %v4064, %v4060
      %v4117 = vpack.c.b16 %v4065, %v4061
      %v4118 = vpack.c.b16 %v4066, %v4062
      %v4119 = vpack.c.b16 %v4071, %v4067
      %v4120 = vpack.c.b16 %v4072, %v4068
      %v4121 = vpack.c.b16 %v4073, %v4069
      %v4122 = vpack.c.b16 %v4074, %v4070
      %v4123 = vpack.c.b16 %v4079, %v4075
      %v4124 = vpack.c.b16 %v4080, %v4076
      %v4125 = vpack.c.b16 %v4081, %v4077
      %v4126 = vpack.c.b16 %v4082, %v4078
      %v4127 = vpack.c.b16 %v4087, %v4083
      %v4128 = vpack.c.b16 %v4088, %v4084
      %v4129 = vpack.c.b16 %v4089, %v4085
      %v4130 = vpack.c.b16 %v4090, %v4086
      %v4131 = vpack.c.b16 %v4095, %v4091
      %v4132 = vpack.c.b16 %v4096, %v4092
      %v4133 = vpack.c.b16 %v4097, %v4093
      %v4134 = vpack.c.b16 %v4098, %v4094
      %v4135 = vpack.c.b16 %v4103, %v4099
      %v4136 = vpack.c.b16 %v4104, %v4100
      %v4137 = vpack.c.b16 %v4105, %v4101
      %v4138 = vpack.c.b16 %v4106, %v4102
      %4171 = vmatprep.subr.bf16.mxu0 %v4108
      %4172 = vmatpush1.bf16.msra.mxu0 %v4107
      %4173 = vmatprep.subr.bf16.mxu0 %v4112
      %4174 = vmatpush1.bf16.msra.mxu0 %v4111
      %4175 = vmatprep.subr.bf16.mxu0 %v4116
      %4176 = vmatpush1.bf16.msra.mxu0 %v4115
      %4177 = vmatprep.subr.bf16.mxu0 %v4120
      %4178 = vmatpush1.bf16.msra.mxu0 %v4119
      %4179 = vmatprep.subr.bf16.mxu0 %v4124
      %4180 = vmatpush1.bf16.msra.mxu0 %v4123
      %4181 = vmatprep.subr.bf16.mxu0 %v4128
      %4182 = vmatpush1.bf16.msra.mxu0 %v4127
      %4183 = vmatprep.subr.bf16.mxu0 %v4132
      %4184 = vmatpush1.bf16.msra.mxu0 %v4131
      %4185 = vmatprep.subr.bf16.mxu0 %v4136
      %4186 = vmatpush1.bf16.msra.mxu0 %v4135
      %4187 = vmatprep.subr.bf16.mxu0 0
      %4188 = vmatpush1.bf16.msra.mxu0 0
      %4189 = vmatprep.subr.bf16.mxu0 0
      %4190 = vmatpush1.bf16.msra.mxu0 0
      %4191 = vmatprep.subr.bf16.mxu0 0
      %4192 = vmatpush1.bf16.msra.mxu0 0
      %4193 = vmatprep.subr.bf16.mxu0 0
      %4194 = vmatpush1.bf16.msra.mxu0 0
      %4195 = vmatprep.subr.bf16.mxu0 0
      %4196 = vmatpush1.bf16.msra.mxu0 0
      %4197 = vmatprep.subr.bf16.mxu0 0
      %4198 = vmatpush1.bf16.msra.mxu0 0
      %4199 = vmatprep.subr.bf16.mxu0 0
      %4200 = vmatpush1.bf16.msra.mxu0 0
      %4201 = vmatprep.subr.bf16.mxu0 0
      %4202 = vmatpush1.bf16.msra.mxu0 0
      %4203 = vmatprep.mubr.bf16.mxu0 0
      %4204 = vmatmul.mubr.bf16.gmra.mrb[0].mxu0 %v3950
      %v4205 = vpop.f32.mrb[0].mxu0
      %v4206 = vadd.f32 %v3994, %v4205
      %v4207 = vpop.f32.mrb[0].mxu0
      %v4208 = vadd.f32 %v3998, %v4207
      %v4209 = vpop.f32.mrb[0].mxu0
      %v4210 = vadd.f32 %v3994, %v4209
      %v4211 = vpop.f32.mrb[0].mxu0
      %v4212 = vadd.f32 %v3998, %v4211
      %4213 = vmatprep.mubr.bf16.mxu0 0
      %4214 = vmatmul.mubr.bf16.gmra.mrb[0].mxu0 %v3951
      %v4215 = vpop.f32.mrb[0].mxu0
      %v4216 = vadd.f32 %v3994, %v4215
      %v4217 = vpop.f32.mrb[0].mxu0
      %v4218 = vadd.f32 %v3998, %v4217
      %v4219 = vpop.f32.mrb[0].mxu0
      %v4220 = vadd.f32 %v3994, %v4219
      %v4221 = vpop.f32.mrb[0].mxu0
      %v4222 = vadd.f32 %v3998, %v4221
      %4223 = vdwg.mxu0
      %4224 = vmatprep.subr.bf16.mxu0 %v4110
      %4225 = vmatpush1.bf16.msra.mxu0 %v4109
      %4226 = vmatprep.subr.bf16.mxu0 %v4114
      %4227 = vmatpush1.bf16.msra.mxu0 %v4113
      %4228 = vmatprep.subr.bf16.mxu0 %v4118
      %4229 = vmatpush1.bf16.msra.mxu0 %v4117
      %4230 = vmatprep.subr.bf16.mxu0 %v4122
      %4231 = vmatpush1.bf16.msra.mxu0 %v4121
      %4232 = vmatprep.subr.bf16.mxu0 %v4126
      %4233 = vmatpush1.bf16.msra.mxu0 %v4125
      %4234 = vmatprep.subr.bf16.mxu0 %v4130
      %4235 = vmatpush1.bf16.msra.mxu0 %v4129
      %4236 = vmatprep.subr.bf16.mxu0 %v4134
      %4237 = vmatpush1.bf16.msra.mxu0 %v4133
      %4238 = vmatprep.subr.bf16.mxu0 %v4138
      %4239 = vmatpush1.bf16.msra.mxu0 %v4137
      %4240 = vmatprep.subr.bf16.mxu0 0
      %4241 = vmatpush1.bf16.msra.mxu0 0
      %4242 = vmatprep.subr.bf16.mxu0 0
      %4243 = vmatpush1.bf16.msra.mxu0 0
      %4244 = vmatprep.subr.bf16.mxu0 0
      %4245 = vmatpush1.bf16.msra.mxu0 0
      %4246 = vmatprep.subr.bf16.mxu0 0
      %4247 = vmatpush1.bf16.msra.mxu0 0
      %4248 = vmatprep.subr.bf16.mxu0 0
      %4249 = vmatpush1.bf16.msra.mxu0 0
      %4250 = vmatprep.subr.bf16.mxu0 0
      %4251 = vmatpush1.bf16.msra.mxu0 0
      %4252 = vmatprep.subr.bf16.mxu0 0
      %4253 = vmatpush1.bf16.msra.mxu0 0
      %4254 = vmatprep.subr.bf16.mxu0 0
      %4255 = vmatpush1.bf16.msra.mxu0 0
      %4256 = vmatprep.mubr.bf16.mxu0 0
      %4257 = vmatmul.mubr.bf16.gmra.mrb[0].mxu0 %v3950
      %v4258 = vpop.f32.mrb[0].mxu0
      %v4259 = vadd.f32 %v4002, %v4258
      %v4260 = vpop.f32.mrb[0].mxu0
      %v4261 = vadd.f32 %v4006, %v4260
      %v4262 = vpop.f32.mrb[0].mxu0
      %v4263 = vadd.f32 %v4002, %v4262
      %v4264 = vpop.f32.mrb[0].mxu0
      %v4265 = vadd.f32 %v4006, %v4264
      %4266 = vmatprep.mubr.bf16.mxu0 0
      %4267 = vmatmul.mubr.bf16.gmra.mrb[0].mxu0 %v3951
      %v4268 = vpop.f32.mrb[0].mxu0
      %v4269 = vadd.f32 %v4002, %v4268
      %v4270 = vpop.f32.mrb[0].mxu0
      %v4271 = vadd.f32 %v4006, %v4270
      %v4272 = vpop.f32.mrb[0].mxu0
      %v4273 = vadd.f32 %v4002, %v4272
      %v4274 = vpop.f32.mrb[0].mxu0
      %v4275 = vadd.f32 %v4006, %v4274
      %4276 = vdwg.mxu0
      %v4277 = vmul.f32 %v4206, 0.5
      %v4278 = vmul.f32 %v4208, 0.5
      %v4279 = vmul.f32 %v4259, 0.5
      %v4280 = vmul.f32 %v4261, 0.5
      %v4281 = vmul.f32 %v4210, 0.5
      %v4282 = vmul.f32 %v4212, 0.5
      %v4283 = vmul.f32 %v4263, 0.5
      %v4284 = vmul.f32 %v4265, 0.5
      %v4285 = vmul.f32 %v4216, 0.5
      %v4286 = vmul.f32 %v4218, 0.5
      %v4287 = vmul.f32 %v4269, 0.5
      %v4288 = vmul.f32 %v4271, 0.5
      %v4289 = vmul.f32 %v4220, 0.5
      %v4290 = vmul.f32 %v4222, 0.5
      %v4291 = vmul.f32 %v4273, 0.5
      %v4292 = vmul.f32 %v4275, 0.5
      %v4293 = vmul.f32 %v4206, %v4206
      %v4294 = vmul.f32 %v4208, %v4208
      %v4295 = vmul.f32 %v4259, %v4259
      %v4296 = vmul.f32 %v4261, %v4261
      %v4297 = vmul.f32 %v4210, %v4210
      %v4298 = vmul.f32 %v4212, %v4212
      %v4299 = vmul.f32 %v4263, %v4263
      %v4300 = vmul.f32 %v4265, %v4265
      %v4301 = vmul.f32 %v4216, %v4216
      %v4302 = vmul.f32 %v4218, %v4218
      %v4303 = vmul.f32 %v4269, %v4269
      %v4304 = vmul.f32 %v4271, %v4271
      %v4305 = vmul.f32 %v4220, %v4220
      %v4306 = vmul.f32 %v4222, %v4222
      %v4307 = vmul.f32 %v4273, %v4273
      %v4308 = vmul.f32 %v4275, %v4275
      %v4309 = vmul.f32 %v4206, %v4293
      %v4310 = vmul.f32 %v4208, %v4294
      %v4311 = vmul.f32 %v4259, %v4295
      %v4312 = vmul.f32 %v4261, %v4296
      %v4313 = vmul.f32 %v4210, %v4297
      %v4314 = vmul.f32 %v4212, %v4298
      %v4315 = vmul.f32 %v4263, %v4299
      %v4316 = vmul.f32 %v4265, %v4300
      %v4317 = vmul.f32 %v4216, %v4301
      %v4318 = vmul.f32 %v4218, %v4302
      %v4319 = vmul.f32 %v4269, %v4303
      %v4320 = vmul.f32 %v4271, %v4304
      %v4321 = vmul.f32 %v4220, %v4305
      %v4322 = vmul.f32 %v4222, %v4306
      %v4323 = vmul.f32 %v4273, %v4307
      %v4324 = vmul.f32 %v4275, %v4308
      %v4325 = vmul.f32 %v4309, 0.044715
      %v4326 = vmul.f32 %v4310, 0.044715
      %v4327 = vmul.f32 %v4311, 0.044715
      %v4328 = vmul.f32 %v4312, 0.044715
      %v4329 = vmul.f32 %v4313, 0.044715
      %v4330 = vmul.f32 %v4314, 0.044715
      %v4331 = vmul.f32 %v4315, 0.044715
      %v4332 = vmul.f32 %v4316, 0.044715
      %v4333 = vmul.f32 %v4317, 0.044715
      %v4334 = vmul.f32 %v4318, 0.044715
      %v4335 = vmul.f32 %v4319, 0.044715
      %v4336 = vmul.f32 %v4320, 0.044715
      %v4337 = vmul.f32 %v4321, 0.044715
      %v4338 = vmul.f32 %v4322, 0.044715
      %v4339 = vmul.f32 %v4323, 0.044715
      %v4340 = vmul.f32 %v4324, 0.044715
      %v4341 = vadd.f32 %v4206, %v4325
      %v4342 = vadd.f32 %v4208, %v4326
      %v4343 = vadd.f32 %v4259, %v4327
      %v4344 = vadd.f32 %v4261, %v4328
      %v4345 = vadd.f32 %v4210, %v4329
      %v4346 = vadd.f32 %v4212, %v4330
      %v4347 = vadd.f32 %v4263, %v4331
      %v4348 = vadd.f32 %v4265, %v4332
      %v4349 = vadd.f32 %v4216, %v4333
      %v4350 = vadd.f32 %v4218, %v4334
      %v4351 = vadd.f32 %v4269, %v4335
      %v4352 = vadd.f32 %v4271, %v4336
      %v4353 = vadd.f32 %v4220, %v4337
      %v4354 = vadd.f32 %v4222, %v4338
      %v4355 = vadd.f32 %v4273, %v4339
      %v4356 = vadd.f32 %v4275, %v4340
      %v4357 = vmul.f32 %v4341, 0.7978846
      %v4358 = vmul.f32 %v4342, 0.7978846
      %v4359 = vmul.f32 %v4343, 0.7978846
      %v4360 = vmul.f32 %v4344, 0.7978846
      %v4361 = vmul.f32 %v4345, 0.7978846
      %v4362 = vmul.f32 %v4346, 0.7978846
      %v4363 = vmul.f32 %v4347, 0.7978846
      %v4364 = vmul.f32 %v4348, 0.7978846
      %v4365 = vmul.f32 %v4349, 0.7978846
      %v4366 = vmul.f32 %v4350, 0.7978846
      %v4367 = vmul.f32 %v4351, 0.7978846
      %v4368 = vmul.f32 %v4352, 0.7978846
      %v4369 = vmul.f32 %v4353, 0.7978846
      %v4370 = vmul.f32 %v4354, 0.7978846
      %v4371 = vmul.f32 %v4355, 0.7978846
      %v4372 = vmul.f32 %v4356, 0.7978846
      %v4373 = vtanh.pop %v4357
      %v4374 = vtanh.pop %v4358
      %v4375 = vtanh.pop %v4359
      %v4376 = vtanh.pop %v4360
      %v4377 = vtanh.pop %v4361
      %v4378 = vtanh.pop %v4362
      %v4379 = vtanh.pop %v4363
      %v4380 = vtanh.pop %v4364
      %v4381 = vtanh.pop %v4365
      %v4382 = vtanh.pop %v4366
      %v4383 = vtanh.pop %v4367
      %v4384 = vtanh.pop %v4368
      %v4385 = vtanh.pop %v4369
      %v4386 = vtanh.pop %v4370
      %v4387 = vtanh.pop %v4371
      %v4388 = vtanh.pop %v4372
      %v4389 = vadd.f32 %v4373, 1.0
      %v4390 = vadd.f32 %v4374, 1.0
      %v4391 = vadd.f32 %v4375, 1.0
      %v4392 = vadd.f32 %v4376, 1.0
      %v4393 = vadd.f32 %v4377, 1.0
      %v4394 = vadd.f32 %v4378, 1.0
      %v4395 = vadd.f32 %v4379, 1.0
      %v4396 = vadd.f32 %v4380, 1.0
      %v4397 = vadd.f32 %v4381, 1.0
      %v4398 = vadd.f32 %v4382, 1.0
      %v4399 = vadd.f32 %v4383, 1.0
      %v4400 = vadd.f32 %v4384, 1.0
      %v4401 = vadd.f32 %v4385, 1.0
      %v4402 = vadd.f32 %v4386, 1.0
      %v4403 = vadd.f32 %v4387, 1.0
      %v4404 = vadd.f32 %v4388, 1.0
      %v4405 = vmul.f32 %v4277, %v4389
      %v4406 = vmul.f32 %v4278, %v4390
      %v4407 = vmul.f32 %v4279, %v4391
      %v4408 = vmul.f32 %v4280, %v4392
      %v4409 = vmul.f32 %v4281, %v4393
      %v4410 = vmul.f32 %v4282, %v4394
      %v4411 = vmul.f32 %v4283, %v4395
      %v4412 = vmul.f32 %v4284, %v4396
      %v4413 = vmul.f32 %v4285, %v4397
      %v4414 = vmul.f32 %v4286, %v4398
      %v4415 = vmul.f32 %v4287, %v4399
      %v4416 = vmul.f32 %v4288, %v4400
      %v4417 = vmul.f32 %v4289, %v4401
      %v4418 = vmul.f32 %v4290, %v4402
      %v4419 = vmul.f32 %v4291, %v4403
      %v4420 = vmul.f32 %v4292, %v4404
      %v4421 = vpack.c.bf16 %v4409, %v4405
      %v4422 = vpack.c.bf16 %v4410, %v4406
      %v4423 = vpack.c.bf16 %v4411, %v4407
      %v4424 = vpack.c.bf16 %v4412, %v4408
      %v4425 = vpack.c.bf16 %v4417, %v4413
      %v4426 = vpack.c.bf16 %v4418, %v4414
      %v4427 = vpack.c.bf16 %v4419, %v4415
      %v4428 = vpack.c.bf16 %v4420, %v4416
      %s4429 = smul.addr %s3952, 4
      %s4430 = scalar_lea.vmem %s10, %s4429
      %v4431 = vld [vmem:[%s4430] sm:$0xf]
      %v4432 = vld [vmem:[%s4430 + $0x4] sm:$0xf]
      %v4433 = vld [vmem:[%s4430 + $0x8] sm:$0xf]
      %v4434 = vld [vmem:[%s4430 + $0xc] sm:$0xf]
      %v4435 = vld [vmem:[%s4430 + $0x10] sm:$0xf]
      %v4436 = vld [vmem:[%s4430 + $0x14] sm:$0xf]
      %v4437 = vld [vmem:[%s4430 + $0x18] sm:$0xf]
      %v4438 = vld [vmem:[%s4430 + $0x1c] sm:$0xf]
      %v4439 = vld [vmem:[%s4430 + $0x20] sm:$0xf]
      %v4440 = vld [vmem:[%s4430 + $0x24] sm:$0xf]
      %v4441 = vld [vmem:[%s4430 + $0x28] sm:$0xf]
      %v4442 = vld [vmem:[%s4430 + $0x2c] sm:$0xf]
      %v4443 = vld [vmem:[%s4430 + $0x30] sm:$0xf]
      %v4444 = vld [vmem:[%s4430 + $0x34] sm:$0xf]
      %v4445 = vld [vmem:[%s4430 + $0x38] sm:$0xf]
      %v4446 = vld [vmem:[%s4430 + $0x3c] sm:$0xf]
      %v4447 = vld [vmem:[%s4430 + $0x40] sm:$0xf]
      %v4448 = vld [vmem:[%s4430 + $0x44] sm:$0xf]
      %v4449 = vld [vmem:[%s4430 + $0x48] sm:$0xf]
      %v4450 = vld [vmem:[%s4430 + $0x4c] sm:$0xf]
      %v4451 = vld [vmem:[%s4430 + $0x50] sm:$0xf]
      %v4452 = vld [vmem:[%s4430 + $0x54] sm:$0xf]
      %v4453 = vld [vmem:[%s4430 + $0x58] sm:$0xf]
      %v4454 = vld [vmem:[%s4430 + $0x5c] sm:$0xf]
      %v4455 = vld [vmem:[%s4430 + $0x60] sm:$0xf]
      %v4456 = vld [vmem:[%s4430 + $0x64] sm:$0xf]
      %v4457 = vld [vmem:[%s4430 + $0x68] sm:$0xf]
      %v4458 = vld [vmem:[%s4430 + $0x6c] sm:$0xf]
      %v4459 = vld [vmem:[%s4430 + $0x70] sm:$0xf]
      %v4460 = vld [vmem:[%s4430 + $0x74] sm:$0xf]
      %v4461 = vld [vmem:[%s4430 + $0x78] sm:$0xf]
      %v4462 = vld [vmem:[%s4430 + $0x7c] sm:$0xf]
      %v4463 = vld [vmem:[%s4430 + $0x80] sm:$0xf]
      %v4464 = vld [vmem:[%s4430 + $0x84] sm:$0xf]
      %v4465 = vld [vmem:[%s4430 + $0x88] sm:$0xf]
      %v4466 = vld [vmem:[%s4430 + $0x8c] sm:$0xf]
      %v4467 = vld [vmem:[%s4430 + $0x90] sm:$0xf]
      %v4468 = vld [vmem:[%s4430 + $0x94] sm:$0xf]
      %v4469 = vld [vmem:[%s4430 + $0x98] sm:$0xf]
      %v4470 = vld [vmem:[%s4430 + $0x9c] sm:$0xf]
      %v4471 = vld [vmem:[%s4430 + $0xa0] sm:$0xf]
      %v4472 = vld [vmem:[%s4430 + $0xa4] sm:$0xf]
      %v4473 = vld [vmem:[%s4430 + $0xa8] sm:$0xf]
      %v4474 = vld [vmem:[%s4430 + $0xac] sm:$0xf]
      %v4475 = vld [vmem:[%s4430 + $0xb0] sm:$0xf]
      %v4476 = vld [vmem:[%s4430 + $0xb4] sm:$0xf]
      %v4477 = vld [vmem:[%s4430 + $0xb8] sm:$0xf]
      %v4478 = vld [vmem:[%s4430 + $0xbc] sm:$0xf]
      %v4479 = vld [vmem:[%s4430 + $0xc0] sm:$0xf]
      %v4480 = vld [vmem:[%s4430 + $0xc4] sm:$0xf]
      %v4481 = vld [vmem:[%s4430 + $0xc8] sm:$0xf]
      %v4482 = vld [vmem:[%s4430 + $0xcc] sm:$0xf]
      %v4483 = vld [vmem:[%s4430 + $0xd0] sm:$0xf]
      %v4484 = vld [vmem:[%s4430 + $0xd4] sm:$0xf]
      %v4485 = vld [vmem:[%s4430 + $0xd8] sm:$0xf]
      %v4486 = vld [vmem:[%s4430 + $0xdc] sm:$0xf]
      %v4487 = vld [vmem:[%s4430 + $0xe0] sm:$0xf]
      %v4488 = vld [vmem:[%s4430 + $0xe4] sm:$0xf]
      %v4489 = vld [vmem:[%s4430 + $0xe8] sm:$0xf]
      %v4490 = vld [vmem:[%s4430 + $0xec] sm:$0xf]
      %v4491 = vld [vmem:[%s4430 + $0xf0] sm:$0xf]
      %v4492 = vld [vmem:[%s4430 + $0xf4] sm:$0xf]
      %v4493 = vld [vmem:[%s4430 + $0xf8] sm:$0xf]
      %v4494 = vld [vmem:[%s4430 + $0xfc] sm:$0xf]
      %s4495 = scalar_lea.vmem %s11, %s34
      %v4496 = vld [vmem:[%s4495] sm:$0x1]
      %v4498 = vlaneseq
      %v4499 = vshrl.u32 %v4498, 7
      %v4500 = vsub.s32 0, %v4499
      %v4501 = vrot.slane %v4496, %v4500
      %v4567 = vunpack.c.l.b16 %v4431
      %v4568 = vunpack.c.l.b16 %v4432
      %v4569 = vunpack.c.l.b16 %v4433
      %v4570 = vunpack.c.l.b16 %v4434
      %v4571 = vunpack.c.l.b16 %v4435
      %v4572 = vunpack.c.l.b16 %v4436
      %v4573 = vunpack.c.l.b16 %v4437
      %v4574 = vunpack.c.l.b16 %v4438
      %v4575 = vunpack.c.l.b16 %v4439
      %v4576 = vunpack.c.l.b16 %v4440
      %v4577 = vunpack.c.l.b16 %v4441
      %v4578 = vunpack.c.l.b16 %v4442
      %v4579 = vunpack.c.l.b16 %v4443
      %v4580 = vunpack.c.l.b16 %v4444
      %v4581 = vunpack.c.l.b16 %v4445
      %v4582 = vunpack.c.l.b16 %v4446
      %v4583 = vunpack.c.l.b16 %v4447
      %v4584 = vunpack.c.l.b16 %v4448
      %v4585 = vunpack.c.l.b16 %v4449
      %v4586 = vunpack.c.l.b16 %v4450
      %v4587 = vunpack.c.l.b16 %v4451
      %v4588 = vunpack.c.l.b16 %v4452
      %v4589 = vunpack.c.l.b16 %v4453
      %v4590 = vunpack.c.l.b16 %v4454
      %v4591 = vunpack.c.l.b16 %v4455
      %v4592 = vunpack.c.l.b16 %v4456
      %v4593 = vunpack.c.l.b16 %v4457
      %v4594 = vunpack.c.l.b16 %v4458
      %v4595 = vunpack.c.l.b16 %v4459
      %v4596 = vunpack.c.l.b16 %v4460
      %v4597 = vunpack.c.l.b16 %v4461
      %v4598 = vunpack.c.l.b16 %v4462
      %v4599 = vunpack.c.l.b16 %v4463
      %v4600 = vunpack.c.l.b16 %v4464
      %v4601 = vunpack.c.l.b16 %v4465
      %v4602 = vunpack.c.l.b16 %v4466
      %v4603 = vunpack.c.l.b16 %v4467
      %v4604 = vunpack.c.l.b16 %v4468
      %v4605 = vunpack.c.l.b16 %v4469
      %v4606 = vunpack.c.l.b16 %v4470
      %v4607 = vunpack.c.l.b16 %v4471
      %v4608 = vunpack.c.l.b16 %v4472
      %v4609 = vunpack.c.l.b16 %v4473
      %v4610 = vunpack.c.l.b16 %v4474
      %v4611 = vunpack.c.l.b16 %v4475
      %v4612 = vunpack.c.l.b16 %v4476
      %v4613 = vunpack.c.l.b16 %v4477
      %v4614 = vunpack.c.l.b16 %v4478
      %v4615 = vunpack.c.l.b16 %v4479
      %v4616 = vunpack.c.l.b16 %v4480
      %v4617 = vunpack.c.l.b16 %v4481
      %v4618 = vunpack.c.l.b16 %v4482
      %v4619 = vunpack.c.l.b16 %v4483
      %v4620 = vunpack.c.l.b16 %v4484
      %v4621 = vunpack.c.l.b16 %v4485
      %v4622 = vunpack.c.l.b16 %v4486
      %v4623 = vunpack.c.l.b16 %v4487
      %v4624 = vunpack.c.l.b16 %v4488
      %v4625 = vunpack.c.l.b16 %v4489
      %v4626 = vunpack.c.l.b16 %v4490
      %v4627 = vunpack.c.l.b16 %v4491
      %v4628 = vunpack.c.l.b16 %v4492
      %v4629 = vunpack.c.l.b16 %v4493
      %v4630 = vunpack.c.l.b16 %v4494
      %v4631 = vpack.c.b16 %v4568, %v4567
      %v4632 = vpack.c.b16 %v4570, %v4569
      %v4633 = vpack.c.b16 %v4572, %v4571
      %v4634 = vpack.c.b16 %v4574, %v4573
      %v4635 = vpack.c.b16 %v4576, %v4575
      %v4636 = vpack.c.b16 %v4578, %v4577
      %v4637 = vpack.c.b16 %v4580, %v4579
      %v4638 = vpack.c.b16 %v4582, %v4581
      %v4639 = vpack.c.b16 %v4584, %v4583
      %v4640 = vpack.c.b16 %v4586, %v4585
      %v4641 = vpack.c.b16 %v4588, %v4587
      %v4642 = vpack.c.b16 %v4590, %v4589
      %v4643 = vpack.c.b16 %v4592, %v4591
      %v4644 = vpack.c.b16 %v4594, %v4593
      %v4645 = vpack.c.b16 %v4596, %v4595
      %v4646 = vpack.c.b16 %v4598, %v4597
      %v4647 = vpack.c.b16 %v4600, %v4599
      %v4648 = vpack.c.b16 %v4602, %v4601
      %v4649 = vpack.c.b16 %v4604, %v4603
      %v4650 = vpack.c.b16 %v4606, %v4605
      %v4651 = vpack.c.b16 %v4608, %v4607
      %v4652 = vpack.c.b16 %v4610, %v4609
      %v4653 = vpack.c.b16 %v4612, %v4611
      %v4654 = vpack.c.b16 %v4614, %v4613
      %v4655 = vpack.c.b16 %v4616, %v4615
      %v4656 = vpack.c.b16 %v4618, %v4617
      %v4657 = vpack.c.b16 %v4620, %v4619
      %v4658 = vpack.c.b16 %v4622, %v4621
      %v4659 = vpack.c.b16 %v4624, %v4623
      %v4660 = vpack.c.b16 %v4626, %v4625
      %v4661 = vpack.c.b16 %v4628, %v4627
      %v4662 = vpack.c.b16 %v4630, %v4629
      %4695 = vmatprep.subr.bf16.mxu0 0
      %4696 = vmatpush1.bf16.msra.mxu0 %v4631
      %4697 = vmatprep.subr.bf16.mxu0 0
      %4698 = vmatpush1.bf16.msra.mxu0 %v4632
      %4699 = vmatprep.subr.bf16.mxu0 0
      %4700 = vmatpush1.bf16.msra.mxu0 %v4633
      %4701 = vmatprep.subr.bf16.mxu0 0
      %4702 = vmatpush1.bf16.msra.mxu0 %v4634
      %4703 = vmatprep.subr.bf16.mxu0 0
      %4704 = vmatpush1.bf16.msra.mxu0 %v4635
      %4705 = vmatprep.subr.bf16.mxu0 0
      %4706 = vmatpush1.bf16.msra.mxu0 %v4636
      %4707 = vmatprep.subr.bf16.mxu0 0
      %4708 = vmatpush1.bf16.msra.mxu0 %v4637
      %4709 = vmatprep.subr.bf16.mxu0 0
      %4710 = vmatpush1.bf16.msra.mxu0 %v4638
      %4711 = vmatprep.subr.bf16.mxu0 0
      %4712 = vmatpush1.bf16.msra.mxu0 %v4639
      %4713 = vmatprep.subr.bf16.mxu0 0
      %4714 = vmatpush1.bf16.msra.mxu0 %v4640
      %4715 = vmatprep.subr.bf16.mxu0 0
      %4716 = vmatpush1.bf16.msra.mxu0 %v4641
      %4717 = vmatprep.subr.bf16.mxu0 0
      %4718 = vmatpush1.bf16.msra.mxu0 %v4642
      %4719 = vmatprep.subr.bf16.mxu0 0
      %4720 = vmatpush1.bf16.msra.mxu0 %v4643
      %4721 = vmatprep.subr.bf16.mxu0 0
      %4722 = vmatpush1.bf16.msra.mxu0 %v4644
      %4723 = vmatprep.subr.bf16.mxu0 0
      %4724 = vmatpush1.bf16.msra.mxu0 %v4645
      %4725 = vmatprep.subr.bf16.mxu0 0
      %4726 = vmatpush1.bf16.msra.mxu0 %v4646
      %4727 = vmatprep.mubr.bf16.mxu0 %v4422
      %4728 = vmatmul.mubr.bf16.gmra.mrb[0].mxu0 %v4421
      %v4729 = vpop.f32.mrb[0].mxu0
      %v4730 = vadd.f32 %v4501, %v4729
      %v4731 = vpop.f32.mrb[0].mxu0
      %v4732 = vpop.f32.mrb[0].mxu0
      %v4733 = vadd.f32 %v4501, %v4732
      %v4734 = vpop.f32.mrb[0].mxu0
      %4735 = vmatprep.mubr.bf16.mxu0 %v4426
      %4736 = vmatmul.mubr.bf16.gmra.mrb[0].mxu0 %v4425
      %v4737 = vpop.f32.mrb[0].mxu0
      %v4738 = vadd.f32 %v4501, %v4737
      %v4739 = vpop.f32.mrb[0].mxu0
      %v4740 = vpop.f32.mrb[0].mxu0
      %v4741 = vadd.f32 %v4501, %v4740
      %v4742 = vpop.f32.mrb[0].mxu0
      %4743 = vdwg.mxu0
      %4744 = vmatprep.subr.bf16.mxu0 0
      %4745 = vmatpush1.bf16.msra.mxu0 %v4647
      %4746 = vmatprep.subr.bf16.mxu0 0
      %4747 = vmatpush1.bf16.msra.mxu0 %v4648
      %4748 = vmatprep.subr.bf16.mxu0 0
      %4749 = vmatpush1.bf16.msra.mxu0 %v4649
      %4750 = vmatprep.subr.bf16.mxu0 0
      %4751 = vmatpush1.bf16.msra.mxu0 %v4650
      %4752 = vmatprep.subr.bf16.mxu0 0
      %4753 = vmatpush1.bf16.msra.mxu0 %v4651
      %4754 = vmatprep.subr.bf16.mxu0 0
      %4755 = vmatpush1.bf16.msra.mxu0 %v4652
      %4756 = vmatprep.subr.bf16.mxu0 0
      %4757 = vmatpush1.bf16.msra.mxu0 %v4653
      %4758 = vmatprep.subr.bf16.mxu0 0
      %4759 = vmatpush1.bf16.msra.mxu0 %v4654
      %4760 = vmatprep.subr.bf16.mxu0 0
      %4761 = vmatpush1.bf16.msra.mxu0 %v4655
      %4762 = vmatprep.subr.bf16.mxu0 0
      %4763 = vmatpush1.bf16.msra.mxu0 %v4656
      %4764 = vmatprep.subr.bf16.mxu0 0
      %4765 = vmatpush1.bf16.msra.mxu0 %v4657
      %4766 = vmatprep.subr.bf16.mxu0 0
      %4767 = vmatpush1.bf16.msra.mxu0 %v4658
      %4768 = vmatprep.subr.bf16.mxu0 0
      %4769 = vmatpush1.bf16.msra.mxu0 %v4659
      %4770 = vmatprep.subr.bf16.mxu0 0
      %4771 = vmatpush1.bf16.msra.mxu0 %v4660
      %4772 = vmatprep.subr.bf16.mxu0 0
      %4773 = vmatpush1.bf16.msra.mxu0 %v4661
      %4774 = vmatprep.subr.bf16.mxu0 0
      %4775 = vmatpush1.bf16.msra.mxu0 %v4662
      %4776 = vmatprep.mubr.bf16.mxu0 %v4424
      %4777 = vmatmul.mubr.bf16.gmra.mrb[0].mxu0 %v4423
      %v4778 = vpop.f32.mrb[0].mxu0
      %v4779 = vadd.f32 %v4730, %v4778
      %v4780 = vpop.f32.mrb[0].mxu0
      %v4781 = vpop.f32.mrb[0].mxu0
      %v4782 = vadd.f32 %v4733, %v4781
      %v4783 = vpop.f32.mrb[0].mxu0
      %4784 = vmatprep.mubr.bf16.mxu0 %v4428
      %4785 = vmatmul.mubr.bf16.gmra.mrb[0].mxu0 %v4427
      %v4786 = vpop.f32.mrb[0].mxu0
      %v4787 = vadd.f32 %v4738, %v4786
      %v4788 = vpop.f32.mrb[0].mxu0
      %v4789 = vpop.f32.mrb[0].mxu0
      %v4790 = vadd.f32 %v4741, %v4789
      %v4791 = vpop.f32.mrb[0].mxu0
      %4792 = vdwg.mxu0
      %v4793 = vadd.f32 %v4779, %v3878
      %v4794 = vadd.f32 %v4782, %v3879
      %v4795 = vadd.f32 %v4787, %v3880
      %v4796 = vadd.f32 %v4790, %v3881
      %4797 = vst [vmem:[#allocation2] sm:$0xff] %v4793
      %4798 = vst [vmem:[#allocation2 + $0x8] sm:$0xff] %v4794
      %4799 = vst [vmem:[#allocation2 + $0x10] sm:$0xff] %v4795
      %4800 = vst [vmem:[#allocation2 + $0x18] sm:$0xff] %v4796
      %p4801 = scmp.eq.s32.totalorder %s34, 1
      %p4802 = scmp.lt.s32.totalorder %s33, 1
      %p4803 = pnand %p4801, %p4802
      %p4804 = pneg %p4803
      // Predicated region
      $region93: #{_lambda_.2} parent=83 // pred_check
        _
      $region94: #{_lambda_.2} parent=83 // pred_check_branch
        %4806 = sbr.rel (%p4803) target = $region96
      $region95: #{_lambda_.2} parent=83 // pred_region
        %v4807 = vld [vmem:[#allocation3] sm:$0xff]
        %v4808 = vld [vmem:[#allocation3 + $0x8] sm:$0xff]
        %v4809 = vld [vmem:[#allocation3 + $0x10] sm:$0xff]
        %v4810 = vld [vmem:[#allocation3 + $0x18] sm:$0xff]
        %v4811 = vpack.c.bf16 %v4808, %v4807
        %v4812 = vpack.c.bf16 %v4810, %v4809
        %v4813 = vld [vmem:[%s12] sm:$0xf]
        %v4814 = vld [vmem:[%s12 + $0x4] sm:$0xf]
        %v4815 = vld [vmem:[%s12 + $0x8] sm:$0xf]
        %v4816 = vld [vmem:[%s12 + $0xc] sm:$0xf]
        %v4817 = vld [vmem:[%s12 + $0x10] sm:$0xf]
        %v4818 = vld [vmem:[%s12 + $0x14] sm:$0xf]
        %v4819 = vld [vmem:[%s12 + $0x18] sm:$0xf]
        %v4820 = vld [vmem:[%s12 + $0x1c] sm:$0xf]
        %v4821 = vld [vmem:[%s12 + $0x20] sm:$0xf]
        %v4822 = vld [vmem:[%s12 + $0x24] sm:$0xf]
        %v4823 = vld [vmem:[%s12 + $0x28] sm:$0xf]
        %v4824 = vld [vmem:[%s12 + $0x2c] sm:$0xf]
        %v4825 = vld [vmem:[%s12 + $0x30] sm:$0xf]
        %v4826 = vld [vmem:[%s12 + $0x34] sm:$0xf]
        %v4827 = vld [vmem:[%s12 + $0x38] sm:$0xf]
        %v4828 = vld [vmem:[%s12 + $0x3c] sm:$0xf]
        %v4829 = vpack.c.bf16 %v4794, %v4793
        %v4830 = vpack.c.bf16 %v4796, %v4795
        %v4831 = vld [vmem:[%s13] sm:$0xf]
        %v4832 = vld [vmem:[%s13 + $0x4] sm:$0xf]
        %v4833 = vld [vmem:[%s13 + $0x8] sm:$0xf]
        %v4834 = vld [vmem:[%s13 + $0xc] sm:$0xf]
        %v4835 = vld [vmem:[%s13 + $0x10] sm:$0xf]
        %v4836 = vld [vmem:[%s13 + $0x14] sm:$0xf]
        %v4837 = vld [vmem:[%s13 + $0x18] sm:$0xf]
        %v4838 = vld [vmem:[%s13 + $0x1c] sm:$0xf]
        %v4839 = vld [vmem:[%s13 + $0x20] sm:$0xf]
        %v4840 = vld [vmem:[%s13 + $0x24] sm:$0xf]
        %v4841 = vld [vmem:[%s13 + $0x28] sm:$0xf]
        %v4842 = vld [vmem:[%s13 + $0x2c] sm:$0xf]
        %v4843 = vld [vmem:[%s13 + $0x30] sm:$0xf]
        %v4844 = vld [vmem:[%s13 + $0x34] sm:$0xf]
        %v4845 = vld [vmem:[%s13 + $0x38] sm:$0xf]
        %v4846 = vld [vmem:[%s13 + $0x3c] sm:$0xf]
        %v4863 = vunpack.c.l.b16 %v4831
        %v4864 = vunpack.c.l.b16 %v4832
        %v4865 = vunpack.c.l.b16 %v4833
        %v4866 = vunpack.c.l.b16 %v4834
        %v4867 = vunpack.c.l.b16 %v4835
        %v4868 = vunpack.c.l.b16 %v4836
        %v4869 = vunpack.c.l.b16 %v4837
        %v4870 = vunpack.c.l.b16 %v4838
        %v4871 = vunpack.c.l.b16 %v4839
        %v4872 = vunpack.c.l.b16 %v4840
        %v4873 = vunpack.c.l.b16 %v4841
        %v4874 = vunpack.c.l.b16 %v4842
        %v4875 = vunpack.c.l.b16 %v4843
        %v4876 = vunpack.c.l.b16 %v4844
        %v4877 = vunpack.c.l.b16 %v4845
        %v4878 = vunpack.c.l.b16 %v4846
        %v4879 = vpack.c.b16 %v4864, %v4863
        %v4880 = vpack.c.b16 %v4866, %v4865
        %v4881 = vpack.c.b16 %v4868, %v4867
        %v4882 = vpack.c.b16 %v4870, %v4869
        %v4883 = vpack.c.b16 %v4872, %v4871
        %v4884 = vpack.c.b16 %v4874, %v4873
        %v4885 = vpack.c.b16 %v4876, %v4875
        %v4886 = vpack.c.b16 %v4878, %v4877
        %4895 = vmatprep.subr.bf16.mxu0 0
        %4896 = vmatpush1.bf16.msra.mxu0 %v4879
        %4897 = vmatprep.subr.bf16.mxu0 0
        %4898 = vmatpush1.bf16.msra.mxu0 %v4880
        %4899 = vmatprep.subr.bf16.mxu0 0
        %4900 = vmatpush1.bf16.msra.mxu0 %v4881
        %4901 = vmatprep.subr.bf16.mxu0 0
        %4902 = vmatpush1.bf16.msra.mxu0 %v4882
        %4903 = vmatprep.subr.bf16.mxu0 0
        %4904 = vmatpush1.bf16.msra.mxu0 %v4883
        %4905 = vmatprep.subr.bf16.mxu0 0
        %4906 = vmatpush1.bf16.msra.mxu0 %v4884
        %4907 = vmatprep.subr.bf16.mxu0 0
        %4908 = vmatpush1.bf16.msra.mxu0 %v4885
        %4909 = vmatprep.subr.bf16.mxu0 0
        %4910 = vmatpush1.bf16.msra.mxu0 %v4886
        %4911 = vmatprep.subr.bf16.mxu0 0
        %4912 = vmatpush1.bf16.msra.mxu0 0
        %4913 = vmatprep.subr.bf16.mxu0 0
        %4914 = vmatpush1.bf16.msra.mxu0 0
        %4915 = vmatprep.subr.bf16.mxu0 0
        %4916 = vmatpush1.bf16.msra.mxu0 0
        %4917 = vmatprep.subr.bf16.mxu0 0
        %4918 = vmatpush1.bf16.msra.mxu0 0
        %4919 = vmatprep.subr.bf16.mxu0 0
        %4920 = vmatpush1.bf16.msra.mxu0 0
        %4921 = vmatprep.subr.bf16.mxu0 0
        %4922 = vmatpush1.bf16.msra.mxu0 0
        %4923 = vmatprep.subr.bf16.mxu0 0
        %4924 = vmatpush1.bf16.msra.mxu0 0
        %4925 = vmatprep.subr.bf16.mxu0 0
        %4926 = vmatpush1.bf16.msra.mxu0 0
        %4927 = vmatprep.mubr.bf16.mxu0 0
        %4928 = vmatmul.mubr.bf16.gmra.mrb[0].mxu0 %v4829
        %v4929 = vpop.f32.mrb[0].mxu0
        %v4930 = vadd.f32 0.0, %v4929
        %v4931 = vpop.f32.mrb[0].mxu0
        %v4932 = vpop.f32.mrb[0].mxu0
        %v4933 = vadd.f32 0.0, %v4932
        %v4934 = vpop.f32.mrb[0].mxu0
        %4935 = vmatprep.mubr.bf16.mxu0 0
        %4936 = vmatmul.mubr.bf16.gmra.mrb[0].mxu0 %v4830
        %v4937 = vpop.f32.mrb[0].mxu0
        %v4938 = vadd.f32 0.0, %v4937
        %v4939 = vpop.f32.mrb[0].mxu0
        %v4940 = vpop.f32.mrb[0].mxu0
        %v4941 = vadd.f32 0.0, %v4940
        %v4942 = vpop.f32.mrb[0].mxu0
        %4943 = vdwg.mxu0
        %v4960 = vunpack.c.l.b16 %v4813
        %v4961 = vunpack.c.l.b16 %v4814
        %v4962 = vunpack.c.l.b16 %v4815
        %v4963 = vunpack.c.l.b16 %v4816
        %v4964 = vunpack.c.l.b16 %v4817
        %v4965 = vunpack.c.l.b16 %v4818
        %v4966 = vunpack.c.l.b16 %v4819
        %v4967 = vunpack.c.l.b16 %v4820
        %v4968 = vunpack.c.l.b16 %v4821
        %v4969 = vunpack.c.l.b16 %v4822
        %v4970 = vunpack.c.l.b16 %v4823
        %v4971 = vunpack.c.l.b16 %v4824
        %v4972 = vunpack.c.l.b16 %v4825
        %v4973 = vunpack.c.l.b16 %v4826
        %v4974 = vunpack.c.l.b16 %v4827
        %v4975 = vunpack.c.l.b16 %v4828
        %v4976 = vpack.c.b16 %v4961, %v4960
        %v4977 = vpack.c.b16 %v4963, %v4962
        %v4978 = vpack.c.b16 %v4965, %v4964
        %v4979 = vpack.c.b16 %v4967, %v4966
        %v4980 = vpack.c.b16 %v4969, %v4968
        %v4981 = vpack.c.b16 %v4971, %v4970
        %v4982 = vpack.c.b16 %v4973, %v4972
        %v4983 = vpack.c.b16 %v4975, %v4974
        %4992 = vmatprep.subr.bf16.mxu0 0
        %4993 = vmatpush1.bf16.msra.mxu0 %v4976
        %4994 = vmatprep.subr.bf16.mxu0 0
        %4995 = vmatpush1.bf16.msra.mxu0 %v4977
        %4996 = vmatprep.subr.bf16.mxu0 0
        %4997 = vmatpush1.bf16.msra.mxu0 %v4978
        %4998 = vmatprep.subr.bf16.mxu0 0
        %4999 = vmatpush1.bf16.msra.mxu0 %v4979
        %5000 = vmatprep.subr.bf16.mxu0 0
        %5001 = vmatpush1.bf16.msra.mxu0 %v4980
        %5002 = vmatprep.subr.bf16.mxu0 0
        %5003 = vmatpush1.bf16.msra.mxu0 %v4981
        %5004 = vmatprep.subr.bf16.mxu0 0
        %5005 = vmatpush1.bf16.msra.mxu0 %v4982
        %5006 = vmatprep.subr.bf16.mxu0 0
        %5007 = vmatpush1.bf16.msra.mxu0 %v4983
        %5008 = vmatprep.subr.bf16.mxu0 0
        %5009 = vmatpush1.bf16.msra.mxu0 0
        %5010 = vmatprep.subr.bf16.mxu0 0
        %5011 = vmatpush1.bf16.msra.mxu0 0
        %5012 = vmatprep.subr.bf16.mxu0 0
        %5013 = vmatpush1.bf16.msra.mxu0 0
        %5014 = vmatprep.subr.bf16.mxu0 0
        %5015 = vmatpush1.bf16.msra.mxu0 0
        %5016 = vmatprep.subr.bf16.mxu0 0
        %5017 = vmatpush1.bf16.msra.mxu0 0
        %5018 = vmatprep.subr.bf16.mxu0 0
        %5019 = vmatpush1.bf16.msra.mxu0 0
        %5020 = vmatprep.subr.bf16.mxu0 0
        %5021 = vmatpush1.bf16.msra.mxu0 0
        %5022 = vmatprep.subr.bf16.mxu0 0
        %5023 = vmatpush1.bf16.msra.mxu0 0
        %5024 = vmatprep.mubr.bf16.mxu0 0
        %5025 = vmatmul.mubr.bf16.gmra.mrb[0].mxu0 %v4811
        %v5026 = vpop.f32.mrb[0].mxu0
        %v5027 = vadd.f32 %v4930, %v5026
        %v5028 = vpop.f32.mrb[0].mxu0
        %v5029 = vpop.f32.mrb[0].mxu0
        %v5030 = vadd.f32 %v4933, %v5029
        %v5031 = vpop.f32.mrb[0].mxu0
        %5032 = vmatprep.mubr.bf16.mxu0 0
        %5033 = vmatmul.mubr.bf16.gmra.mrb[0].mxu0 %v4812
        %v5034 = vpop.f32.mrb[0].mxu0
        %v5035 = vadd.f32 %v4938, %v5034
        %v5036 = vpop.f32.mrb[0].mxu0
        %v5037 = vpop.f32.mrb[0].mxu0
        %v5038 = vadd.f32 %v4941, %v5037
        %v5039 = vpop.f32.mrb[0].mxu0
        %5040 = vdwg.mxu0
        %5041 = vst [vmem:[#allocation3] sm:$0xff] %v5027
        %5042 = vst [vmem:[#allocation3 + $0x8] sm:$0xff] %v5030
        %5043 = vst [vmem:[#allocation3 + $0x10] sm:$0xff] %v5035
        %5044 = vst [vmem:[#allocation3 + $0x18] sm:$0xff] %v5038
      $region96: #{_lambda_.2} parent=83 // pred_fallthru
        _
      %p5045 = scmp.eq.s32.totalorder %s33, 1
      %p5046 = pnand %p4801, %p5045
      %p5047 = pneg %p5046
      // Predicated region
      $region97: #{_lambda_.2} parent=83 // pred_check
        _
      $region98: #{_lambda_.2} parent=83 // pred_check_branch
        %5049 = sbr.rel (%p5046) target = $region100
      $region99: #{_lambda_.2} parent=83 // pred_region
        %v5050 = vld [vmem:[%s14] sm:$0x1]
        %v5051 = vld [vmem:[%s15] sm:$0x1]
        %5052 = vadd.xlane.f32.xlu0 %v4793
        %v5053 = vpop.xlane.xlu0 %5052
        %5054 = vadd.xlane.f32.xlu0 %v4794
        %v5055 = vpop.xlane.xlu0 %5054
        %5056 = vadd.xlane.f32.xlu0 %v4795
        %v5057 = vpop.xlane.xlu0 %5056
        %5058 = vadd.xlane.f32.xlu0 %v4796
        %v5059 = vpop.xlane.xlu0 %5058
        %v5060 = vmul.f32 %v5053, %v586
        %v5061 = vmul.f32 %v5055, %v586
        %v5062 = vmul.f32 %v5057, %v586
        %v5063 = vmul.f32 %v5059, %v586
        %v5064 = vsub.f32 %v4793, %v5060
        %v5065 = vsub.f32 %v4794, %v5061
        %v5066 = vsub.f32 %v4795, %v5062
        %v5067 = vsub.f32 %v4796, %v5063
        %v5068 = vmul.f32 %v5064, %v5064
        %v5069 = vmul.f32 %v5065, %v5065
        %v5070 = vmul.f32 %v5066, %v5066
        %v5071 = vmul.f32 %v5067, %v5067
        %5072 = vadd.xlane.f32.xlu0 %v5068
        %v5073 = vpop.xlane.xlu0 %5072
        %5074 = vadd.xlane.f32.xlu0 %v5069
        %v5075 = vpop.xlane.xlu0 %5074
        %5076 = vadd.xlane.f32.xlu0 %v5070
        %v5077 = vpop.xlane.xlu0 %5076
        %5078 = vadd.xlane.f32.xlu0 %v5071
        %v5079 = vpop.xlane.xlu0 %5078
        %v5080 = vmul.f32 %v5073, %v586
        %v5081 = vmul.f32 %v5075, %v586
        %v5082 = vmul.f32 %v5077, %v586
        %v5083 = vmul.f32 %v5079, %v586
        %v5085 = vlaneseq
        %v5086 = vshrl.u32 %v5085, 7
        %v5087 = vsub.s32 0, %v5086
        %v5088 = vrot.slane %v5050, %v5087
        %v5090 = vmul.f32 %v5088, %v5064
        %v5091 = vmul.f32 %v5088, %v5065
        %v5092 = vmul.f32 %v5088, %v5066
        %v5093 = vmul.f32 %v5088, %v5067
        %v5094 = vadd.f32 %v5080, 1e-05
        %v5095 = vadd.f32 %v5081, 1e-05
        %v5096 = vadd.f32 %v5082, 1e-05
        %v5097 = vadd.f32 %v5083, 1e-05
        %v5098 = vrsqrt.pop %v5094
        %v5099 = vrsqrt.pop %v5095
        %v5100 = vrsqrt.pop %v5096
        %v5101 = vrsqrt.pop %v5097
        %v5102 = vmul.f32 %v5090, %v5098
        %v5103 = vmul.f32 %v5091, %v5099
        %v5104 = vmul.f32 %v5092, %v5100
        %v5105 = vmul.f32 %v5093, %v5101
        %v5107 = vlaneseq
        %v5108 = vshrl.u32 %v5107, 7
        %v5109 = vsub.s32 0, %v5108
        %v5110 = vrot.slane %v5051, %v5109
        %v5112 = vadd.f32 %v5102, %v5110
        %v5113 = vadd.f32 %v5103, %v5110
        %v5114 = vadd.f32 %v5104, %v5110
        %v5115 = vadd.f32 %v5105, %v5110
        %v5116 = vpack.c.bf16 %v5113, %v5112
        %v5117 = vpack.c.bf16 %v5115, %v5114
        %v5120 = vunpack.c.l.b16 %v5116
        %v5121 = vunpack.c.h.b16 %v5116
        %v5122 = vunpack.c.l.b16 %v5117
        %v5123 = vunpack.c.h.b16 %v5117
        %v5124 = vpack.c.b16 %v5120, %v5120
        %v5125 = vpack.c.b16 %v5121, %v5121
        %v5126 = vpack.c.b16 %v5122, %v5122
        %v5127 = vpack.c.b16 %v5123, %v5123
        %5132 = vst [vmem:[%s542] sm:$0xf] %v5124
        %5133 = vst [vmem:[%s542 + $0x4] sm:$0xf] %v5125
        %5134 = vst [vmem:[%s542 + $0x8] sm:$0xf] %v5126
        %5135 = vst [vmem:[%s542 + $0xc] sm:$0xf] %v5127
      $region100: #{_lambda_.2} parent=83 // pred_fallthru
        _
      %s5136 = smul.u32 4, %s32
      %p5137 = scmp.lt.s32.totalorder %s5136, 7
      %s5138 = scalar_select %p5137, %s5136, 7
      %s5139 = smul.addr %s5138, 4
      %s5140 = scalar_lea.vmem %s16, %s5139
      // Predicated region
      $region101: #{_lambda_.2} parent=83 // pred_check
        %p5141 = pneg %p405
      $region102: #{_lambda_.2} parent=83 // pred_check_branch
        %5143 = sbr.rel (%p5141) target = $region104
      $region103: #{_lambda_.2} parent=83 // pred_region
        %s5144 = smul.u32 4, %s32
      $region104: #{_lambda_.2} parent=83 // pred_fallthru
        _
    $region84: #{_lambda_.2} parent=5 // pred_fallthru
      _
    %p5145 = scmp.le.s32.totalorder 2, %s22
    // Predicated region
    $region105: #{_lambda_.2} parent=5 // pred_check
      %p5146 = pneg %p5145
    $region106: #{_lambda_.2} parent=5 // pred_check_branch
      %5148 = sbr.rel (%p5146) target = $region108
    $region107: #{_lambda_.2} parent=5 // pred_region
      %s5149 = ssub.s32 %s22, 2
      // Predicated region
      $region109: #{_lambda_.2} parent=107 // pred_check
        %p5150 = pneg %p411
      $region110: #{_lambda_.2} parent=107 // pred_check_branch
        %5152 = sbr.rel (%p5150) target = $region112
      $region111: #{_lambda_.2} parent=107 // pred_region
        %s5153 = smul.u32 4, %s35
        %p5154 = scmp.lt.s32.totalorder %s5153, 7
        %s5155 = scalar_select %p5154, %s5153, 7
        %s5156 = smul.addr %s5155, 4
        %s5157 = scalar_lea.vmem %s16, %s5156
      $region112: #{_lambda_.2} parent=107 // pred_fallthru
        _
    $region108: #{_lambda_.2} parent=5 // pred_fallthru
      _
  $region6: #{_lambda_.2} parent=0 // loop_footer
    %s26 = sadd.s32 1, %s22
  $region7: #{_lambda_.2} parent=0 // loop_footer_branch
    %21 = sbr.rel target = $region3
  $region8: #{_lambda_.2} parent=0 // loop_exit
    _

</llo_original>
